<compile_context>
chip_gen: v5e
topology: v5e:2x2
jax: 0.10.0
libtpu: 0.0.40
codegen_flags: <defaults>
</compile_context>

<pallas_src>
import functools

import jax
import jax.numpy as jnp
from jax.experimental import pallas as pl
from jax.experimental.pallas import tpu as pltpu

LANE = 128   # TPU lane width


# ----------------------------------------------------------------------------
# shape helpers
# ----------------------------------------------------------------------------

def _round_up(x, m):
    return ((x + m - 1) // m) * m


def _pad_rows(x, tm):
    """Zero-pad the leading (row) dim of a 2-D array to a multiple of tm."""
    n = x.shape[0]
    npad = _round_up(n, tm)
    if npad != n:
        x = jnp.pad(x, ((0, npad - n), (0, 0)))
    return x


def _pad_lanes(a, mult=LANE):
    """Zero-pad the last dim to a multiple of `mult` (lane-dense outputs)."""
    d = a.shape[-1]
    pad = _round_up(d, mult) - d
    if pad:
        a = jnp.pad(a, [(0, 0)] * (a.ndim - 1) + [(0, pad)])
    return a


def _choose_tm(n, target):
    """Row tile: multiple of 16 (bf16 sublane packing); >=2 grid steps when possible."""
    tm = min(_round_up(target, 16), _round_up(n, 16))
    if tm >= n > 16:                 # grid would collapse to a single step (v7x: 2 TCs)
        tm = _round_up(-(-n // 2), 16)
    return max(tm, 16)


def _const_spec(a):
    """Whole-array block with a constant index map (weights / biases)."""
    return pl.BlockSpec(a.shape, lambda i, _nd=a.ndim: (0,) * _nd)


def _bf16(a):
    return a.astype(jnp.bfloat16)


def _nbytes(*arrays):
    return int(sum(a.size * a.dtype.itemsize for a in arrays))


# ----------------------------------------------------------------------------
# Pallas kernels
# ----------------------------------------------------------------------------

def conv1x1_kernel(x_ref, w_ref, b_ref, o_ref):
    # out[co, hw] = sum_ci W[co, ci] * x[ci, hw] + b[co]   (native NCHW 1x1 conv)
    x = x_ref[0]                                        # (Cin, HWt) bf16
    o_ref[0] = (jnp.dot(w_ref[...], x, preferred_element_type=jnp.float32)
                + b_ref[...])


def heads_kernel(h_ref, o_ref, x_ref,
                 # human bbox MLP
                 hw1, hb1, hw2, hb2, hw3, hb3,
                 # object path: fused [bbox.w1 | class_fc.w], bbox tail, LN, proj
                 ow1fc, ob1fc, ow2, ob2, ow3, ob3, lng, lnb, oproj,
                 # HOI path: inter2verb MLP + stacked projection
                 iw1, ib1, iw2, ib2, iw3, ib3, hoiw,
                 # outputs
                 sub_ref, obox_ref, ocls_ref, hoi_ref, ihn_ref,
                 # bf16 hidden-activation scratch
                 hh, ho, hi):
    f32 = jnp.float32
    bf16 = jnp.bfloat16

    # ---------- human bbox MLP (relu, relu, linear) + sigmoid ----------
    h = h_ref[...]                                      # (tm, hidden) bf16
    hh[...] = jnp.maximum(
        jnp.dot(h, hw1[...], preferred_element_type=f32) + hb1[...], 0.0
    ).astype(bf16)
    hh[...] = jnp.maximum(
        jnp.dot(hh[...], hw2[...], preferred_element_type=f32) + hb2[...], 0.0
    ).astype(bf16)
    sub_ref[...] = jax.nn.sigmoid(
        jnp.dot(hh[...], hw3[...], preferred_element_type=f32) + hb3[...])

    # ---------- object path ----------
    # one wide matmul for [obj_bbox.w1 | obj_class_fc.w] (same LHS o_hs)
    o = o_ref[...]                                      # (tm, hidden) bf16
    dh_o = ow2.shape[0]
    of = jnp.dot(o, ow1fc[...], preferred_element_type=f32) + ob1fc[...]

    # (a) obj bbox MLP + sigmoid
    ho[...] = jnp.maximum(of[:, :dh_o], 0.0).astype(bf16)
    ho[...] = jnp.maximum(
        jnp.dot(ho[...], ow2[...], preferred_element_type=f32) + ob2[...], 0.0
    ).astype(bf16)
    obox_ref[...] = jax.nn.sigmoid(
        jnp.dot(ho[...], ow3[...], preferred_element_type=f32) + ob3[...])

    # (b) obj classification: LayerNorm -> L2 normalize -> scaled projection
    #     (exp(obj_logit_scale) pre-folded into oproj)
    c = of[:, dh_o:]
    mu = jnp.mean(c, axis=-1, keepdims=True)
    var = jnp.mean(jnp.square(c - mu), axis=-1, keepdims=True)
    c = (c - mu) * jax.lax.rsqrt(var + 1e-5) * lng[...] + lnb[...]
    c = c * jax.lax.rsqrt(jnp.sum(c * c, axis=-1, keepdims=True) + 1e-12)
    ocls_ref[...] = jnp.dot(c.astype(bf16), oproj[...],
                            preferred_element_type=f32)

    # ---------- HOI path ----------
    x = x_ref[...]                                      # (tm, E) f32 (exact feature out)
    xb = x.astype(bf16)
    hi[...] = jnp.maximum(
        jnp.dot(xb, iw1[...], preferred_element_type=f32) + ib1[...], 0.0
    ).astype(bf16)
    hi[...] = jnp.maximum(
        jnp.dot(hi[...], iw2[...], preferred_element_type=f32) + ib2[...], 0.0
    ).astype(bf16)
    vh = jnp.dot(hi[...], iw3[...], preferred_element_type=f32) + ib3[...]

    ihn = x * jax.lax.rsqrt(jnp.sum(x * x, axis=-1, keepdims=True) + 1e-12)
    vhn = vh * jax.lax.rsqrt(jnp.sum(vh * vh, axis=-1, keepdims=True) + 1e-12)

    # single K = 2E MXU issue: [inter_n | verb_n] @ [vis_proj ; verb_proj@verb2hoi]
    cat = jnp.concatenate([ihn.astype(bf16), vhn.astype(bf16)], axis=-1)
    hoi_ref[...] = jnp.dot(cat, hoiw[...], preferred_element_type=f32)
    ihn_ref[...] = ihn                                  # normalized inter_hs ('hoi_feature')


# ----------------------------------------------------------------------------
# Pallas wrappers
# ----------------------------------------------------------------------------

def pallas_conv1x1(src, w_oc_ic, bias_col, hw_block=1024):
    """1x1 conv in native NCHW: per batch, (Cout,Cin)@(Cin,H*W) + bias."""
    B, Cin, H, W = src.shape
    Cout = w_oc_ic.shape[0]
    HW = H * W
    hwt = min(_round_up(hw_block, LANE), _round_up(HW, LANE))
    HWp = _round_up(HW, hwt)

    x = _bf16(src.reshape(B, Cin, HW))
    if HWp != HW:
        x = jnp.pad(x, ((0, 0), (0, 0), (0, HWp - HW)))
    wb = _bf16(w_oc_ic)

    cost = pl.CostEstimate(
        flops=int(2 * B * Cout * Cin * HWp),
        transcendentals=0,
        bytes_accessed=_nbytes(x, wb, bias_col) + int(B * Cout * HWp * 4))

    out = pl.pallas_call(
        conv1x1_kernel,
        grid=(B, HWp // hwt),
        in_specs=[
            pl.BlockSpec((1, Cin, hwt), lambda b, j: (b, 0, j)),
            pl.BlockSpec((Cout, Cin), lambda b, j: (0, 0)),
            pl.BlockSpec((Cout, 1), lambda b, j: (0, 0)),
        ],
        out_specs=pl.BlockSpec((1, Cout, hwt), lambda b, j: (b, 0, j)),
        out_shape=jax.ShapeDtypeStruct((B, Cout, HWp), jnp.float32),
        compiler_params=pltpu.CompilerParams(
            dimension_semantics=("parallel", "parallel")),
        cost_estimate=cost,
    )(x, wb, bias_col)
    return out[:, :, :HW].reshape(B, Cout, H, W)


_WEIGHT_ORDER = ("hw1", "hb1", "hw2", "hb2", "hw3", "hb3",
                 "ow1fc", "ob1fc", "ow2", "ob2", "ow3", "ob3",
                 "lng", "lnb", "oproj",
                 "iw1", "ib1", "iw2", "ib2", "iw3", "ib3", "hoiw")


def pallas_heads(h, o, x, prep, dims, block_rows=512):
    """All HOICLIP decoder heads fused into one row-tiled pallas_call.

    block_rows: 256-1024 at real HOICLIP scale on v6e/v7x, <=512 on v5e
    (16 MiB scoped-VMEM default); the toy demo uses 16 so the grid has >1 step.
    """
    n, hidden = h.shape
    E = x.shape[1]
    dh_h = prep["hw2"].shape[0]
    dh_o = prep["ow2"].shape[0]
    nbox_p = prep["hw3"].shape[1]
    nobj_p = prep["oproj"].shape[1]
    nhoi_p = prep["hoiw"].shape[1]

    tm = _choose_tm(n, block_rows)
    hp = _pad_rows(_bf16(h), tm)
    op = _pad_rows(_bf16(o), tm)
    xp = _pad_rows(x, tm)                 # keep f32: exact normalized feature output
    npad = hp.shape[0]

    weights = [prep[k] for k in _WEIGHT_ORDER]

    flops_per_row = 2 * (
        hidden * dh_h + dh_h * dh_h + dh_h * nbox_p          # human bbox MLP
        + hidden * (dh_o + E) + dh_o * dh_o + dh_o * nbox_p  # obj bbox + class_fc
        + E * nobj_p                                          # obj projection
        + E * (E // 2) + (E // 2) * (E // 2) + (E // 2) * E   # inter2verb MLP
        + 2 * E * nhoi_p)                                     # stacked HOI projection
    cost = pl.CostEstimate(
        flops=int(npad * flops_per_row),
        transcendentals=int(12 * npad),
        bytes_accessed=_nbytes(hp, op, xp, *weights)
        + int(npad * 4 * (2 * nbox_p + nobj_p + nhoi_p + E)))

    sub, obox, ocls, hoi, ihn = pl.pallas_call(
        heads_kernel,
        grid=(npad // tm,),
        in_specs=[pl.BlockSpec((tm, hidden), lambda i: (i, 0)),
                  pl.BlockSpec((tm, hidden), lambda i: (i, 0)),
                  pl.BlockSpec((tm, E), lambda i: (i, 0))]
                 + [_const_spec(w) for w in weights],
        out_specs=(pl.BlockSpec((tm, nbox_p), lambda i: (i, 0)),
                   pl.BlockSpec((tm, nbox_p), lambda i: (i, 0)),
                   pl.BlockSpec((tm, nobj_p), lambda i: (i, 0)),
                   pl.BlockSpec((tm, nhoi_p), lambda i: (i, 0)),
                   pl.BlockSpec((tm, E), lambda i: (i, 0))),
        out_shape=(jax.ShapeDtypeStruct((npad, nbox_p), jnp.float32),
                   jax.ShapeDtypeStruct((npad, nbox_p), jnp.float32),
                   jax.ShapeDtypeStruct((npad, nobj_p), jnp.float32),
                   jax.ShapeDtypeStruct((npad, nhoi_p), jnp.float32),
                   jax.ShapeDtypeStruct((npad, E), jnp.float32)),
        scratch_shapes=[pltpu.VMEM((tm, dh_h), jnp.bfloat16),
                        pltpu.VMEM((tm, dh_o), jnp.bfloat16),
                        pltpu.VMEM((tm, E // 2), jnp.bfloat16)],
        compiler_params=pltpu.CompilerParams(
            dimension_semantics=("parallel",)),
        cost_estimate=cost,
    )(hp, op, xp, *weights)

    dbox, nobj, nhoi = dims["dbox"], dims["nobj"], dims["nhoi"]
    return (sub[:n, :dbox], obox[:n, :dbox], ocls[:n, :nobj],
            hoi[:n, :nhoi], ihn[:n])


# ----------------------------------------------------------------------------
# One-time parameter preparation (hoisted out of the forward pass)
# ----------------------------------------------------------------------------

def prepare_weights(params):
    """bf16 casts, lane padding, scale folding and weight concatenation.

    Run once (eagerly); the result is reused for every forward call so none of
    this sits on the forward critical path.
    """
    p = params
    prep = {}

    # 1x1 input_proj conv in native NCHW: (Cout, Cin) weight + (Cout, 1) bias.
    prep["conv_w"] = _bf16(p["input_proj_w"].T)
    prep["conv_b"] = p["input_proj_b"].reshape(-1, 1)

    # Human bbox MLP (hidden, hidden, 4, 3); final layer lane-padded to 128.
    hw1, hb1, hw2, hb2, hw3, hb3 = p["hum_bbox"]
    prep["hw1"], prep["hb1"] = _bf16(hw1), hb1
    prep["hw2"], prep["hb2"] = _bf16(hw2), hb2
    prep["hw3"], prep["hb3"] = _bf16(_pad_lanes(hw3)), _pad_lanes(hb3)

    # Object path: fuse [obj_bbox.w1 | obj_class_fc.w] (same LHS o_hs).
    ow1, ob1, ow2, ob2, ow3, ob3 = p["obj_bbox"]
    prep["ow1fc"] = _bf16(jnp.concatenate([ow1, p["obj_fc_w"]], axis=1))
    prep["ob1fc"] = jnp.concatenate([ob1, p["obj_fc_b"]], axis=1)
    prep["ow2"], prep["ob2"] = _bf16(ow2), ob2
    prep["ow3"], prep["ob3"] = _bf16(_pad_lanes(ow3)), _pad_lanes(ob3)
    prep["lng"], prep["lnb"] = p["obj_ln_g"], p["obj_ln_b"]
    prep["oproj"] = _bf16(_pad_lanes(
        jnp.exp(p["obj_logit_scale"]) * p["obj_vis_proj_w"]))

    # HOI path: inter2verb MLP + stacked projection
    #   [vis_proj * exp(ls) ; (verb_proj @ verb2hoi) * exp(ls) * verb_weight]
    iw1, ib1, iw2, ib2, iw3, ib3 = p["inter2verb"]
    prep["iw1"], prep["ib1"] = _bf16(iw1), ib1
    prep["iw2"], prep["ib2"] = _bf16(iw2), ib2
    prep["iw3"], prep["ib3"] = _bf16(iw3), ib3
    ls = jnp.exp(p["logit_scale"])
    vis_scaled = ls * p["vis_proj_w"]
    verbhoi_scaled = (ls * p["verb_weight"]) * (p["verb_proj_w"] @ p["verb2hoi"])
    prep["hoiw"] = _bf16(_pad_lanes(
        jnp.concatenate([vis_scaled, verbhoi_scaled], axis=0)))

    dims = {"dbox": int(hw3.shape[1]),
            "nobj": int(p["obj_vis_proj_w"].shape[1]),
            "nhoi": int(p["vis_proj_w"].shape[1])}
    return prep, dims


# ----------------------------------------------------------------------------
# Parameter construction (deterministic, synthetic)
# ----------------------------------------------------------------------------

def make_params(key, cb, hidden, embed, num_hoi, num_obj_p1, num_verb):
    ks = iter(jax.random.split(key, 32))

    def w(shape, scale=0.02):
        return scale * jax.random.normal(next(ks), shape, jnp.float32)

    def mlp3(din, dh, dout):
        return (w((din, dh)), jnp.zeros((1, dh), jnp.float32),
                w((dh, dh)), jnp.zeros((1, dh), jnp.float32),
                w((dh, dout)), jnp.zeros((1, dout), jnp.float32))

    p = {}
    # input_proj: Conv2d(cb, hidden, kernel_size=1) stored as (Cin, Cout)
    p["input_proj_w"] = w((cb, hidden))
    p["input_proj_b"] = jnp.zeros((1, hidden), jnp.float32)
    # bbox MLPs: MLP(hidden, hidden, 4, 3)
    p["hum_bbox"] = mlp3(hidden, hidden, 4)
    p["obj_bbox"] = mlp3(hidden, hidden, 4)
    # inter2verb: MLP(embed, embed//2, embed, 3)
    p["inter2verb"] = (w((embed, embed // 2)),
                       jnp.zeros((1, embed // 2), jnp.float32),
                       w((embed // 2, embed // 2)),
                       jnp.zeros((1, embed // 2), jnp.float32),
                       w((embed // 2, embed)),
                       jnp.zeros((1, embed), jnp.float32))
    # obj_class_fc: Linear(hidden, embed) + LayerNorm(embed)
    p["obj_fc_w"] = w((hidden, embed))
    p["obj_fc_b"] = jnp.zeros((1, embed), jnp.float32)
    p["obj_ln_g"] = jnp.ones((1, embed), jnp.float32)
    p["obj_ln_b"] = jnp.zeros((1, embed), jnp.float32)
    # obj_visual_projection: Linear(embed, num_obj+1, bias=False), rows L2-normed
    ovp = jax.random.normal(next(ks), (num_obj_p1, embed), jnp.float32)
    ovp = ovp / jnp.linalg.norm(ovp, axis=-1, keepdims=True)
    p["obj_vis_proj_w"] = ovp.T                       # (embed, num_obj+1)
    # visual_projection: Linear(embed, num_hoi, bias=False), rows L2-normed
    vp = jax.random.normal(next(ks), (num_hoi, embed), jnp.float32)
    vp = vp / jnp.linalg.norm(vp, axis=-1, keepdims=True)
    p["vis_proj_w"] = vp.T                            # (embed, num_hoi)
    # verb_projection: Linear(embed, num_verb, bias=False)
    p["verb_proj_w"] = w((embed, num_verb), scale=0.05)
    # verb2hoi_proj (num_verb, num_hoi): deterministic binary pattern
    v_idx = jnp.arange(num_hoi) % num_verb
    p["verb2hoi"] = jax.nn.one_hot(v_idx, num_verb, dtype=jnp.float32).T
    # logit scales: log(1/0.07)
    ls = jnp.log(1.0 / 0.07).astype(jnp.float32)
    p["logit_scale"] = ls
    p["obj_logit_scale"] = ls
    p["verb_weight"] = jnp.float32(0.1)
    return p


# ----------------------------------------------------------------------------
# Forward pass (HOICLIP head; with_clip_label=True, with_obj_clip_label=True,
# fix_clip_label=True, zero_shot_type='default', aux_loss=False, no MAE,
# no domain discriminators)
# ----------------------------------------------------------------------------

def hoiclip_forward(prep, src, trans_outs, *, dims, block_rows=512,
                    hw_block=1024):
    # TODO(synk): backbone (ResNet), CLIP text/visual encoders and the DETR-style
    # transformer are external submodules; their outputs arrive in `trans_outs`.
    (h_hs, o_hs, inter_hs, inter_memory, inter_hs_oral,
     clip_cls_feature, clip_hoi_score, clip_visual) = trans_outs

    L, B, Q, hidden = h_hs.shape
    E = inter_hs.shape[-1]
    N = L * B * Q

    # ---- input_proj: 1x1 conv, native NCHW (no transposes) ----
    mm = pallas_conv1x1(src, prep["conv_w"], prep["conv_b"], hw_block=hw_block)

    # ---- all decoder heads in one fused, row-tiled Pallas launch ----
    sub, obox, ocls, hoi, ihn = pallas_heads(
        h_hs.reshape(N, hidden), o_hs.reshape(N, hidden),
        inter_hs.reshape(N, E), prep, dims, block_rows=block_rows)

    outputs_sub_coord = sub.reshape(L, B, Q, -1)
    outputs_obj_coord = obox.reshape(L, B, Q, -1)
    outputs_obj_class = ocls.reshape(L, B, Q, -1)
    outputs_hoi_class = hoi.reshape(L, B, Q, -1)
    inter_hs_norm = ihn.reshape(L, B, Q, E)

    out = {
        "pred_hoi_logits": outputs_hoi_class[-1],
        "pred_obj_logits": outputs_obj_class[-1],
        "pred_sub_boxes": outputs_sub_coord[-1],
        "pred_obj_boxes": outputs_obj_coord[-1],
        "clip_visual": clip_visual,
        "clip_cls_feature": clip_cls_feature,
        "hoi_feature": inter_hs_norm[-1],
        "clip_logits": clip_hoi_score,
        "encoder": inter_memory,
        "decoder": inter_hs_oral,
        "cnn": mm,
        "inter_memory": inter_hs[-1],          # args.with_mimic path (pre-norm clone)
    }
    return out


# ----------------------------------------------------------------------------
# Pure-JAX reference (f32, unfused / unfolded) for a loose sanity check
# ----------------------------------------------------------------------------

def reference_forward(params, src, trans_outs):
    (h_hs, o_hs, inter_hs, *_rest) = trans_outs

    mm = (jnp.einsum("bchw,cd->bdhw", src, params["input_proj_w"])
          + params["input_proj_b"].reshape(1, -1, 1, 1))

    def mlp3(x, p, sig):
        w1, b1, w2, b2, w3, b3 = p
        h = jax.nn.relu(x @ w1 + b1)
        h = jax.nn.relu(h @ w2 + b2)
        y = h @ w3 + b3
        return jax.nn.sigmoid(y) if sig else y

    sub = mlp3(h_hs, params["hum_bbox"], True)
    objc = mlp3(o_hs, params["obj_bbox"], True)

    h = o_hs @ params["obj_fc_w"] + params["obj_fc_b"]
    mu = h.mean(-1, keepdims=True)
    var = ((h - mu) ** 2).mean(-1, keepdims=True)
    h = (h - mu) / jnp.sqrt(var + 1e-5) * params["obj_ln_g"] + params["obj_ln_b"]
    h = h / jnp.linalg.norm(h, axis=-1, keepdims=True)
    obj_logits = jnp.exp(params["obj_logit_scale"]) * (h @ params["obj_vis_proj_w"])

    verb = mlp3(inter_hs, params["inter2verb"], False)
    ihn = inter_hs / jnp.linalg.norm(inter_hs, axis=-1, keepdims=True)
    vhn = verb / jnp.linalg.norm(verb, axis=-1, keepdims=True)
    ls = jnp.exp(params["logit_scale"])
    hoi = (ls * (ihn @ params["vis_proj_w"])
           + (ls * (vhn @ params["verb_proj_w"]) @ params["verb2hoi"])
           * params["verb_weight"])
    return mm, sub, objc, obj_logits, hoi, ihn


# ----------------------------------------------------------------------------
# Main
# ----------------------------------------------------------------------------

if __name__ == "__main__":
    # Small synthetic shapes.  hidden/embed are kept at 128 so all weight
    # concatenation splits are lane-aligned (as they are at real HOICLIP scale).
    B, Cb, H, W = 2, 4, 16, 16
    hidden = 128         # transformer d_model
    embed = 128          # args.clip_embed_dim
    Q = 8                # num_queries
    L = 3                # dec_layers
    num_hoi = 24
    num_obj_p1 = 12
    num_verb = 16

    key = jax.random.PRNGKey(0)
    k_param, k_src, *k_t = jax.random.split(key, 12)

    params = make_params(k_param, Cb, hidden, embed, num_hoi, num_obj_p1, num_verb)
    # One-time weight prep (bf16 casts / padding / scale folding / concats):
    # hoisted off the per-forward critical path.
    prep, dims = prepare_weights(params)

    # Backbone feature map (NCHW), and synthetic transformer outputs.
    src = jax.random.normal(k_src, (B, Cb, H, W), jnp.float32)
    h_hs = jax.random.normal(k_t[0], (L, B, Q, hidden), jnp.float32)
    o_hs = jax.random.normal(k_t[1], (L, B, Q, hidden), jnp.float32)
    inter_hs = jax.random.normal(k_t[2], (L, B, Q, embed), jnp.float32)
    inter_memory = jax.random.normal(k_t[3], (B, 1, H * W, hidden), jnp.float32)
    inter_hs_oral = jax.random.normal(k_t[4], (L, B, Q, embed), jnp.float32)
    clip_cls_feature = jax.random.normal(k_t[5], (B, embed), jnp.float32)
    clip_hoi_score = jax.random.normal(k_t[6], (B, num_hoi), jnp.float32)
    clip_visual = jax.random.normal(k_t[7], (B, H * W, embed), jnp.float32)

    trans_outs = (h_hs, o_hs, inter_hs, inter_memory, inter_hs_oral,
                  clip_cls_feature, clip_hoi_score, clip_visual)

    # block_rows=16 / hw_block=128 so the toy problem exercises multi-step grids
    # (48 rows -> 3 row steps, conv grid 2x2).  At real HOICLIP scale use
    # block_rows=256..1024 on v6e/v7x and <=512 on v5e (16 MiB scoped VMEM).
    fwd = jax.jit(functools.partial(hoiclip_forward, dims=dims,
                                    block_rows=16, hw_block=128))
    out = fwd(prep, src, trans_outs)
    jax.block_until_ready(out)

    # shape checks
    assert out["pred_hoi_logits"].shape == (B, Q, num_hoi)
    assert out["pred_obj_logits"].shape == (B, Q, num_obj_p1)
    assert out["pred_sub_boxes"].shape == (B, Q, 4)
    assert out["pred_obj_boxes"].shape == (B, Q, 4)
    assert out["hoi_feature"].shape == (B, Q, embed)
    assert out["cnn"].shape == (B, hidden, H, W)

    # loose numerical check vs f32 reference (kernels use bf16 MXU operands)
    mm_r, sub_r, objc_r, objl_r, hoi_r, ihn_r = jax.jit(reference_forward)(
        params, src, trans_outs)
    jax.block_until_ready(mm_r)
    assert bool(jnp.allclose(out["cnn"], mm_r, rtol=0.1, atol=0.1))
    assert bool(jnp.allclose(out["pred_sub_boxes"], sub_r[-1], rtol=0.1, atol=0.1))
    assert bool(jnp.allclose(out["pred_obj_boxes"], objc_r[-1], rtol=0.1, atol=0.1))
    assert bool(jnp.allclose(out["pred_obj_logits"], objl_r[-1], rtol=0.1, atol=0.1))
    assert bool(jnp.allclose(out["pred_hoi_logits"], hoi_r[-1], rtol=0.1, atol=0.1))
    assert bool(jnp.allclose(out["hoi_feature"], ihn_r[-1], rtol=1e-3, atol=1e-3))

    print("KERNEL_OK")
</pallas_src>

<mosaic_0001>
module attributes {stable_mosaic.version = 11 : i64} {
  func.func @conv1x1_kernel(%arg0: i32, %arg1: i32, %arg2: memref<1x4x128xbf16, #tpu.memory_space<vmem>>, %arg3: memref<128x4xbf16, #tpu.memory_space<vmem>>, %arg4: memref<128x1xf32, #tpu.memory_space<vmem>>, %arg5: memref<1x128x128xf32, #tpu.memory_space<vmem>>) attributes {dimension_semantics = [#tpu.dimension_semantics<parallel>, #tpu.dimension_semantics<parallel>], iteration_bounds = array<i64: 2, 2>, scalar_prefetch = 0 : i64, scratch_operands = 0 : i64, tpu.core_type = #tpu.core_type<tc>, window_params = [{transform_indices = @transform_0, window_bounds = array<i64: 1, 4, 128>}, {pipeline_mode = #tpu.pipeline_mode<synchronous>, transform_indices = @transform_1, window_bounds = array<i64: 128, 4>}, {pipeline_mode = #tpu.pipeline_mode<synchronous>, transform_indices = @transform_2, window_bounds = array<i64: 128, 1>}, {transform_indices = @transform_3, window_bounds = array<i64: 1, 128, 128>}]} {
    %c0 = arith.constant 0 : index
    %c0_0 = arith.constant 0 : index
    %c0_1 = arith.constant 0 : index
    %0 = vector.load %arg2[%c0, %c0_0, %c0_1] : memref<1x4x128xbf16, #tpu.memory_space<vmem>>, vector<1x4x128xbf16>
    %1 = vector.shape_cast %0 : vector<1x4x128xbf16> to vector<4x128xbf16>
    %c0_2 = arith.constant 0 : index
    %c0_3 = arith.constant 0 : index
    %2 = vector.load %arg3[%c0_2, %c0_3] : memref<128x4xbf16, #tpu.memory_space<vmem>>, vector<128x4xbf16>
    %cst = arith.constant dense<0.000000e+00> : vector<128x128xf32>
    %3 = tpu.matmul %2, %1, %cst {dimension_numbers = #tpu.dot_dimension_numbers<[1], [0], [0], [1], [0, 0, 1, 1], [], []>} : vector<128x4xbf16>, vector<4x128xbf16>, vector<128x128xf32> -> vector<128x128xf32>
    %c0_4 = arith.constant 0 : index
    %c0_5 = arith.constant 0 : index
    %4 = vector.load %arg4[%c0_4, %c0_5] : memref<128x1xf32, #tpu.memory_space<vmem>>, vector<128x1xf32>
    %5 = vector.broadcast %4 : vector<128x1xf32> to vector<128x128xf32>
    %6 = arith.addf %3, %5 : vector<128x128xf32>
    %c0_6 = arith.constant 0 : index
    %c0_7 = arith.constant 0 : index
    %c0_8 = arith.constant 0 : index
    %7 = vector.load %arg5[%c0_6, %c0_7, %c0_8] : memref<1x128x128xf32, #tpu.memory_space<vmem>>, vector<1x128x128xf32>
    %8 = vector.shape_cast %7 : vector<1x128x128xf32> to vector<128x128xf32>
    %9 = vector.shape_cast %6 : vector<128x128xf32> to vector<1x128x128xf32>
    tpu.vector_store %arg5[%c0_6, %c0_7, %c0_8], %9 {strides = array<i32>} : memref<1x128x128xf32, #tpu.memory_space<vmem>>, vector<1x128x128xf32>,
    return
  }
  func.func @transform_0(%arg0: i32, %arg1: i32) -> (i32, i32, i32) {
    %c0_i32 = arith.constant 0 : i32
    %c0_i32_0 = arith.constant 0 : i32
    return %arg0, %c0_i32, %arg1 : i32, i32, i32
  }
  func.func @transform_1(%arg0: i32, %arg1: i32) -> (i32, i32) {
    %c0_i32 = arith.constant 0 : i32
    %c0_i32_0 = arith.constant 0 : i32
    %c0_i32_1 = arith.constant 0 : i32
    return %c0_i32, %c0_i32_0 : i32, i32
  }
  func.func @transform_2(%arg0: i32, %arg1: i32) -> (i32, i32) {
    %c0_i32 = arith.constant 0 : i32
    %c0_i32_0 = arith.constant 0 : i32
    %c0_i32_1 = arith.constant 0 : i32
    return %c0_i32, %c0_i32_0 : i32, i32
  }
  func.func @transform_3(%arg0: i32, %arg1: i32) -> (i32, i32, i32) {
    %c0_i32 = arith.constant 0 : i32
    %c0_i32_0 = arith.constant 0 : i32
    return %arg0, %c0_i32, %arg1 : i32, i32, i32
  }
}

module attributes {stable_mosaic.version = 11 : i64} {
  func.func @heads_kernel(%arg0: i32, %arg1: memref<16x128xbf16, #tpu.memory_space<vmem>>, %arg2: memref<16x128xbf16, #tpu.memory_space<vmem>>, %arg3: memref<16x128xf32, #tpu.memory_space<vmem>>, %arg4: memref<128x128xbf16, #tpu.memory_space<vmem>>, %arg5: memref<1x128xf32, #tpu.memory_space<vmem>>, %arg6: memref<128x128xbf16, #tpu.memory_space<vmem>>, %arg7: memref<1x128xf32, #tpu.memory_space<vmem>>, %arg8: memref<128x128xbf16, #tpu.memory_space<vmem>>, %arg9: memref<1x128xf32, #tpu.memory_space<vmem>>, %arg10: memref<128x256xbf16, #tpu.memory_space<vmem>>, %arg11: memref<1x256xf32, #tpu.memory_space<vmem>>, %arg12: memref<128x128xbf16, #tpu.memory_space<vmem>>, %arg13: memref<1x128xf32, #tpu.memory_space<vmem>>, %arg14: memref<128x128xbf16, #tpu.memory_space<vmem>>, %arg15: memref<1x128xf32, #tpu.memory_space<vmem>>, %arg16: memref<1x128xf32, #tpu.memory_space<vmem>>, %arg17: memref<1x128xf32, #tpu.memory_space<vmem>>, %arg18: memref<128x128xbf16, #tpu.memory_space<vmem>>, %arg19: memref<128x64xbf16, #tpu.memory_space<vmem>>, %arg20: memref<1x64xf32, #tpu.memory_space<vmem>>, %arg21: memref<64x64xbf16, #tpu.memory_space<vmem>>, %arg22: memref<1x64xf32, #tpu.memory_space<vmem>>, %arg23: memref<64x128xbf16, #tpu.memory_space<vmem>>, %arg24: memref<1x128xf32, #tpu.memory_space<vmem>>, %arg25: memref<256x128xbf16, #tpu.memory_space<vmem>>, %arg26: memref<16x128xf32, #tpu.memory_space<vmem>>, %arg27: memref<16x128xf32, #tpu.memory_space<vmem>>, %arg28: memref<16x128xf32, #tpu.memory_space<vmem>>, %arg29: memref<16x128xf32, #tpu.memory_space<vmem>>, %arg30: memref<16x128xf32, #tpu.memory_space<vmem>>, %arg31: memref<16x128xbf16, #tpu.memory_space<vmem>>, %arg32: memref<16x128xbf16, #tpu.memory_space<vmem>>, %arg33: memref<16x64xbf16, #tpu.memory_space<vmem>>) attributes {dimension_semantics = [#tpu.dimension_semantics<parallel>], iteration_bounds = array<i64: 3>, scalar_prefetch = 0 : i64, scratch_operands = 3 : i64, tpu.core_type = #tpu.core_type<tc>, window_params = [{transform_indices = @transform_0, window_bounds = array<i64: 16, 128>}, {transform_indices = @transform_1, window_bounds = array<i64: 16, 128>}, {transform_indices = @transform_2, window_bounds = array<i64: 16, 128>}, {pipeline_mode = #tpu.pipeline_mode<synchronous>, transform_indices = @transform_3, window_bounds = array<i64: 128, 128>}, {pipeline_mode = #tpu.pipeline_mode<synchronous>, transform_indices = @transform_4, window_bounds = array<i64: 1, 128>}, {pipeline_mode = #tpu.pipeline_mode<synchronous>, transform_indices = @transform_5, window_bounds = array<i64: 128, 128>}, {pipeline_mode = #tpu.pipeline_mode<synchronous>, transform_indices = @transform_6, window_bounds = array<i64: 1, 128>}, {pipeline_mode = #tpu.pipeline_mode<synchronous>, transform_indices = @transform_7, window_bounds = array<i64: 128, 128>}, {pipeline_mode = #tpu.pipeline_mode<synchronous>, transform_indices = @transform_8, window_bounds = array<i64: 1, 128>}, {pipeline_mode = #tpu.pipeline_mode<synchronous>, transform_indices = @transform_9, window_bounds = array<i64: 128, 256>}, {pipeline_mode = #tpu.pipeline_mode<synchronous>, transform_indices = @transform_10, window_bounds = array<i64: 1, 256>}, {pipeline_mode = #tpu.pipeline_mode<synchronous>, transform_indices = @transform_11, window_bounds = array<i64: 128, 128>}, {pipeline_mode = #tpu.pipeline_mode<synchronous>, transform_indices = @transform_12, window_bounds = array<i64: 1, 128>}, {pipeline_mode = #tpu.pipeline_mode<synchronous>, transform_indices = @transform_13, window_bounds = array<i64: 128, 128>}, {pipeline_mode = #tpu.pipeline_mode<synchronous>, transform_indices = @transform_14, window_bounds = array<i64: 1, 128>}, {pipeline_mode = #tpu.pipeline_mode<synchronous>, transform_indices = @transform_15, window_bounds = array<i64: 1, 128>}, {pipeline_mode = #tpu.pipeline_mode<synchronous>, transform_indices = @transform_16, window_bounds = array<i64: 1, 128>}, {pipeline_mode = #tpu.pipeline_mode<synchronous>, transform_indices = @transform_17, window_bounds = array<i64: 128, 128>}, {pipeline_mode = #tpu.pipeline_mode<synchronous>, transform_indices = @transform_18, window_bounds = array<i64: 128, 64>}, {pipeline_mode = #tpu.pipeline_mode<synchronous>, transform_indices = @transform_19, window_bounds = array<i64: 1, 64>}, {pipeline_mode = #tpu.pipeline_mode<synchronous>, transform_indices = @transform_20, window_bounds = array<i64: 64, 64>}, {pipeline_mode = #tpu.pipeline_mode<synchronous>, transform_indices = @transform_21, window_bounds = array<i64: 1, 64>}, {pipeline_mode = #tpu.pipeline_mode<synchronous>, transform_indices = @transform_22, window_bounds = array<i64: 64, 128>}, {pipeline_mode = #tpu.pipeline_mode<synchronous>, transform_indices = @transform_23, window_bounds = array<i64: 1, 128>}, {pipeline_mode = #tpu.pipeline_mode<synchronous>, transform_indices = @transform_24, window_bounds = array<i64: 256, 128>}, {transform_indices = @transform_25, window_bounds = array<i64: 16, 128>}, {transform_indices = @transform_26, window_bounds = array<i64: 16, 128>}, {transform_indices = @transform_27, window_bounds = array<i64: 16, 128>}, {transform_indices = @transform_28, window_bounds = array<i64: 16, 128>}, {transform_indices = @transform_29, window_bounds = array<i64: 16, 128>}]} {
    %c0 = arith.constant 0 : index
    %c0_0 = arith.constant 0 : index
    %0 = vector.load %arg1[%c0, %c0_0] : memref<16x128xbf16, #tpu.memory_space<vmem>>, vector<16x128xbf16>
    %c0_1 = arith.constant 0 : index
    %c0_2 = arith.constant 0 : index
    %1 = vector.load %arg4[%c0_1, %c0_2] : memref<128x128xbf16, #tpu.memory_space<vmem>>, vector<128x128xbf16>
    %cst = arith.constant dense<0.000000e+00> : vector<16x128xf32>
    %2 = tpu.matmul %0, %1, %cst {dimension_numbers = #tpu.dot_dimension_numbers<[1], [0], [0], [1], [0, 0, 1, 1], [], []>} : vector<16x128xbf16>, vector<128x128xbf16>, vector<16x128xf32> -> vector<16x128xf32>
    %c0_3 = arith.constant 0 : index
    %c0_4 = arith.constant 0 : index
    %3 = vector.load %arg5[%c0_3, %c0_4] : memref<1x128xf32, #tpu.memory_space<vmem>>, vector<1x128xf32>
    %4 = vector.broadcast %3 : vector<1x128xf32> to vector<16x128xf32>
    %5 = arith.addf %2, %4 : vector<16x128xf32>
    %cst_5 = arith.constant 0.000000e+00 : f32
    %6 = vector.broadcast %cst_5 : f32 to vector<16x128xf32>
    %7 = arith.maximumf %5, %6 : vector<16x128xf32>
    %8 = arith.truncf %7 : vector<16x128xf32> to vector<16x128xbf16>
    %c0_6 = arith.constant 0 : index
    %c0_7 = arith.constant 0 : index
    %9 = vector.load %arg31[%c0_6, %c0_7] : memref<16x128xbf16, #tpu.memory_space<vmem>>, vector<16x128xbf16>
    tpu.vector_store %arg31[%c0_6, %c0_7], %8 {strides = array<i32>} : memref<16x128xbf16, #tpu.memory_space<vmem>>, vector<16x128xbf16>,
    %c0_8 = arith.constant 0 : index
    %c0_9 = arith.constant 0 : index
    %10 = vector.load %arg31[%c0_8, %c0_9] : memref<16x128xbf16, #tpu.memory_space<vmem>>, vector<16x128xbf16>
    %c0_10 = arith.constant 0 : index
    %c0_11 = arith.constant 0 : index
    %11 = vector.load %arg6[%c0_10, %c0_11] : memref<128x128xbf16, #tpu.memory_space<vmem>>, vector<128x128xbf16>
    %cst_12 = arith.constant dense<0.000000e+00> : vector<16x128xf32>
    %12 = tpu.matmul %10, %11, %cst_12 {dimension_numbers = #tpu.dot_dimension_numbers<[1], [0], [0], [1], [0, 0, 1, 1], [], []>} : vector<16x128xbf16>, vector<128x128xbf16>, vector<16x128xf32> -> vector<16x128xf32>
    %c0_13 = arith.constant 0 : index
    %c0_14 = arith.constant 0 : index
    %13 = vector.load %arg7[%c0_13, %c0_14] : memref<1x128xf32, #tpu.memory_space<vmem>>, vector<1x128xf32>
    %14 = vector.broadcast %13 : vector<1x128xf32> to vector<16x128xf32>
    %15 = arith.addf %12, %14 : vector<16x128xf32>
    %cst_15 = arith.constant 0.000000e+00 : f32
    %16 = vector.broadcast %cst_15 : f32 to vector<16x128xf32>
    %17 = arith.maximumf %15, %16 : vector<16x128xf32>
    %18 = arith.truncf %17 : vector<16x128xf32> to vector<16x128xbf16>
    %c0_16 = arith.constant 0 : index
    %c0_17 = arith.constant 0 : index
    %19 = vector.load %arg31[%c0_16, %c0_17] : memref<16x128xbf16, #tpu.memory_space<vmem>>, vector<16x128xbf16>
    tpu.vector_store %arg31[%c0_16, %c0_17], %18 {strides = array<i32>} : memref<16x128xbf16, #tpu.memory_space<vmem>>, vector<16x128xbf16>,
    %c0_18 = arith.constant 0 : index
    %c0_19 = arith.constant 0 : index
    %20 = vector.load %arg31[%c0_18, %c0_19] : memref<16x128xbf16, #tpu.memory_space<vmem>>, vector<16x128xbf16>
    %c0_20 = arith.constant 0 : index
    %c0_21 = arith.constant 0 : index
    %21 = vector.load %arg8[%c0_20, %c0_21] : memref<128x128xbf16, #tpu.memory_space<vmem>>, vector<128x128xbf16>
    %cst_22 = arith.constant dense<0.000000e+00> : vector<16x128xf32>
    %22 = tpu.matmul %20, %21, %cst_22 {dimension_numbers = #tpu.dot_dimension_numbers<[1], [0], [0], [1], [0, 0, 1, 1], [], []>} : vector<16x128xbf16>, vector<128x128xbf16>, vector<16x128xf32> -> vector<16x128xf32>
    %c0_23 = arith.constant 0 : index
    %c0_24 = arith.constant 0 : index
    %23 = vector.load %arg9[%c0_23, %c0_24] : memref<1x128xf32, #tpu.memory_space<vmem>>, vector<1x128xf32>
    %24 = vector.broadcast %23 : vector<1x128xf32> to vector<16x128xf32>
    %25 = arith.addf %22, %24 : vector<16x128xf32>
    %26 = arith.negf %25 : vector<16x128xf32>
    %27 = math.exp %26 : vector<16x128xf32>
    %cst_25 = arith.constant 1.000000e+00 : f32
    %28 = vector.broadcast %cst_25 : f32 to vector<16x128xf32>
    %29 = arith.addf %28, %27 : vector<16x128xf32>
    %30 = arith.divf %28, %29 : vector<16x128xf32>
    %c0_26 = arith.constant 0 : index
    %c0_27 = arith.constant 0 : index
    %31 = vector.load %arg26[%c0_26, %c0_27] : memref<16x128xf32, #tpu.memory_space<vmem>>, vector<16x128xf32>
    tpu.vector_store %arg26[%c0_26, %c0_27], %30 {strides = array<i32>} : memref<16x128xf32, #tpu.memory_space<vmem>>, vector<16x128xf32>,
    %c0_28 = arith.constant 0 : index
    %c0_29 = arith.constant 0 : index
    %32 = vector.load %arg2[%c0_28, %c0_29] : memref<16x128xbf16, #tpu.memory_space<vmem>>, vector<16x128xbf16>
    %c0_30 = arith.constant 0 : index
    %c0_31 = arith.constant 0 : index
    %33 = vector.load %arg10[%c0_30, %c0_31] : memref<128x256xbf16, #tpu.memory_space<vmem>>, vector<128x256xbf16>
    %cst_32 = arith.constant dense<0.000000e+00> : vector<16x256xf32>
    %34 = tpu.matmul %32, %33, %cst_32 {dimension_numbers = #tpu.dot_dimension_numbers<[1], [0], [0], [1], [0, 0, 1, 1], [], []>} : vector<16x128xbf16>, vector<128x256xbf16>, vector<16x256xf32> -> vector<16x256xf32>
    %c0_33 = arith.constant 0 : index
    %c0_34 = arith.constant 0 : index
    %35 = vector.load %arg11[%c0_33, %c0_34] : memref<1x256xf32, #tpu.memory_space<vmem>>, vector<1x256xf32>
    %36 = vector.broadcast %35 : vector<1x256xf32> to vector<16x256xf32>
    %37 = arith.addf %34, %36 : vector<16x256xf32>
    %38 = vector.extract_strided_slice %37 {offsets = [0, 0], sizes = [16, 128], strides = [1, 1]} : vector<16x256xf32> to vector<16x128xf32>
    %cst_35 = arith.constant 0.000000e+00 : f32
    %39 = vector.broadcast %cst_35 : f32 to vector<16x128xf32>
    %40 = arith.maximumf %38, %39 : vector<16x128xf32>
    %41 = arith.truncf %40 : vector<16x128xf32> to vector<16x128xbf16>
    %c0_36 = arith.constant 0 : index
    %c0_37 = arith.constant 0 : index
    %42 = vector.load %arg32[%c0_36, %c0_37] : memref<16x128xbf16, #tpu.memory_space<vmem>>, vector<16x128xbf16>
    tpu.vector_store %arg32[%c0_36, %c0_37], %41 {strides = array<i32>} : memref<16x128xbf16, #tpu.memory_space<vmem>>, vector<16x128xbf16>,
    %c0_38 = arith.constant 0 : index
    %c0_39 = arith.constant 0 : index
    %43 = vector.load %arg32[%c0_38, %c0_39] : memref<16x128xbf16, #tpu.memory_space<vmem>>, vector<16x128xbf16>
    %c0_40 = arith.constant 0 : index
    %c0_41 = arith.constant 0 : index
    %44 = vector.load %arg12[%c0_40, %c0_41] : memref<128x128xbf16, #tpu.memory_space<vmem>>, vector<128x128xbf16>
    %cst_42 = arith.constant dense<0.000000e+00> : vector<16x128xf32>
    %45 = tpu.matmul %43, %44, %cst_42 {dimension_numbers = #tpu.dot_dimension_numbers<[1], [0], [0], [1], [0, 0, 1, 1], [], []>} : vector<16x128xbf16>, vector<128x128xbf16>, vector<16x128xf32> -> vector<16x128xf32>
    %c0_43 = arith.constant 0 : index
    %c0_44 = arith.constant 0 : index
    %46 = vector.load %arg13[%c0_43, %c0_44] : memref<1x128xf32, #tpu.memory_space<vmem>>, vector<1x128xf32>
    %47 = vector.broadcast %46 : vector<1x128xf32> to vector<16x128xf32>
    %48 = arith.addf %45, %47 : vector<16x128xf32>
    %cst_45 = arith.constant 0.000000e+00 : f32
    %49 = vector.broadcast %cst_45 : f32 to vector<16x128xf32>
    %50 = arith.maximumf %48, %49 : vector<16x128xf32>
    %51 = arith.truncf %50 : vector<16x128xf32> to vector<16x128xbf16>
    %c0_46 = arith.constant 0 : index
    %c0_47 = arith.constant 0 : index
    %52 = vector.load %arg32[%c0_46, %c0_47] : memref<16x128xbf16, #tpu.memory_space<vmem>>, vector<16x128xbf16>
    tpu.vector_store %arg32[%c0_46, %c0_47], %51 {strides = array<i32>} : memref<16x128xbf16, #tpu.memory_space<vmem>>, vector<16x128xbf16>,
    %c0_48 = arith.constant 0 : index
    %c0_49 = arith.constant 0 : index
    %53 = vector.load %arg32[%c0_48, %c0_49] : memref<16x128xbf16, #tpu.memory_space<vmem>>, vector<16x128xbf16>
    %c0_50 = arith.constant 0 : index
    %c0_51 = arith.constant 0 : index
    %54 = vector.load %arg14[%c0_50, %c0_51] : memref<128x128xbf16, #tpu.memory_space<vmem>>, vector<128x128xbf16>
    %cst_52 = arith.constant dense<0.000000e+00> : vector<16x128xf32>
    %55 = tpu.matmul %53, %54, %cst_52 {dimension_numbers = #tpu.dot_dimension_numbers<[1], [0], [0], [1], [0, 0, 1, 1], [], []>} : vector<16x128xbf16>, vector<128x128xbf16>, vector<16x128xf32> -> vector<16x128xf32>
    %c0_53 = arith.constant 0 : index
    %c0_54 = arith.constant 0 : index
    %56 = vector.load %arg15[%c0_53, %c0_54] : memref<1x128xf32, #tpu.memory_space<vmem>>, vector<1x128xf32>
    %57 = vector.broadcast %56 : vector<1x128xf32> to vector<16x128xf32>
    %58 = arith.addf %55, %57 : vector<16x128xf32>
    %59 = arith.negf %58 : vector<16x128xf32>
    %60 = math.exp %59 : vector<16x128xf32>
    %cst_55 = arith.constant 1.000000e+00 : f32
    %61 = vector.broadcast %cst_55 : f32 to vector<16x128xf32>
    %62 = arith.addf %61, %60 : vector<16x128xf32>
    %63 = arith.divf %61, %62 : vector<16x128xf32>
    %c0_56 = arith.constant 0 : index
    %c0_57 = arith.constant 0 : index
    %64 = vector.load %arg27[%c0_56, %c0_57] : memref<16x128xf32, #tpu.memory_space<vmem>>, vector<16x128xf32>
    tpu.vector_store %arg27[%c0_56, %c0_57], %63 {strides = array<i32>} : memref<16x128xf32, #tpu.memory_space<vmem>>, vector<16x128xf32>,
    %65 = vector.extract_strided_slice %37 {offsets = [0, 128], sizes = [16, 128], strides = [1, 1]} : vector<16x256xf32> to vector<16x128xf32>
    %cst_58 = arith.constant dense<0.000000e+00> : vector<16xf32>
    %66 = vector.multi_reduction <add>, %65, %cst_58 [1] : vector<16x128xf32> to vector<16xf32>
    %67 = vector.shape_cast %66 : vector<16xf32> to vector<16x1xf32>
    %cst_59 = arith.constant 1.280000e+02 : f32
    %68 = vector.broadcast %cst_59 : f32 to vector<16x1xf32>
    %69 = arith.divf %67, %68 : vector<16x1xf32>
    %70 = vector.broadcast %69 : vector<16x1xf32> to vector<16x128xf32>
    %71 = arith.subf %65, %70 : vector<16x128xf32>
    %72 = arith.mulf %71, %71 : vector<16x128xf32>
    %cst_60 = arith.constant dense<0.000000e+00> : vector<16xf32>
    %73 = vector.multi_reduction <add>, %72, %cst_60 [1] : vector<16x128xf32> to vector<16xf32>
    %74 = vector.shape_cast %73 : vector<16xf32> to vector<16x1xf32>
    %cst_61 = arith.constant 1.280000e+02 : f32
    %75 = vector.broadcast %cst_61 : f32 to vector<16x1xf32>
    %76 = arith.divf %74, %75 : vector<16x1xf32>
    %77 = vector.broadcast %69 : vector<16x1xf32> to vector<16x128xf32>
    %78 = arith.subf %65, %77 : vector<16x128xf32>
    %cst_62 = arith.constant 9.99999974E-6 : f32
    %79 = vector.broadcast %cst_62 : f32 to vector<16x1xf32>
    %80 = arith.addf %76, %79 : vector<16x1xf32>
    %81 = math.rsqrt %80 : vector<16x1xf32>
    %82 = vector.broadcast %81 : vector<16x1xf32> to vector<16x128xf32>
    %83 = arith.mulf %78, %82 : vector<16x128xf32>
    %c0_63 = arith.constant 0 : index
    %c0_64 = arith.constant 0 : index
    %84 = vector.load %arg16[%c0_63, %c0_64] : memref<1x128xf32, #tpu.memory_space<vmem>>, vector<1x128xf32>
    %85 = vector.broadcast %84 : vector<1x128xf32> to vector<16x128xf32>
    %86 = arith.mulf %83, %85 : vector<16x128xf32>
    %c0_65 = arith.constant 0 : index
    %c0_66 = arith.constant 0 : index
    %87 = vector.load %arg17[%c0_65, %c0_66] : memref<1x128xf32, #tpu.memory_space<vmem>>, vector<1x128xf32>
    %88 = vector.broadcast %87 : vector<1x128xf32> to vector<16x128xf32>
    %89 = arith.addf %86, %88 : vector<16x128xf32>
    %90 = arith.mulf %89, %89 : vector<16x128xf32>
    %cst_67 = arith.constant dense<0.000000e+00> : vector<16xf32>
    %91 = vector.multi_reduction <add>, %90, %cst_67 [1] : vector<16x128xf32> to vector<16xf32>
    %92 = vector.shape_cast %91 : vector<16xf32> to vector<16x1xf32>
    %cst_68 = arith.constant 9.99999996E-13 : f32
    %93 = vector.broadcast %cst_68 : f32 to vector<16x1xf32>
    %94 = arith.addf %92, %93 : vector<16x1xf32>
    %95 = math.rsqrt %94 : vector<16x1xf32>
    %96 = vector.broadcast %95 : vector<16x1xf32> to vector<16x128xf32>
    %97 = arith.mulf %89, %96 : vector<16x128xf32>
    %98 = arith.truncf %97 : vector<16x128xf32> to vector<16x128xbf16>
    %c0_69 = arith.constant 0 : index
    %c0_70 = arith.constant 0 : index
    %99 = vector.load %arg18[%c0_69, %c0_70] : memref<128x128xbf16, #tpu.memory_space<vmem>>, vector<128x128xbf16>
    %cst_71 = arith.constant dense<0.000000e+00> : vector<16x128xf32>
    %100 = tpu.matmul %98, %99, %cst_71 {dimension_numbers = #tpu.dot_dimension_numbers<[1], [0], [0], [1], [0, 0, 1, 1], [], []>} : vector<16x128xbf16>, vector<128x128xbf16>, vector<16x128xf32> -> vector<16x128xf32>
    %c0_72 = arith.constant 0 : index
    %c0_73 = arith.constant 0 : index
    %101 = vector.load %arg28[%c0_72, %c0_73] : memref<16x128xf32, #tpu.memory_space<vmem>>, vector<16x128xf32>
    tpu.vector_store %arg28[%c0_72, %c0_73], %100 {strides = array<i32>} : memref<16x128xf32, #tpu.memory_space<vmem>>, vector<16x128xf32>,
    %c0_74 = arith.constant 0 : index
    %c0_75 = arith.constant 0 : index
    %102 = vector.load %arg3[%c0_74, %c0_75] : memref<16x128xf32, #tpu.memory_space<vmem>>, vector<16x128xf32>
    %103 = arith.truncf %102 : vector<16x128xf32> to vector<16x128xbf16>
    %c0_76 = arith.constant 0 : index
    %c0_77 = arith.constant 0 : index
    %104 = vector.load %arg19[%c0_76, %c0_77] : memref<128x64xbf16, #tpu.memory_space<vmem>>, vector<128x64xbf16>
    %cst_78 = arith.constant dense<0.000000e+00> : vector<16x64xf32>
    %105 = tpu.matmul %103, %104, %cst_78 {dimension_numbers = #tpu.dot_dimension_numbers<[1], [0], [0], [1], [0, 0, 1, 1], [], []>} : vector<16x128xbf16>, vector<128x64xbf16>, vector<16x64xf32> -> vector<16x64xf32>
    %c0_79 = arith.constant 0 : index
    %c0_80 = arith.constant 0 : index
    %106 = vector.load %arg20[%c0_79, %c0_80] : memref<1x64xf32, #tpu.memory_space<vmem>>, vector<1x64xf32>
    %107 = vector.broadcast %106 : vector<1x64xf32> to vector<16x64xf32>
    %108 = arith.addf %105, %107 : vector<16x64xf32>
    %cst_81 = arith.constant 0.000000e+00 : f32
    %109 = vector.broadcast %cst_81 : f32 to vector<16x64xf32>
    %110 = arith.maximumf %108, %109 : vector<16x64xf32>
    %111 = arith.truncf %110 : vector<16x64xf32> to vector<16x64xbf16>
    %c0_82 = arith.constant 0 : index
    %c0_83 = arith.constant 0 : index
    %112 = vector.load %arg33[%c0_82, %c0_83] : memref<16x64xbf16, #tpu.memory_space<vmem>>, vector<16x64xbf16>
    tpu.vector_store %arg33[%c0_82, %c0_83], %111 {strides = array<i32>} : memref<16x64xbf16, #tpu.memory_space<vmem>>, vector<16x64xbf16>,
    %c0_84 = arith.constant 0 : index
    %c0_85 = arith.constant 0 : index
    %113 = vector.load %arg33[%c0_84, %c0_85] : memref<16x64xbf16, #tpu.memory_space<vmem>>, vector<16x64xbf16>
    %c0_86 = arith.constant 0 : index
    %c0_87 = arith.constant 0 : index
    %114 = vector.load %arg21[%c0_86, %c0_87] : memref<64x64xbf16, #tpu.memory_space<vmem>>, vector<64x64xbf16>
    %cst_88 = arith.constant dense<0.000000e+00> : vector<16x64xf32>
    %115 = tpu.matmul %113, %114, %cst_88 {dimension_numbers = #tpu.dot_dimension_numbers<[1], [0], [0], [1], [0, 0, 1, 1], [], []>} : vector<16x64xbf16>, vector<64x64xbf16>, vector<16x64xf32> -> vector<16x64xf32>
    %c0_89 = arith.constant 0 : index
    %c0_90 = arith.constant 0 : index
    %116 = vector.load %arg22[%c0_89, %c0_90] : memref<1x64xf32, #tpu.memory_space<vmem>>, vector<1x64xf32>
    %117 = vector.broadcast %116 : vector<1x64xf32> to vector<16x64xf32>
    %118 = arith.addf %115, %117 : vector<16x64xf32>
    %cst_91 = arith.constant 0.000000e+00 : f32
    %119 = vector.broadcast %cst_91 : f32 to vector<16x64xf32>
    %120 = arith.maximumf %118, %119 : vector<16x64xf32>
    %121 = arith.truncf %120 : vector<16x64xf32> to vector<16x64xbf16>
    %c0_92 = arith.constant 0 : index
    %c0_93 = arith.constant 0 : index
    %122 = vector.load %arg33[%c0_92, %c0_93] : memref<16x64xbf16, #tpu.memory_space<vmem>>, vector<16x64xbf16>
    tpu.vector_store %arg33[%c0_92, %c0_93], %121 {strides = array<i32>} : memref<16x64xbf16, #tpu.memory_space<vmem>>, vector<16x64xbf16>,
    %c0_94 = arith.constant 0 : index
    %c0_95 = arith.constant 0 : index
    %123 = vector.load %arg33[%c0_94, %c0_95] : memref<16x64xbf16, #tpu.memory_space<vmem>>, vector<16x64xbf16>
    %c0_96 = arith.constant 0 : index
    %c0_97 = arith.constant 0 : index
    %124 = vector.load %arg23[%c0_96, %c0_97] : memref<64x128xbf16, #tpu.memory_space<vmem>>, vector<64x128xbf16>
    %cst_98 = arith.constant dense<0.000000e+00> : vector<16x128xf32>
    %125 = tpu.matmul %123, %124, %cst_98 {dimension_numbers = #tpu.dot_dimension_numbers<[1], [0], [0], [1], [0, 0, 1, 1], [], []>} : vector<16x64xbf16>, vector<64x128xbf16>, vector<16x128xf32> -> vector<16x128xf32>
    %c0_99 = arith.constant 0 : index
    %c0_100 = arith.constant 0 : index
    %126 = vector.load %arg24[%c0_99, %c0_100] : memref<1x128xf32, #tpu.memory_space<vmem>>, vector<1x128xf32>
    %127 = vector.broadcast %126 : vector<1x128xf32> to vector<16x128xf32>
    %128 = arith.addf %125, %127 : vector<16x128xf32>
    %129 = arith.mulf %102, %102 : vector<16x128xf32>
    %cst_101 = arith.constant dense<0.000000e+00> : vector<16xf32>
    %130 = vector.multi_reduction <add>, %129, %cst_101 [1] : vector<16x128xf32> to vector<16xf32>
    %131 = vector.shape_cast %130 : vector<16xf32> to vector<16x1xf32>
    %cst_102 = arith.constant 9.99999996E-13 : f32
    %132 = vector.broadcast %cst_102 : f32 to vector<16x1xf32>
    %133 = arith.addf %131, %132 : vector<16x1xf32>
    %134 = math.rsqrt %133 : vector<16x1xf32>
    %135 = vector.broadcast %134 : vector<16x1xf32> to vector<16x128xf32>
    %136 = arith.mulf %102, %135 : vector<16x128xf32>
    %137 = arith.mulf %128, %128 : vector<16x128xf32>
    %cst_103 = arith.constant dense<0.000000e+00> : vector<16xf32>
    %138 = vector.multi_reduction <add>, %137, %cst_103 [1] : vector<16x128xf32> to vector<16xf32>
    %139 = vector.shape_cast %138 : vector<16xf32> to vector<16x1xf32>
    %cst_104 = arith.constant 9.99999996E-13 : f32
    %140 = vector.broadcast %cst_104 : f32 to vector<16x1xf32>
    %141 = arith.addf %139, %140 : vector<16x1xf32>
    %142 = math.rsqrt %141 : vector<16x1xf32>
    %143 = vector.broadcast %142 : vector<16x1xf32> to vector<16x128xf32>
    %144 = arith.mulf %128, %143 : vector<16x128xf32>
    %145 = arith.truncf %136 : vector<16x128xf32> to vector<16x128xbf16>
    %146 = arith.truncf %144 : vector<16x128xf32> to vector<16x128xbf16>
    %147 = tpu.concatenate %145, %146 in 1 : vector<16x128xbf16>, vector<16x128xbf16> -> vector<16x256xbf16>
    %c0_105 = arith.constant 0 : index
    %c0_106 = arith.constant 0 : index
    %148 = vector.load %arg25[%c0_105, %c0_106] : memref<256x128xbf16, #tpu.memory_space<vmem>>, vector<256x128xbf16>
    %cst_107 = arith.constant dense<0.000000e+00> : vector<16x128xf32>
    %149 = tpu.matmul %147, %148, %cst_107 {dimension_numbers = #tpu.dot_dimension_numbers<[1], [0], [0], [1], [0, 0, 1, 1], [], []>} : vector<16x256xbf16>, vector<256x128xbf16>, vector<16x128xf32> -> vector<16x128xf32>
    %c0_108 = arith.constant 0 : index
    %c0_109 = arith.constant 0 : index
    %150 = vector.load %arg29[%c0_108, %c0_109] : memref<16x128xf32, #tpu.memory_space<vmem>>, vector<16x128xf32>
    tpu.vector_store %arg29[%c0_108, %c0_109], %149 {strides = array<i32>} : memref<16x128xf32, #tpu.memory_space<vmem>>, vector<16x128xf32>,
    %c0_110 = arith.constant 0 : index
    %c0_111 = arith.constant 0 : index
    %151 = vector.load %arg30[%c0_110, %c0_111] : memref<16x128xf32, #tpu.memory_space<vmem>>, vector<16x128xf32>
    tpu.vector_store %arg30[%c0_110, %c0_111], %136 {strides = array<i32>} : memref<16x128xf32, #tpu.memory_space<vmem>>, vector<16x128xf32>,
    return
  }
  func.func @transform_0(%arg0: i32) -> (i32, i32) {
    %c0_i32 = arith.constant 0 : i32
    %c0_i32_0 = arith.constant 0 : i32
    return %arg0, %c0_i32 : i32, i32
  }
  func.func @transform_1(%arg0: i32) -> (i32, i32) {
    %c0_i32 = arith.constant 0 : i32
    %c0_i32_0 = arith.constant 0 : i32
    return %arg0, %c0_i32 : i32, i32
  }
  func.func @transform_2(%arg0: i32) -> (i32, i32) {
    %c0_i32 = arith.constant 0 : i32
    %c0_i32_0 = arith.constant 0 : i32
    return %arg0, %c0_i32 : i32, i32
  }
  func.func @transform_3(%arg0: i32) -> (i32, i32) {
    %c0_i32 = arith.constant 0 : i32
    %c0_i32_0 = arith.constant 0 : i32
    %c0_i32_1 = arith.constant 0 : i32
    return %c0_i32, %c0_i32_0 : i32, i32
  }
  func.func @transform_4(%arg0: i32) -> (i32, i32) {
    %c0_i32 = arith.constant 0 : i32
    %c0_i32_0 = arith.constant 0 : i32
    %c0_i32_1 = arith.constant 0 : i32
    return %c0_i32, %c0_i32_0 : i32, i32
  }
  func.func @transform_5(%arg0: i32) -> (i32, i32) {
    %c0_i32 = arith.constant 0 : i32
    %c0_i32_0 = arith.constant 0 : i32
    %c0_i32_1 = arith.constant 0 : i32
    return %c0_i32, %c0_i32_0 : i32, i32
  }
  func.func @transform_6(%arg0: i32) -> (i32, i32) {
    %c0_i32 = arith.constant 0 : i32
    %c0_i32_0 = arith.constant 0 : i32
    %c0_i32_1 = arith.constant 0 : i32
    return %c0_i32, %c0_i32_0 : i32, i32
  }
  func.func @transform_7(%arg0: i32) -> (i32, i32) {
    %c0_i32 = arith.constant 0 : i32
    %c0_i32_0 = arith.constant 0 : i32
    %c0_i32_1 = arith.constant 0 : i32
    return %c0_i32, %c0_i32_0 : i32, i32
  }
  func.func @transform_8(%arg0: i32) -> (i32, i32) {
    %c0_i32 = arith.constant 0 : i32
    %c0_i32_0 = arith.constant 0 : i32
    %c0_i32_1 = arith.constant 0 : i32
    return %c0_i32, %c0_i32_0 : i32, i32
  }
  func.func @transform_9(%arg0: i32) -> (i32, i32) {
    %c0_i32 = arith.constant 0 : i32
    %c0_i32_0 = arith.constant 0 : i32
    %c0_i32_1 = arith.constant 0 : i32
    return %c0_i32, %c0_i32_0 : i32, i32
  }
  func.func @transform_10(%arg0: i32) -> (i32, i32) {
    %c0_i32 = arith.constant 0 : i32
    %c0_i32_0 = arith.constant 0 : i32
    %c0_i32_1 = arith.constant 0 : i32
    return %c0_i32, %c0_i32_0 : i32, i32
  }
  func.func @transform_11(%arg0: i32) -> (i32, i32) {
    %c0_i32 = arith.constant 0 : i32
    %c0_i32_0 = arith.constant 0 : i32
    %c0_i32_1 = arith.constant 0 : i32
    return %c0_i32, %c0_i32_0 : i32, i32
  }
  func.func @transform_12(%arg0: i32) -> (i32, i32) {
    %c0_i32 = arith.constant 0 : i32
    %c0_i32_0 = arith.constant 0 : i32
    %c0_i32_1 = arith.constant 0 : i32
    return %c0_i32, %c0_i32_0 : i32, i32
  }
  func.func @transform_13(%arg0: i32) -> (i32, i32) {
    %c0_i32 = arith.constant 0 : i32
    %c0_i32_0 = arith.constant 0 : i32
    %c0_i32_1 = arith.constant 0 : i32
    return %c0_i32, %c0_i32_0 : i32, i32
  }
  func.func @transform_14(%arg0: i32) -> (i32, i32) {
    %c0_i32 = arith.constant 0 : i32
    %c0_i32_0 = arith.constant 0 : i32
    %c0_i32_1 = arith.constant 0 : i32
    return %c0_i32, %c0_i32_0 : i32, i32
  }
  func.func @transform_15(%arg0: i32) -> (i32, i32) {
    %c0_i32 = arith.constant 0 : i32
    %c0_i32_0 = arith.constant 0 : i32
    %c0_i32_1 = arith.constant 0 : i32
    return %c0_i32, %c0_i32_0 : i32, i32
  }
  func.func @transform_16(%arg0: i32) -> (i32, i32) {
    %c0_i32 = arith.constant 0 : i32
    %c0_i32_0 = arith.constant 0 : i32
    %c0_i32_1 = arith.constant 0 : i32
    return %c0_i32, %c0_i32_0 : i32, i32
  }
  func.func @transform_17(%arg0: i32) -> (i32, i32) {
    %c0_i32 = arith.constant 0 : i32
    %c0_i32_0 = arith.constant 0 : i32
    %c0_i32_1 = arith.constant 0 : i32
    return %c0_i32, %c0_i32_0 : i32, i32
  }
  func.func @transform_18(%arg0: i32) -> (i32, i32) {
    %c0_i32 = arith.constant 0 : i32
    %c0_i32_0 = arith.constant 0 : i32
    %c0_i32_1 = arith.constant 0 : i32
    return %c0_i32, %c0_i32_0 : i32, i32
  }
  func.func @transform_19(%arg0: i32) -> (i32, i32) {
    %c0_i32 = arith.constant 0 : i32
    %c0_i32_0 = arith.constant 0 : i32
    %c0_i32_1 = arith.constant 0 : i32
    return %c0_i32, %c0_i32_0 : i32, i32
  }
  func.func @transform_20(%arg0: i32) -> (i32, i32) {
    %c0_i32 = arith.constant 0 : i32
    %c0_i32_0 = arith.constant 0 : i32
    %c0_i32_1 = arith.constant 0 : i32
    return %c0_i32, %c0_i32_0 : i32, i32
  }
  func.func @transform_21(%arg0: i32) -> (i32, i32) {
    %c0_i32 = arith.constant 0 : i32
    %c0_i32_0 = arith.constant 0 : i32
    %c0_i32_1 = arith.constant 0 : i32
    return %c0_i32, %c0_i32_0 : i32, i32
  }
  func.func @transform_22(%arg0: i32) -> (i32, i32) {
    %c0_i32 = arith.constant 0 : i32
    %c0_i32_0 = arith.constant 0 : i32
    %c0_i32_1 = arith.constant 0 : i32
    return %c0_i32, %c0_i32_0 : i32, i32
  }
  func.func @transform_23(%arg0: i32) -> (i32, i32) {
    %c0_i32 = arith.constant 0 : i32
    %c0_i32_0 = arith.constant 0 : i32
    %c0_i32_1 = arith.constant 0 : i32
    return %c0_i32, %c0_i32_0 : i32, i32
  }
  func.func @transform_24(%arg0: i32) -> (i32, i32) {
    %c0_i32 = arith.constant 0 : i32
    %c0_i32_0 = arith.constant 0 : i32
    %c0_i32_1 = arith.constant 0 : i32
    return %c0_i32, %c0_i32_0 : i32, i32
  }
  func.func @transform_25(%arg0: i32) -> (i32, i32) {
    %c0_i32 = arith.constant 0 : i32
    %c0_i32_0 = arith.constant 0 : i32
    return %arg0, %c0_i32 : i32, i32
  }
  func.func @transform_26(%arg0: i32) -> (i32, i32) {
    %c0_i32 = arith.constant 0 : i32
    %c0_i32_0 = arith.constant 0 : i32
    return %arg0, %c0_i32 : i32, i32
  }
  func.func @transform_27(%arg0: i32) -> (i32, i32) {
    %c0_i32 = arith.constant 0 : i32
    %c0_i32_0 = arith.constant 0 : i32
    return %arg0, %c0_i32 : i32, i32
  }
  func.func @transform_28(%arg0: i32) -> (i32, i32) {
    %c0_i32 = arith.constant 0 : i32
    %c0_i32_0 = arith.constant 0 : i32
    return %arg0, %c0_i32 : i32, i32
  }
  func.func @transform_29(%arg0: i32) -> (i32, i32) {
    %c0_i32 = arith.constant 0 : i32
    %c0_i32_0 = arith.constant 0 : i32
    return %arg0, %c0_i32 : i32, i32
  }
}

</mosaic_0001>

<llo_original>
// kernel: hoiclip_forward.2
$region0: #{hoiclip_forward.2}
  #allocation0 [shape = 'u32[]', space=smem, size = 0x4, offset = 0x4, fixed_abs, tag = 'smem constant byte address 0x4 - core index']
  #allocation1 [shape = 'u32[72,128]{1,0:T(1,128)}', space=vmem, size = 0x9000, scoped, tag = 'internal scratch']
  %s0 = inlined_call_operand.vmem [shape: bf16[2,4,256], index: 0, kind: input, shape index: {}]
  %s1 = inlined_call_operand.vmem [shape: bf16[128,4], index: 1, kind: input, shape index: {}]
  %s2 = inlined_call_operand.vmem [shape: f32[128,1], index: 2, kind: input, shape index: {}]
  %s3 = inlined_call_operand.vmem [shape: f32[2,128,256], index: 3, kind: output, shape index: {}]
  %s4 = sld [smem:[#allocation0]]
  $region79: #{hoiclip_forward.2} parent=0
    _
  %s6 = ssub.s32 1, %s4
  %s7 = scalar_select 0, %s6, %s4
  $region1: #{hoiclip_forward.2} parent=0
    #allocation2 [shape = 'u8[131072]{0}', space=vmem, size = 0x20000, scoped, tag = 'output window, operand 0']
    loop: start=0, step=1, limit=6
    $region2: #{hoiclip_forward.2} parent=1 // loop_pre_header
      _
    $region3: #{hoiclip_forward.2} parent=1 // loop_header
      %s9 = sphi 0, %s13
      %p10 = scmp.ge.s32.totalorder %s9, 6
      %s16 = sphi 0, %s28
      %s17 = sphi 0, %s24
      %s18 = sphi 0, %s16
      %s19 = sphi 0, %s17
      %s20 = sphi 0, %s18
      %s21 = sphi 0, %s19
      %s33 = sphi 0, %s35
      %s36 = sphi 0, %s33
      %s37 = sphi 0, %s36
      %s53 = sphi 0, %s37
      %s57 = sphi 0, %s57
      %s59 = sphi 0, %s57
      %s60 = sphi 0, %s59
      %s74 = sphi 0, %s60
      %s78 = sphi 0, %s78
      %s80 = sphi 0, %s78
      %s81 = sphi 0, %s80
      %s95 = sphi 0, %s81
      %s103 = sphi 0, %s105
      %s106 = sphi 0, %s103
      %s107 = sphi 0, %s106
      %s123 = sphi 0, %s107
    $region4: #{hoiclip_forward.2} parent=1 // loop_header_branch
      %12 = sbr.rel (%p10) target = $region8
    $region5: #{hoiclip_forward.2} parent=1 // loop_body
      %s14 = ssub.s32 %s9, 1
      %s15 = ssub.s32 %s9, 2
      %s22 = sadd.s32 1, %s17
      %p23 = scmp.ge.s32.totalorder %s22, 2
      %s24 = scalar_select %p23, 0, %s22
      %s25 = sadd.s32 1, %s16
      %s26 = scalar_select %p23, %s25, %s16
      %p27 = scmp.ge.s32.totalorder %s26, 2
      %s28 = scalar_select %p27, 0, %s26
      %s29 = ssub.s32 %s16, %s28
      %s30 = ssub.s32 %s17, %s24
      %s31 = sor.u32 %s29, %s30
      %p32 = scmp.eq.s32.totalorder %s31, 0
      %s34 = sadd.s32 %s33, 1
      %s35 = scalar_select %p32, %s33, %s34
      %p38 = pneg %p32
      %p39 = scmp.eq.s32.totalorder %s9, 3
      %p40 = por %p38, %p39
      %p41 = scmp.ne.s32.totalorder %s33, %s36
      %p42 = scmp.eq.s32.totalorder %s9, 0
      %p43 = por %p41, %p42
      %p44 = scmp.ne.s32.totalorder %s33, %s36
      %p45 = scmp.eq.s32.totalorder %s14, 3
      %p46 = por %p44, %p45
      %p47 = scmp.ne.s32.totalorder %s36, %s37
      %p48 = scmp.eq.s32.totalorder %s14, 0
      %p49 = por %p47, %p48
      %p50 = scmp.ne.s32.totalorder %s36, %s37
      %p51 = scmp.eq.s32.totalorder %s15, 3
      %p52 = por %p50, %p51
      %p54 = scmp.ne.s32.totalorder %s37, %s53
      %p55 = scmp.eq.s32.totalorder %s15, 0
      %p56 = por %p54, %p55
      %s58 = sadd.s32 %s57, 1
      %p61 = scmp.eq.s32.totalorder %s9, 3
      %p62 = scmp.ne.s32.totalorder %s57, %s59
      %p63 = scmp.eq.s32.totalorder %s9, 0
      %p64 = por %p62, %p63
      %p65 = scmp.ne.s32.totalorder %s57, %s59
      %p66 = scmp.eq.s32.totalorder %s14, 3
      %p67 = por %p65, %p66
      %p68 = scmp.ne.s32.totalorder %s59, %s60
      %p69 = scmp.eq.s32.totalorder %s14, 0
      %p70 = por %p68, %p69
      %p71 = scmp.ne.s32.totalorder %s59, %s60
      %p72 = scmp.eq.s32.totalorder %s15, 3
      %p73 = por %p71, %p72
      %p75 = scmp.ne.s32.totalorder %s60, %s74
      %p76 = scmp.eq.s32.totalorder %s15, 0
      %p77 = por %p75, %p76
      %s79 = sadd.s32 %s78, 1
      %p82 = scmp.eq.s32.totalorder %s9, 3
      %p83 = scmp.ne.s32.totalorder %s78, %s80
      %p84 = scmp.eq.s32.totalorder %s9, 0
      %p85 = por %p83, %p84
      %p86 = scmp.ne.s32.totalorder %s78, %s80
      %p87 = scmp.eq.s32.totalorder %s14, 3
      %p88 = por %p86, %p87
      %p89 = scmp.ne.s32.totalorder %s80, %s81
      %p90 = scmp.eq.s32.totalorder %s14, 0
      %p91 = por %p89, %p90
      %p92 = scmp.ne.s32.totalorder %s80, %s81
      %p93 = scmp.eq.s32.totalorder %s15, 3
      %p94 = por %p92, %p93
      %p96 = scmp.ne.s32.totalorder %s81, %s95
      %p97 = scmp.eq.s32.totalorder %s15, 0
      %p98 = por %p96, %p97
      %s99 = ssub.s32 %s16, %s28
      %s100 = ssub.s32 %s17, %s24
      %s101 = sor.u32 %s99, %s100
      %p102 = scmp.eq.s32.totalorder %s101, 0
      %s104 = sadd.s32 %s103, 1
      %s105 = scalar_select %p102, %s103, %s104
      %p108 = pneg %p102
      %p109 = scmp.eq.s32.totalorder %s9, 3
      %p110 = por %p108, %p109
      %p111 = scmp.ne.s32.totalorder %s103, %s106
      %p112 = scmp.eq.s32.totalorder %s9, 0
      %p113 = por %p111, %p112
      %p114 = scmp.ne.s32.totalorder %s103, %s106
      %p115 = scmp.eq.s32.totalorder %s14, 3
      %p116 = por %p114, %p115
      %p117 = scmp.ne.s32.totalorder %s106, %s107
      %p118 = scmp.eq.s32.totalorder %s14, 0
      %p119 = por %p117, %p118
      %p120 = scmp.ne.s32.totalorder %s106, %s107
      %p121 = scmp.eq.s32.totalorder %s15, 3
      %p122 = por %p120, %p121
      %p124 = scmp.ne.s32.totalorder %s107, %s123
      %p125 = scmp.eq.s32.totalorder %s15, 0
      %p126 = por %p124, %p125
      %p127 = scmp.le.s32.totalorder 1, %s9
      %p128 = scmp.lt.s32.totalorder %s9, 5
      %p129 = pnand %p127, %p128
      %p130 = pneg %p129
      // Predicated region
      $region9: #{hoiclip_forward.2} parent=5 // pred_check
        _
      $region10: #{hoiclip_forward.2} parent=5 // pred_check_branch
        %132 = sbr.rel (%p129) target = $region12
      $region11: #{hoiclip_forward.2} parent=5 // pred_region
        %s133 = ssub.s32 %s9, 1
        // Predicated region
        $region13: #{hoiclip_forward.2} parent=11 // pred_check
          %p134 = pneg %p70
        $region14: #{hoiclip_forward.2} parent=11 // pred_check_branch
          %136 = sbr.rel (%p134) target = $region16
        $region15: #{hoiclip_forward.2} parent=11 // pred_region
          _
        $region16: #{hoiclip_forward.2} parent=11 // pred_fallthru
          _
        // Predicated region
        $region17: #{hoiclip_forward.2} parent=11 // pred_check
          %p137 = pneg %p91
        $region18: #{hoiclip_forward.2} parent=11 // pred_check_branch
          %139 = sbr.rel (%p137) target = $region20
        $region19: #{hoiclip_forward.2} parent=11 // pred_region
          _
        $region20: #{hoiclip_forward.2} parent=11 // pred_fallthru
          _
      $region12: #{hoiclip_forward.2} parent=5 // pred_fallthru
        _
      %p140 = scmp.lt.s32.totalorder %s9, 4
      // Predicated region
      $region21: #{hoiclip_forward.2} parent=5 // pred_check
        %p141 = pneg %p140
      $region22: #{hoiclip_forward.2} parent=5 // pred_check_branch
        %143 = sbr.rel (%p141) target = $region24
      $region23: #{hoiclip_forward.2} parent=5 // pred_region
        // Predicated region
        $region25: #{hoiclip_forward.2} parent=23 // pred_check
          %p144 = pneg %p43
        $region26: #{hoiclip_forward.2} parent=23 // pred_check_branch
          %146 = sbr.rel (%p144) target = $region28
        $region27: #{hoiclip_forward.2} parent=23 // pred_region
          %p147 = scmp.lt.s32.totalorder %s16, 1
          %s148 = scalar_select %p147, %s16, 1
          %p149 = scmp.lt.s32.totalorder %s17, 1
          %s150 = scalar_select %p149, %s17, 1
          %s151 = smul.addr %s148, 2
          %s152 = sadd.s32 %s150, %s151
          %s153 = smul.addr %s152, 2
          %s154 = scalar_lea.vmem %s0, %s153
        $region28: #{hoiclip_forward.2} parent=23 // pred_fallthru
          _
      $region24: #{hoiclip_forward.2} parent=5 // pred_fallthru
        _
      %p155 = scmp.le.s32.totalorder 1, %s9
      %p156 = scmp.lt.s32.totalorder %s9, 5
      %p157 = pnand %p155, %p156
      %p158 = pneg %p157
      // Predicated region
      $region29: #{hoiclip_forward.2} parent=5 // pred_check
        _
      $region30: #{hoiclip_forward.2} parent=5 // pred_check_branch
        %160 = sbr.rel (%p157) target = $region32
      $region31: #{hoiclip_forward.2} parent=5 // pred_region
        %s161 = ssub.s32 %s9, 1
        %p162 = scmp.lt.s32.totalorder %s18, 1
        %s163 = scalar_select %p162, %s18, 1
        %p164 = scmp.lt.s32.totalorder %s19, 1
        %s165 = scalar_select %p164, %s19, 1
        %s166 = smul.addr %s163, 2
        %s167 = sadd.s32 %s165, %s166
        %s168 = smul.addr %s167, 2
        %s169 = scalar_lea.vmem %s0, %s168
        %p170 = pneg %p49
        %p171 = pneg %p46
        %p172 = pneg %p70
        %p173 = pneg %p67
        %p174 = pneg %p91
        %p175 = pneg %p88
        %p176 = pneg %p119
        %p177 = pneg %p116
        %s178 = sand.u32 %s106, 1
        %s179 = sand.u32 %s106, 1
        %s180 = smul.addr %s179, 128
        %s181 = scalar_lea.vmem [#allocation2], %s180
        %p182 = scmp.lt.s32.totalorder %s18, 1
        %s183 = scalar_select %p182, %s18, 1
        %p184 = scmp.lt.s32.totalorder %s19, 1
        %s185 = scalar_select %p184, %s19, 1
        %s186 = smul.addr %s183, 2
        %s187 = sadd.s32 %s185, %s186
        %s188 = smul.addr %s187, 2
        %s189 = scalar_lea.vmem %s0, %s188
        %v191 = vld [vmem:[%s189] sm:$0x3]
        %v192 = vld [vmem:[%s1] sm:$0xf]
        %v193 = vld [vmem:[%s1 + $0x4] sm:$0xf]
        %v194 = vld [vmem:[%s1 + $0x8] sm:$0xf]
        %v195 = vld [vmem:[%s1 + $0xc] sm:$0xf]
        %v196 = vld [vmem:[%s1 + $0x10] sm:$0xf]
        %v197 = vld [vmem:[%s1 + $0x14] sm:$0xf]
        %v198 = vld [vmem:[%s1 + $0x18] sm:$0xf]
        %v199 = vld [vmem:[%s1 + $0x1c] sm:$0xf]
        %v200 = vld [vmem:[%s1 + $0x20] sm:$0xf]
        %v201 = vld [vmem:[%s1 + $0x24] sm:$0xf]
        %v202 = vld [vmem:[%s1 + $0x28] sm:$0xf]
        %v203 = vld [vmem:[%s1 + $0x2c] sm:$0xf]
        %v204 = vld [vmem:[%s1 + $0x30] sm:$0xf]
        %v205 = vld [vmem:[%s1 + $0x34] sm:$0xf]
        %v206 = vld [vmem:[%s1 + $0x38] sm:$0xf]
        %v207 = vld [vmem:[%s1 + $0x3c] sm:$0xf]
        %v208 = vld [vmem:[%s2] sm:$0xff]
        %v209 = vld [vmem:[%s2 + $0x8] sm:$0xff]
        %v210 = vld [vmem:[%s2 + $0x10] sm:$0xff]
        %v211 = vld [vmem:[%s2 + $0x18] sm:$0xff]
        %v212 = vld [vmem:[%s2 + $0x20] sm:$0xff]
        %v213 = vld [vmem:[%s2 + $0x28] sm:$0xff]
        %v214 = vld [vmem:[%s2 + $0x30] sm:$0xff]
        %v215 = vld [vmem:[%s2 + $0x38] sm:$0xff]
        %v216 = vld [vmem:[%s2 + $0x40] sm:$0xff]
        %v217 = vld [vmem:[%s2 + $0x48] sm:$0xff]
        %v218 = vld [vmem:[%s2 + $0x50] sm:$0xff]
        %v219 = vld [vmem:[%s2 + $0x58] sm:$0xff]
        %v220 = vld [vmem:[%s2 + $0x60] sm:$0xff]
        %v221 = vld [vmem:[%s2 + $0x68] sm:$0xff]
        %v222 = vld [vmem:[%s2 + $0x70] sm:$0xff]
        %v223 = vld [vmem:[%s2 + $0x78] sm:$0xff]
        %225 = vset.pattern.permute.xlu0 0
        %226 = vperm.xlu0 %225, %v208
        %v227 = vpop.permute.xlu0 %226
        %230 = vset.pattern.permute.xlu0 0
        %231 = vperm.xlu0 %230, %v209
        %v232 = vpop.permute.xlu0 %231
        %235 = vset.pattern.permute.xlu0 0
        %236 = vperm.xlu0 %235, %v210
        %v237 = vpop.permute.xlu0 %236
        %240 = vset.pattern.permute.xlu0 0
        %241 = vperm.xlu0 %240, %v211
        %v242 = vpop.permute.xlu0 %241
        %245 = vset.pattern.permute.xlu0 0
        %246 = vperm.xlu0 %245, %v212
        %v247 = vpop.permute.xlu0 %246
        %250 = vset.pattern.permute.xlu0 0
        %251 = vperm.xlu0 %250, %v213
        %v252 = vpop.permute.xlu0 %251
        %255 = vset.pattern.permute.xlu0 0
        %256 = vperm.xlu0 %255, %v214
        %v257 = vpop.permute.xlu0 %256
        %260 = vset.pattern.permute.xlu0 0
        %261 = vperm.xlu0 %260, %v215
        %v262 = vpop.permute.xlu0 %261
        %265 = vset.pattern.permute.xlu0 0
        %266 = vperm.xlu0 %265, %v216
        %v267 = vpop.permute.xlu0 %266
        %270 = vset.pattern.permute.xlu0 0
        %271 = vperm.xlu0 %270, %v217
        %v272 = vpop.permute.xlu0 %271
        %275 = vset.pattern.permute.xlu0 0
        %276 = vperm.xlu0 %275, %v218
        %v277 = vpop.permute.xlu0 %276
        %280 = vset.pattern.permute.xlu0 0
        %281 = vperm.xlu0 %280, %v219
        %v282 = vpop.permute.xlu0 %281
        %285 = vset.pattern.permute.xlu0 0
        %286 = vperm.xlu0 %285, %v220
        %v287 = vpop.permute.xlu0 %286
        %290 = vset.pattern.permute.xlu0 0
        %291 = vperm.xlu0 %290, %v221
        %v292 = vpop.permute.xlu0 %291
        %295 = vset.pattern.permute.xlu0 0
        %296 = vperm.xlu0 %295, %v222
        %v297 = vpop.permute.xlu0 %296
        %300 = vset.pattern.permute.xlu0 0
        %301 = vperm.xlu0 %300, %v223
        %v302 = vpop.permute.xlu0 %301
        %v320 = vunpack.c.l.b16 %v192
        %v321 = vunpack.c.l.b16 %v193
        %v322 = vunpack.c.l.b16 %v194
        %v323 = vunpack.c.l.b16 %v195
        %v324 = vunpack.c.l.b16 %v196
        %v325 = vunpack.c.l.b16 %v197
        %v326 = vunpack.c.l.b16 %v198
        %v327 = vunpack.c.l.b16 %v199
        %v328 = vunpack.c.l.b16 %v200
        %v329 = vunpack.c.l.b16 %v201
        %v330 = vunpack.c.l.b16 %v202
        %v331 = vunpack.c.l.b16 %v203
        %v332 = vunpack.c.l.b16 %v204
        %v333 = vunpack.c.l.b16 %v205
        %v334 = vunpack.c.l.b16 %v206
        %v335 = vunpack.c.l.b16 %v207
        %v336 = vpack.c.b16 %v321, %v320
        %v337 = vpack.c.b16 %v323, %v322
        %v338 = vpack.c.b16 %v325, %v324
        %v339 = vpack.c.b16 %v327, %v326
        %v340 = vpack.c.b16 %v329, %v328
        %v341 = vpack.c.b16 %v331, %v330
        %v342 = vpack.c.b16 %v333, %v332
        %v343 = vpack.c.b16 %v335, %v334
        %vm344 = vcmask 31744
        %v346 = vsel %vm344, %v336, 0
        %v349 = vsel %vm344, %v337, 0
        %v352 = vsel %vm344, %v338, 0
        %v355 = vsel %vm344, %v339, 0
        %v358 = vsel %vm344, %v340, 0
        %v361 = vsel %vm344, %v341, 0
        %v364 = vsel %vm344, %v342, 0
        %v367 = vsel %vm344, %v343, 0
        %vm369 = vcmask 1041408
        %v371 = vsel %vm369, %v191, 0
        %373 = vmatpush.bf16.msra.mxu0 0
        %374 = vmatpush.bf16.msra.mxu0 0
        %375 = vmatpush.bf16.msra.mxu0 0
        %376 = vmatpush.bf16.msra.mxu0 0
        %377 = vmatpush.bf16.msra.mxu0 0
        %378 = vmatpush.bf16.msra.mxu0 0
        %379 = vmatpush.bf16.msra.mxu0 0
        %380 = vmatpush.bf16.msra.mxu0 %v371
        %381 = vmatmul.bf16.gmra.mxu0 %v346
        %v382 = vpop.f32.mrf.mxu0
        %v383 = vadd.f32 %v227, %v382
        %v384 = vpop.f32.mrf.mxu0
        %v385 = vadd.f32 %v232, %v384
        %386 = vmatmul.bf16.gmra.mxu0 %v349
        %v387 = vpop.f32.mrf.mxu0
        %v388 = vadd.f32 %v237, %v387
        %v389 = vpop.f32.mrf.mxu0
        %v390 = vadd.f32 %v242, %v389
        %391 = vmatmul.bf16.gmra.mxu0 %v352
        %v392 = vpop.f32.mrf.mxu0
        %v393 = vadd.f32 %v247, %v392
        %v394 = vpop.f32.mrf.mxu0
        %v395 = vadd.f32 %v252, %v394
        %396 = vmatmul.bf16.gmra.mxu0 %v355
        %v397 = vpop.f32.mrf.mxu0
        %v398 = vadd.f32 %v257, %v397
        %v399 = vpop.f32.mrf.mxu0
        %v400 = vadd.f32 %v262, %v399
        %401 = vmatmul.bf16.gmra.mxu0 %v358
        %v402 = vpop.f32.mrf.mxu0
        %v403 = vadd.f32 %v267, %v402
        %v404 = vpop.f32.mrf.mxu0
        %v405 = vadd.f32 %v272, %v404
        %406 = vmatmul.bf16.gmra.mxu0 %v361
        %v407 = vpop.f32.mrf.mxu0
        %v408 = vadd.f32 %v277, %v407
        %v409 = vpop.f32.mrf.mxu0
        %v410 = vadd.f32 %v282, %v409
        %411 = vmatmul.bf16.gmra.mxu0 %v364
        %v412 = vpop.f32.mrf.mxu0
        %v413 = vadd.f32 %v287, %v412
        %v414 = vpop.f32.mrf.mxu0
        %v415 = vadd.f32 %v292, %v414
        %416 = vmatmul.bf16.gmra.mxu0 %v367
        %v417 = vpop.f32.mrf.mxu0
        %v418 = vadd.f32 %v297, %v417
        %v419 = vpop.f32.mrf.mxu0
        %v420 = vadd.f32 %v302, %v419
        %421 = vdwg.mxu0
        %422 = vst [vmem:[%s181] sm:$0xff] %v383
        %423 = vst [vmem:[%s181 + $0x8] sm:$0xff] %v385
        %424 = vst [vmem:[%s181 + $0x10] sm:$0xff] %v388
        %425 = vst [vmem:[%s181 + $0x18] sm:$0xff] %v390
        %426 = vst [vmem:[%s181 + $0x20] sm:$0xff] %v393
        %427 = vst [vmem:[%s181 + $0x28] sm:$0xff] %v395
        %428 = vst [vmem:[%s181 + $0x30] sm:$0xff] %v398
        %429 = vst [vmem:[%s181 + $0x38] sm:$0xff] %v400
        %430 = vst [vmem:[%s181 + $0x40] sm:$0xff] %v403
        %431 = vst [vmem:[%s181 + $0x48] sm:$0xff] %v405
        %432 = vst [vmem:[%s181 + $0x50] sm:$0xff] %v408
        %433 = vst [vmem:[%s181 + $0x58] sm:$0xff] %v410
        %434 = vst [vmem:[%s181 + $0x60] sm:$0xff] %v413
        %435 = vst [vmem:[%s181 + $0x68] sm:$0xff] %v415
        %436 = vst [vmem:[%s181 + $0x70] sm:$0xff] %v418
        %437 = vst [vmem:[%s181 + $0x78] sm:$0xff] %v420
        %s438 = sand.u32 %s106, 1
        %s439 = sand.u32 %s106, 1
        %s440 = smul.addr %s439, 128
        %s441 = scalar_lea.vmem [#allocation2], %s440
        // Predicated region
        $region33: #{hoiclip_forward.2} parent=31 // pred_check
          %p442 = pneg %p116
        $region34: #{hoiclip_forward.2} parent=31 // pred_check_branch
          %444 = sbr.rel (%p442) target = $region36
        $region35: #{hoiclip_forward.2} parent=31 // pred_region
          %s445 = smul.addr %s18, 32
          %s446 = sadd.s32 %s19, %s445
          %s447 = smul.addr %s446, 8
          %s448 = scalar_lea.vmem %s3, %s447
          // Predicated region
          $region37: #{hoiclip_forward.2} parent=35 // pred_check
            _
          $region38: #{hoiclip_forward.2} parent=35 // pred_check_branch
            %450 = sbr.rel (0) target = $region40
          $region39: #{hoiclip_forward.2} parent=35 // pred_region
            // Predicated region
            $region41: #{hoiclip_forward.2} parent=39 // pred_check
              _
            $region42: #{hoiclip_forward.2} parent=39 // pred_check_branch
              %452 = sbr.rel (0) target = $region44
            $region43: #{hoiclip_forward.2} parent=39 // pred_region
              // Predicated region
              $region56: #{hoiclip_forward.2} parent=43 // pred_check
                _
              $region57: #{hoiclip_forward.2} parent=43 // pred_check_branch
                %498 = sbr.rel (0) target = $region59
              $region58: #{hoiclip_forward.2} parent=43 // pred_region
                loop: start=0, step=1, limit=1
                $region60: #{hoiclip_forward.2} parent=58 // loop_pre_header
                  _
                $region61: #{hoiclip_forward.2} parent=58 // loop_header
                  %s500 = sphi 0, %s504
                  %p501 = scmp.ge.s32.totalorder %s500, 1
                  %s505 = sphi %s441, %s441
                  %s506 = sphi %s448, %s448
                $region62: #{hoiclip_forward.2} parent=58 // loop_header_branch
                  %503 = sbr.rel (%p501) target = $region66
                $region63: #{hoiclip_forward.2} parent=58 // loop_body
                  %v507 = vld [vmem:[%s505] sm:$0xff]
                  %508 = vst [vmem:[%s506] sm:$0xff] %v507
                  %v509 = vld [vmem:[%s505 + $0x8] sm:$0xff]
                  %510 = vst [vmem:[%s506 + $0x10] sm:$0xff] %v509
                  %v511 = vld [vmem:[%s505 + $0x10] sm:$0xff]
                  %512 = vst [vmem:[%s506 + $0x20] sm:$0xff] %v511
                  %v513 = vld [vmem:[%s505 + $0x18] sm:$0xff]
                  %514 = vst [vmem:[%s506 + $0x30] sm:$0xff] %v513
                  %v515 = vld [vmem:[%s505 + $0x20] sm:$0xff]
                  %516 = vst [vmem:[%s506 + $0x40] sm:$0xff] %v515
                  %v517 = vld [vmem:[%s505 + $0x28] sm:$0xff]
                  %518 = vst [vmem:[%s506 + $0x50] sm:$0xff] %v517
                  %v519 = vld [vmem:[%s505 + $0x30] sm:$0xff]
                  %520 = vst [vmem:[%s506 + $0x60] sm:$0xff] %v519
                  %v521 = vld [vmem:[%s505 + $0x38] sm:$0xff]
                  %522 = vst [vmem:[%s506 + $0x70] sm:$0xff] %v521
                  %v523 = vld [vmem:[%s505 + $0x40] sm:$0xff]
                  %524 = vst [vmem:[%s506 + $0x80] sm:$0xff] %v523
                  %v525 = vld [vmem:[%s505 + $0x48] sm:$0xff]
                  %526 = vst [vmem:[%s506 + $0x90] sm:$0xff] %v525
                  %v527 = vld [vmem:[%s505 + $0x50] sm:$0xff]
                  %528 = vst [vmem:[%s506 + $0xa0] sm:$0xff] %v527
                  %v529 = vld [vmem:[%s505 + $0x58] sm:$0xff]
                  %530 = vst [vmem:[%s506 + $0xb0] sm:$0xff] %v529
                  %v531 = vld [vmem:[%s505 + $0x60] sm:$0xff]
                  %532 = vst [vmem:[%s506 + $0xc0] sm:$0xff] %v531
                  %v533 = vld [vmem:[%s505 + $0x68] sm:$0xff]
                  %534 = vst [vmem:[%s506 + $0xd0] sm:$0xff] %v533
                  %v535 = vld [vmem:[%s505 + $0x70] sm:$0xff]
                  %536 = vst [vmem:[%s506 + $0xe0] sm:$0xff] %v535
                  %v537 = vld [vmem:[%s505 + $0x78] sm:$0xff]
                  %538 = vst [vmem:[%s506 + $0xf0] sm:$0xff] %v537
                $region64: #{hoiclip_forward.2} parent=58 // loop_footer
                  %s504 = sadd.s32 1, %s500
                $region65: #{hoiclip_forward.2} parent=58 // loop_footer_branch
                  %499 = sbr.rel target = $region61
                $region66: #{hoiclip_forward.2} parent=58 // loop_exit
                  _
              $region59: #{hoiclip_forward.2} parent=43 // pred_fallthru
                _
              // Predicated region
              $region67: #{hoiclip_forward.2} parent=43 // pred_check
                _
              $region68: #{hoiclip_forward.2} parent=43 // pred_check_branch
                %540 = sbr.rel target = $region70
              $region69: #{hoiclip_forward.2} parent=43 // pred_region
                _
              $region70: #{hoiclip_forward.2} parent=43 // pred_fallthru
                _
            $region44: #{hoiclip_forward.2} parent=39 // pred_fallthru
              _
            // Predicated region
            $region45: #{hoiclip_forward.2} parent=39 // pred_check
              _
            $region46: #{hoiclip_forward.2} parent=39 // pred_check_branch
              %454 = sbr.rel target = $region48
            $region47: #{hoiclip_forward.2} parent=39 // pred_region
              %s456 = ssub.s32 256, 1
              loop: start=0, step=1, limit=1
              $region49: #{hoiclip_forward.2} parent=47 // loop_pre_header
                _
              $region50: #{hoiclip_forward.2} parent=47 // loop_header
                %s458 = sphi 0, %s462
                %p459 = scmp.ge.s32.totalorder %s458, 1
                %s463 = sphi %s441, %s441
                %s464 = sphi %s448, %s448
              $region51: #{hoiclip_forward.2} parent=47 // loop_header_branch
                %461 = sbr.rel (%p459) target = $region55
              $region52: #{hoiclip_forward.2} parent=47 // loop_body
                %v465 = vld [vmem:[%s463] sm:%s456]
                %466 = vst [vmem:[%s464] sm:%s456] %v465
                %v467 = vld [vmem:[%s463 + $0x8] sm:%s456]
                %468 = vst [vmem:[%s464 + $0x10] sm:%s456] %v467
                %v469 = vld [vmem:[%s463 + $0x10] sm:%s456]
                %470 = vst [vmem:[%s464 + $0x20] sm:%s456] %v469
                %v471 = vld [vmem:[%s463 + $0x18] sm:%s456]
                %472 = vst [vmem:[%s464 + $0x30] sm:%s456] %v471
                %v473 = vld [vmem:[%s463 + $0x20] sm:%s456]
                %474 = vst [vmem:[%s464 + $0x40] sm:%s456] %v473
                %v475 = vld [vmem:[%s463 + $0x28] sm:%s456]
                %476 = vst [vmem:[%s464 + $0x50] sm:%s456] %v475
                %v477 = vld [vmem:[%s463 + $0x30] sm:%s456]
                %478 = vst [vmem:[%s464 + $0x60] sm:%s456] %v477
                %v479 = vld [vmem:[%s463 + $0x38] sm:%s456]
                %480 = vst [vmem:[%s464 + $0x70] sm:%s456] %v479
                %v481 = vld [vmem:[%s463 + $0x40] sm:%s456]
                %482 = vst [vmem:[%s464 + $0x80] sm:%s456] %v481
                %v483 = vld [vmem:[%s463 + $0x48] sm:%s456]
                %484 = vst [vmem:[%s464 + $0x90] sm:%s456] %v483
                %v485 = vld [vmem:[%s463 + $0x50] sm:%s456]
                %486 = vst [vmem:[%s464 + $0xa0] sm:%s456] %v485
                %v487 = vld [vmem:[%s463 + $0x58] sm:%s456]
                %488 = vst [vmem:[%s464 + $0xb0] sm:%s456] %v487
                %v489 = vld [vmem:[%s463 + $0x60] sm:%s456]
                %490 = vst [vmem:[%s464 + $0xc0] sm:%s456] %v489
                %v491 = vld [vmem:[%s463 + $0x68] sm:%s456]
                %492 = vst [vmem:[%s464 + $0xd0] sm:%s456] %v491
                %v493 = vld [vmem:[%s463 + $0x70] sm:%s456]
                %494 = vst [vmem:[%s464 + $0xe0] sm:%s456] %v493
                %v495 = vld [vmem:[%s463 + $0x78] sm:%s456]
                %496 = vst [vmem:[%s464 + $0xf0] sm:%s456] %v495
              $region53: #{hoiclip_forward.2} parent=47 // loop_footer
                %s462 = sadd.s32 1, %s458
              $region54: #{hoiclip_forward.2} parent=47 // loop_footer_branch
                %457 = sbr.rel target = $region50
              $region55: #{hoiclip_forward.2} parent=47 // loop_exit
                _
            $region48: #{hoiclip_forward.2} parent=39 // pred_fallthru
              _
          $region40: #{hoiclip_forward.2} parent=35 // pred_fallthru
            _
          %541 = vnop
        $region36: #{hoiclip_forward.2} parent=31 // pred_fallthru
          _
      $region32: #{hoiclip_forward.2} parent=5 // pred_fallthru
        _
      %p542 = scmp.le.s32.totalorder 2, %s9
      // Predicated region
      $region71: #{hoiclip_forward.2} parent=5 // pred_check
        %p543 = pneg %p542
      $region72: #{hoiclip_forward.2} parent=5 // pred_check_branch
        %545 = sbr.rel (%p543) target = $region74
      $region73: #{hoiclip_forward.2} parent=5 // pred_region
        %s546 = ssub.s32 %s9, 2
        // Predicated region
        $region75: #{hoiclip_forward.2} parent=73 // pred_check
          %p547 = pneg %p122
        $region76: #{hoiclip_forward.2} parent=73 // pred_check_branch
          %549 = sbr.rel (%p547) target = $region78
        $region77: #{hoiclip_forward.2} parent=73 // pred_region
          %s550 = sand.u32 %s107, 1
          %s551 = sand.u32 %s107, 1
          %s552 = smul.addr %s551, 128
          %s553 = scalar_lea.vmem [#allocation2], %s552
        $region78: #{hoiclip_forward.2} parent=73 // pred_fallthru
          _
      $region74: #{hoiclip_forward.2} parent=5 // pred_fallthru
        _
    $region6: #{hoiclip_forward.2} parent=1 // loop_footer
      %s13 = sadd.s32 1, %s9
    $region7: #{hoiclip_forward.2} parent=1 // loop_footer_branch
      %8 = sbr.rel target = $region3
    $region8: #{hoiclip_forward.2} parent=1 // loop_exit
      _

// kernel: hoiclip_forward.3
$region0: #{hoiclip_forward.3}
  #allocation0 [shape = 'u32[]', space=smem, size = 0x4, offset = 0x4, fixed_abs, tag = 'smem constant byte address 0x4 - core index']
  #allocation1 [shape = 'u32[72,128]{1,0:T(1,128)}', space=vmem, size = 0x9000, scoped, tag = 'internal scratch']
  #allocation2 [shape = 'bf16[16,128]{1,0:T(8,128)(2,1)}', space=vmem, size = 0x1000, scoped, tag = 'scratch operand']
  #allocation3 [shape = 'bf16[16,128]{1,0:T(8,128)(2,1)}', space=vmem, size = 0x1000, scoped, tag = 'scratch operand']
  #allocation4 [shape = 'bf16[16,64]{1,0:T(8,128)(2,1)}', space=vmem, size = 0x1000, scoped, tag = 'scratch operand']
  %s0 = inlined_call_operand.smem [shape: u32[30], index: -1, kind: input, shape index: {}]
  %s1 = sld [smem:[%s0]]
  %s2 = scalar_lea.smem %s0, 1
  %s3 = sld [smem:[%s2]]
  %s4 = scalar_lea.smem %s0, 2
  %s5 = sld [smem:[%s4]]
  %s6 = scalar_lea.smem %s0, 3
  %s7 = sld [smem:[%s6]]
  %s8 = scalar_lea.smem %s0, 4
  %s9 = sld [smem:[%s8]]
  %s10 = scalar_lea.smem %s0, 5
  %s11 = sld [smem:[%s10]]
  %s12 = scalar_lea.smem %s0, 6
  %s13 = sld [smem:[%s12]]
  %s14 = scalar_lea.smem %s0, 7
  %s15 = sld [smem:[%s14]]
  %s16 = scalar_lea.smem %s0, 8
  %s17 = sld [smem:[%s16]]
  %s18 = scalar_lea.smem %s0, 9
  %s19 = sld [smem:[%s18]]
  %s20 = scalar_lea.smem %s0, 10
  %s21 = sld [smem:[%s20]]
  %s22 = scalar_lea.smem %s0, 11
  %s23 = sld [smem:[%s22]]
  %s24 = scalar_lea.smem %s0, 12
  %s25 = sld [smem:[%s24]]
  %s26 = scalar_lea.smem %s0, 13
  %s27 = sld [smem:[%s26]]
  %s28 = scalar_lea.smem %s0, 14
  %s29 = sld [smem:[%s28]]
  %s30 = scalar_lea.smem %s0, 15
  %s31 = sld [smem:[%s30]]
  %s32 = scalar_lea.smem %s0, 16
  %s33 = sld [smem:[%s32]]
  %s34 = scalar_lea.smem %s0, 17
  %s35 = sld [smem:[%s34]]
  %s36 = scalar_lea.smem %s0, 18
  %s37 = sld [smem:[%s36]]
  %s38 = scalar_lea.smem %s0, 19
  %s39 = sld [smem:[%s38]]
  %s40 = scalar_lea.smem %s0, 20
  %s41 = sld [smem:[%s40]]
  %s42 = scalar_lea.smem %s0, 21
  %s43 = sld [smem:[%s42]]
  %s44 = scalar_lea.smem %s0, 22
  %s45 = sld [smem:[%s44]]
  %s46 = scalar_lea.smem %s0, 23
  %s47 = sld [smem:[%s46]]
  %s48 = scalar_lea.smem %s0, 24
  %s49 = sld [smem:[%s48]]
  %s50 = scalar_lea.smem %s0, 25
  %s51 = sld [smem:[%s50]]
  %s52 = scalar_lea.smem %s0, 26
  %s53 = sld [smem:[%s52]]
  %s54 = scalar_lea.smem %s0, 27
  %s55 = sld [smem:[%s54]]
  %s56 = scalar_lea.smem %s0, 28
  %s57 = sld [smem:[%s56]]
  %s58 = scalar_lea.smem %s0, 29
  %s59 = sld [smem:[%s58]]
  %60 = xla_tuple %s51, %s53, %s55, %s57, %s59
  %s61 = sld [smem:[#allocation0]]
  $region213: #{hoiclip_forward.3} parent=0
    _
  %s63 = ssub.s32 1, %s61
  %s64 = scalar_select 0, %s63, %s61
  $region1: #{hoiclip_forward.3} parent=0
    #allocation5 [shape = 'u8[512]{0}', space=vmem, size = 0x400, scoped, tag = 'input window, operand 6, single buffered']
    #allocation6 [shape = 's32[2]{0}', space=sflag, size = 0x8, scoped, tag = 'scoped memory for hoiclip_forward.3']
    #allocation7 [shape = 'u8[512]{0}', space=vmem, size = 0x400, scoped, tag = 'input window, operand 8, single buffered']
    #allocation8 [shape = 's32[1]{0}', space=sflag, size = 0x4, scoped, tag = 'scoped memory for hoiclip_forward.3']
    #allocation9 [shape = 'u8[512]{0}', space=vmem, size = 0x400, scoped, tag = 'input window, operand 12, single buffered']
    #allocation10 [shape = 'u8[512]{0}', space=vmem, size = 0x400, scoped, tag = 'input window, operand 14, single buffered']
    #allocation11 [shape = 's32[1]{0}', space=sflag, size = 0x4, scoped, tag = 'scoped memory for hoiclip_forward.3']
    #allocation12 [shape = 'u8[512]{0}', space=vmem, size = 0x400, scoped, tag = 'input window, operand 15, single buffered']
    #allocation13 [shape = 'u8[512]{0}', space=vmem, size = 0x400, scoped, tag = 'input window, operand 16, single buffered']
    #allocation14 [shape = 's32[1]{0}', space=sflag, size = 0x4, scoped, tag = 'scoped memory for hoiclip_forward.3']
    #allocation15 [shape = 'u8[32768]{0}', space=vmem, size = 0x8000, scoped, tag = 'input window, operand 17, single buffered']
    #allocation16 [shape = 'u8[512]{0}', space=vmem, size = 0x400, scoped, tag = 'input window, operand 19, single buffered']
    #allocation17 [shape = 's32[1]{0}', space=sflag, size = 0x4, scoped, tag = 'scoped memory for hoiclip_forward.3']
    #allocation18 [shape = 'u8[16384]{0}', space=vmem, size = 0x4000, scoped, tag = 'input window, operand 20, single buffered']
    #allocation19 [shape = 'u8[512]{0}', space=vmem, size = 0x400, scoped, tag = 'input window, operand 21, single buffered']
    #allocation20 [shape = 's32[1]{0}', space=sflag, size = 0x4, scoped, tag = 'scoped memory for hoiclip_forward.3']
    #allocation21 [shape = 'u8[16384]{0}', space=vmem, size = 0x4000, scoped, tag = 'input window, operand 22, single buffered']
    #allocation22 [shape = 'u8[512]{0}', space=vmem, size = 0x400, scoped, tag = 'input window, operand 23, single buffered']
    #allocation23 [shape = 's32[1]{0}', space=sflag, size = 0x4, scoped, tag = 'scoped memory for hoiclip_forward.3']
    %65 = vsyncpa [#allocation6], 0
    %66 = vsyncpa [#allocation8], 0
    %67 = vsyncpa [#allocation11], 0
    %68 = vsyncpa [#allocation14], 0
    %69 = vsyncpa [#allocation17], 0
    %70 = vsyncpa [#allocation20], 0
    %71 = vsyncpa [#allocation23], 0
    loop: start=0, step=1, limit=5
    $region2: #{hoiclip_forward.3} parent=1 // loop_pre_header
      _
    $region3: #{hoiclip_forward.3} parent=1 // loop_header
      %s73 = sphi 0, %s77
      %p74 = scmp.ge.s32.totalorder %s73, 5
      %s83 = sphi 0, %s85
      %s86 = sphi 0, %s83
      %s87 = sphi 0, %s86
      %s103 = sphi 0, %s87
      %s109 = sphi 0, %s111
      %s112 = sphi 0, %s109
      %s113 = sphi 0, %s112
      %s129 = sphi 0, %s113
      %s135 = sphi 0, %s137
      %s138 = sphi 0, %s135
      %s139 = sphi 0, %s138
      %s155 = sphi 0, %s139
      %s159 = sphi 0, %s159
      %s161 = sphi 0, %s159
      %s162 = sphi 0, %s161
      %s176 = sphi 0, %s162
      %s180 = sphi 0, %s180
      %s182 = sphi 0, %s180
      %s183 = sphi 0, %s182
      %s197 = sphi 0, %s183
      %s201 = sphi 0, %s201
      %s203 = sphi 0, %s201
      %s204 = sphi 0, %s203
      %s218 = sphi 0, %s204
      %s222 = sphi 0, %s222
      %s224 = sphi 0, %s222
      %s225 = sphi 0, %s224
      %s239 = sphi 0, %s225
      %s243 = sphi 0, %s243
      %s245 = sphi 0, %s243
      %s246 = sphi 0, %s245
      %s260 = sphi 0, %s246
      %s264 = sphi 0, %s264
      %s266 = sphi 0, %s264
      %s267 = sphi 0, %s266
      %s281 = sphi 0, %s267
      %s285 = sphi 0, %s285
      %s287 = sphi 0, %s285
      %s288 = sphi 0, %s287
      %s302 = sphi 0, %s288
      %s306 = sphi 0, %s306
      %s308 = sphi 0, %s306
      %s309 = sphi 0, %s308
      %s323 = sphi 0, %s309
      %s327 = sphi 0, %s327
      %s329 = sphi 0, %s327
      %s330 = sphi 0, %s329
      %s344 = sphi 0, %s330
      %s348 = sphi 0, %s348
      %s350 = sphi 0, %s348
      %s351 = sphi 0, %s350
      %s365 = sphi 0, %s351
      %s369 = sphi 0, %s369
      %s371 = sphi 0, %s369
      %s372 = sphi 0, %s371
      %s386 = sphi 0, %s372
      %s390 = sphi 0, %s390
      %s392 = sphi 0, %s390
      %s393 = sphi 0, %s392
      %s407 = sphi 0, %s393
      %s411 = sphi 0, %s411
      %s413 = sphi 0, %s411
      %s414 = sphi 0, %s413
      %s428 = sphi 0, %s414
      %s432 = sphi 0, %s432
      %s434 = sphi 0, %s432
      %s435 = sphi 0, %s434
      %s449 = sphi 0, %s435
      %s453 = sphi 0, %s453
      %s455 = sphi 0, %s453
      %s456 = sphi 0, %s455
      %s470 = sphi 0, %s456
      %s474 = sphi 0, %s474
      %s476 = sphi 0, %s474
      %s477 = sphi 0, %s476
      %s491 = sphi 0, %s477
      %s495 = sphi 0, %s495
      %s497 = sphi 0, %s495
      %s498 = sphi 0, %s497
      %s512 = sphi 0, %s498
      %s516 = sphi 0, %s516
      %s518 = sphi 0, %s516
      %s519 = sphi 0, %s518
      %s533 = sphi 0, %s519
      %s537 = sphi 0, %s537
      %s539 = sphi 0, %s537
      %s540 = sphi 0, %s539
      %s554 = sphi 0, %s540
      %s558 = sphi 0, %s558
      %s560 = sphi 0, %s558
      %s561 = sphi 0, %s560
      %s575 = sphi 0, %s561
      %s579 = sphi 0, %s579
      %s581 = sphi 0, %s579
      %s582 = sphi 0, %s581
      %s596 = sphi 0, %s582
      %s600 = sphi 0, %s600
      %s602 = sphi 0, %s600
      %s603 = sphi 0, %s602
      %s617 = sphi 0, %s603
      %s623 = sphi 0, %s625
      %s626 = sphi 0, %s623
      %s627 = sphi 0, %s626
      %s643 = sphi 0, %s627
      %s649 = sphi 0, %s651
      %s652 = sphi 0, %s649
      %s653 = sphi 0, %s652
      %s669 = sphi 0, %s653
      %s675 = sphi 0, %s677
      %s678 = sphi 0, %s675
      %s679 = sphi 0, %s678
      %s695 = sphi 0, %s679
      %s701 = sphi 0, %s703
      %s704 = sphi 0, %s701
      %s705 = sphi 0, %s704
      %s721 = sphi 0, %s705
      %s727 = sphi 0, %s729
      %s730 = sphi 0, %s727
      %s731 = sphi 0, %s730
      %s747 = sphi 0, %s731
    $region4: #{hoiclip_forward.3} parent=1 // loop_header_branch
      %76 = sbr.rel (%p74) target = $region8
    $region5: #{hoiclip_forward.3} parent=1 // loop_body
      %s78 = ssub.s32 %s73, 1
      %s79 = ssub.s32 %s73, 2
      %s80 = sadd.s32 %s73, 1
      %s81 = ssub.s32 %s73, %s80
      %p82 = scmp.eq.s32.totalorder %s81, 0
      %s84 = sadd.s32 %s83, 1
      %s85 = scalar_select %p82, %s83, %s84
      %p88 = pneg %p82
      %p89 = scmp.eq.s32.totalorder %s73, 2
      %p90 = por %p88, %p89
      %p91 = scmp.ne.s32.totalorder %s83, %s86
      %p92 = scmp.eq.s32.totalorder %s73, 0
      %p93 = por %p91, %p92
      %p94 = scmp.ne.s32.totalorder %s83, %s86
      %p95 = scmp.eq.s32.totalorder %s78, 2
      %p96 = por %p94, %p95
      %p97 = scmp.ne.s32.totalorder %s86, %s87
      %p98 = scmp.eq.s32.totalorder %s78, 0
      %p99 = por %p97, %p98
      %p100 = scmp.ne.s32.totalorder %s86, %s87
      %p101 = scmp.eq.s32.totalorder %s79, 2
      %p102 = por %p100, %p101
      %p104 = scmp.ne.s32.totalorder %s87, %s103
      %p105 = scmp.eq.s32.totalorder %s79, 0
      %p106 = por %p104, %p105
      %s107 = ssub.s32 %s73, %s80
      %p108 = scmp.eq.s32.totalorder %s107, 0
      %s110 = sadd.s32 %s109, 1
      %s111 = scalar_select %p108, %s109, %s110
      %p114 = pneg %p108
      %p115 = scmp.eq.s32.totalorder %s73, 2
      %p116 = por %p114, %p115
      %p117 = scmp.ne.s32.totalorder %s109, %s112
      %p118 = scmp.eq.s32.totalorder %s73, 0
      %p119 = por %p117, %p118
      %p120 = scmp.ne.s32.totalorder %s109, %s112
      %p121 = scmp.eq.s32.totalorder %s78, 2
      %p122 = por %p120, %p121
      %p123 = scmp.ne.s32.totalorder %s112, %s113
      %p124 = scmp.eq.s32.totalorder %s78, 0
      %p125 = por %p123, %p124
      %p126 = scmp.ne.s32.totalorder %s112, %s113
      %p127 = scmp.eq.s32.totalorder %s79, 2
      %p128 = por %p126, %p127
      %p130 = scmp.ne.s32.totalorder %s113, %s129
      %p131 = scmp.eq.s32.totalorder %s79, 0
      %p132 = por %p130, %p131
      %s133 = ssub.s32 %s73, %s80
      %p134 = scmp.eq.s32.totalorder %s133, 0
      %s136 = sadd.s32 %s135, 1
      %s137 = scalar_select %p134, %s135, %s136
      %p140 = pneg %p134
      %p141 = scmp.eq.s32.totalorder %s73, 2
      %p142 = por %p140, %p141
      %p143 = scmp.ne.s32.totalorder %s135, %s138
      %p144 = scmp.eq.s32.totalorder %s73, 0
      %p145 = por %p143, %p144
      %p146 = scmp.ne.s32.totalorder %s135, %s138
      %p147 = scmp.eq.s32.totalorder %s78, 2
      %p148 = por %p146, %p147
      %p149 = scmp.ne.s32.totalorder %s138, %s139
      %p150 = scmp.eq.s32.totalorder %s78, 0
      %p151 = por %p149, %p150
      %p152 = scmp.ne.s32.totalorder %s138, %s139
      %p153 = scmp.eq.s32.totalorder %s79, 2
      %p154 = por %p152, %p153
      %p156 = scmp.ne.s32.totalorder %s139, %s155
      %p157 = scmp.eq.s32.totalorder %s79, 0
      %p158 = por %p156, %p157
      %s160 = sadd.s32 %s159, 1
      %p163 = scmp.eq.s32.totalorder %s73, 2
      %p164 = scmp.ne.s32.totalorder %s159, %s161
      %p165 = scmp.eq.s32.totalorder %s73, 0
      %p166 = por %p164, %p165
      %p167 = scmp.ne.s32.totalorder %s159, %s161
      %p168 = scmp.eq.s32.totalorder %s78, 2
      %p169 = por %p167, %p168
      %p170 = scmp.ne.s32.totalorder %s161, %s162
      %p171 = scmp.eq.s32.totalorder %s78, 0
      %p172 = por %p170, %p171
      %p173 = scmp.ne.s32.totalorder %s161, %s162
      %p174 = scmp.eq.s32.totalorder %s79, 2
      %p175 = por %p173, %p174
      %p177 = scmp.ne.s32.totalorder %s162, %s176
      %p178 = scmp.eq.s32.totalorder %s79, 0
      %p179 = por %p177, %p178
      %s181 = sadd.s32 %s180, 1
      %p184 = scmp.eq.s32.totalorder %s73, 2
      %p185 = scmp.ne.s32.totalorder %s180, %s182
      %p186 = scmp.eq.s32.totalorder %s73, 0
      %p187 = por %p185, %p186
      %p188 = scmp.ne.s32.totalorder %s180, %s182
      %p189 = scmp.eq.s32.totalorder %s78, 2
      %p190 = por %p188, %p189
      %p191 = scmp.ne.s32.totalorder %s182, %s183
      %p192 = scmp.eq.s32.totalorder %s78, 0
      %p193 = por %p191, %p192
      %p194 = scmp.ne.s32.totalorder %s182, %s183
      %p195 = scmp.eq.s32.totalorder %s79, 2
      %p196 = por %p194, %p195
      %p198 = scmp.ne.s32.totalorder %s183, %s197
      %p199 = scmp.eq.s32.totalorder %s79, 0
      %p200 = por %p198, %p199
      %s202 = sadd.s32 %s201, 1
      %p205 = scmp.eq.s32.totalorder %s73, 2
      %p206 = scmp.ne.s32.totalorder %s201, %s203
      %p207 = scmp.eq.s32.totalorder %s73, 0
      %p208 = por %p206, %p207
      %p209 = scmp.ne.s32.totalorder %s201, %s203
      %p210 = scmp.eq.s32.totalorder %s78, 2
      %p211 = por %p209, %p210
      %p212 = scmp.ne.s32.totalorder %s203, %s204
      %p213 = scmp.eq.s32.totalorder %s78, 0
      %p214 = por %p212, %p213
      %p215 = scmp.ne.s32.totalorder %s203, %s204
      %p216 = scmp.eq.s32.totalorder %s79, 2
      %p217 = por %p215, %p216
      %p219 = scmp.ne.s32.totalorder %s204, %s218
      %p220 = scmp.eq.s32.totalorder %s79, 0
      %p221 = por %p219, %p220
      %s223 = sadd.s32 %s222, 1
      %p226 = scmp.eq.s32.totalorder %s73, 2
      %p227 = scmp.ne.s32.totalorder %s222, %s224
      %p228 = scmp.eq.s32.totalorder %s73, 0
      %p229 = por %p227, %p228
      %p230 = scmp.ne.s32.totalorder %s222, %s224
      %p231 = scmp.eq.s32.totalorder %s78, 2
      %p232 = por %p230, %p231
      %p233 = scmp.ne.s32.totalorder %s224, %s225
      %p234 = scmp.eq.s32.totalorder %s78, 0
      %p235 = por %p233, %p234
      %p236 = scmp.ne.s32.totalorder %s224, %s225
      %p237 = scmp.eq.s32.totalorder %s79, 2
      %p238 = por %p236, %p237
      %p240 = scmp.ne.s32.totalorder %s225, %s239
      %p241 = scmp.eq.s32.totalorder %s79, 0
      %p242 = por %p240, %p241
      %s244 = sadd.s32 %s243, 1
      %p247 = scmp.eq.s32.totalorder %s73, 2
      %p248 = scmp.ne.s32.totalorder %s243, %s245
      %p249 = scmp.eq.s32.totalorder %s73, 0
      %p250 = por %p248, %p249
      %p251 = scmp.ne.s32.totalorder %s243, %s245
      %p252 = scmp.eq.s32.totalorder %s78, 2
      %p253 = por %p251, %p252
      %p254 = scmp.ne.s32.totalorder %s245, %s246
      %p255 = scmp.eq.s32.totalorder %s78, 0
      %p256 = por %p254, %p255
      %p257 = scmp.ne.s32.totalorder %s245, %s246
      %p258 = scmp.eq.s32.totalorder %s79, 2
      %p259 = por %p257, %p258
      %p261 = scmp.ne.s32.totalorder %s246, %s260
      %p262 = scmp.eq.s32.totalorder %s79, 0
      %p263 = por %p261, %p262
      %s265 = sadd.s32 %s264, 1
      %p268 = scmp.eq.s32.totalorder %s73, 2
      %p269 = scmp.ne.s32.totalorder %s264, %s266
      %p270 = scmp.eq.s32.totalorder %s73, 0
      %p271 = por %p269, %p270
      %p272 = scmp.ne.s32.totalorder %s264, %s266
      %p273 = scmp.eq.s32.totalorder %s78, 2
      %p274 = por %p272, %p273
      %p275 = scmp.ne.s32.totalorder %s266, %s267
      %p276 = scmp.eq.s32.totalorder %s78, 0
      %p277 = por %p275, %p276
      %p278 = scmp.ne.s32.totalorder %s266, %s267
      %p279 = scmp.eq.s32.totalorder %s79, 2
      %p280 = por %p278, %p279
      %p282 = scmp.ne.s32.totalorder %s267, %s281
      %p283 = scmp.eq.s32.totalorder %s79, 0
      %p284 = por %p282, %p283
      %s286 = sadd.s32 %s285, 1
      %p289 = scmp.eq.s32.totalorder %s73, 2
      %p290 = scmp.ne.s32.totalorder %s285, %s287
      %p291 = scmp.eq.s32.totalorder %s73, 0
      %p292 = por %p290, %p291
      %p293 = scmp.ne.s32.totalorder %s285, %s287
      %p294 = scmp.eq.s32.totalorder %s78, 2
      %p295 = por %p293, %p294
      %p296 = scmp.ne.s32.totalorder %s287, %s288
      %p297 = scmp.eq.s32.totalorder %s78, 0
      %p298 = por %p296, %p297
      %p299 = scmp.ne.s32.totalorder %s287, %s288
      %p300 = scmp.eq.s32.totalorder %s79, 2
      %p301 = por %p299, %p300
      %p303 = scmp.ne.s32.totalorder %s288, %s302
      %p304 = scmp.eq.s32.totalorder %s79, 0
      %p305 = por %p303, %p304
      %s307 = sadd.s32 %s306, 1
      %p310 = scmp.eq.s32.totalorder %s73, 2
      %p311 = scmp.ne.s32.totalorder %s306, %s308
      %p312 = scmp.eq.s32.totalorder %s73, 0
      %p313 = por %p311, %p312
      %p314 = scmp.ne.s32.totalorder %s306, %s308
      %p315 = scmp.eq.s32.totalorder %s78, 2
      %p316 = por %p314, %p315
      %p317 = scmp.ne.s32.totalorder %s308, %s309
      %p318 = scmp.eq.s32.totalorder %s78, 0
      %p319 = por %p317, %p318
      %p320 = scmp.ne.s32.totalorder %s308, %s309
      %p321 = scmp.eq.s32.totalorder %s79, 2
      %p322 = por %p320, %p321
      %p324 = scmp.ne.s32.totalorder %s309, %s323
      %p325 = scmp.eq.s32.totalorder %s79, 0
      %p326 = por %p324, %p325
      %s328 = sadd.s32 %s327, 1
      %p331 = scmp.eq.s32.totalorder %s73, 2
      %p332 = scmp.ne.s32.totalorder %s327, %s329
      %p333 = scmp.eq.s32.totalorder %s73, 0
      %p334 = por %p332, %p333
      %p335 = scmp.ne.s32.totalorder %s327, %s329
      %p336 = scmp.eq.s32.totalorder %s78, 2
      %p337 = por %p335, %p336
      %p338 = scmp.ne.s32.totalorder %s329, %s330
      %p339 = scmp.eq.s32.totalorder %s78, 0
      %p340 = por %p338, %p339
      %p341 = scmp.ne.s32.totalorder %s329, %s330
      %p342 = scmp.eq.s32.totalorder %s79, 2
      %p343 = por %p341, %p342
      %p345 = scmp.ne.s32.totalorder %s330, %s344
      %p346 = scmp.eq.s32.totalorder %s79, 0
      %p347 = por %p345, %p346
      %s349 = sadd.s32 %s348, 1
      %p352 = scmp.eq.s32.totalorder %s73, 2
      %p353 = scmp.ne.s32.totalorder %s348, %s350
      %p354 = scmp.eq.s32.totalorder %s73, 0
      %p355 = por %p353, %p354
      %p356 = scmp.ne.s32.totalorder %s348, %s350
      %p357 = scmp.eq.s32.totalorder %s78, 2
      %p358 = por %p356, %p357
      %p359 = scmp.ne.s32.totalorder %s350, %s351
      %p360 = scmp.eq.s32.totalorder %s78, 0
      %p361 = por %p359, %p360
      %p362 = scmp.ne.s32.totalorder %s350, %s351
      %p363 = scmp.eq.s32.totalorder %s79, 2
      %p364 = por %p362, %p363
      %p366 = scmp.ne.s32.totalorder %s351, %s365
      %p367 = scmp.eq.s32.totalorder %s79, 0
      %p368 = por %p366, %p367
      %s370 = sadd.s32 %s369, 1
      %p373 = scmp.eq.s32.totalorder %s73, 2
      %p374 = scmp.ne.s32.totalorder %s369, %s371
      %p375 = scmp.eq.s32.totalorder %s73, 0
      %p376 = por %p374, %p375
      %p377 = scmp.ne.s32.totalorder %s369, %s371
      %p378 = scmp.eq.s32.totalorder %s78, 2
      %p379 = por %p377, %p378
      %p380 = scmp.ne.s32.totalorder %s371, %s372
      %p381 = scmp.eq.s32.totalorder %s78, 0
      %p382 = por %p380, %p381
      %p383 = scmp.ne.s32.totalorder %s371, %s372
      %p384 = scmp.eq.s32.totalorder %s79, 2
      %p385 = por %p383, %p384
      %p387 = scmp.ne.s32.totalorder %s372, %s386
      %p388 = scmp.eq.s32.totalorder %s79, 0
      %p389 = por %p387, %p388
      %s391 = sadd.s32 %s390, 1
      %p394 = scmp.eq.s32.totalorder %s73, 2
      %p395 = scmp.ne.s32.totalorder %s390, %s392
      %p396 = scmp.eq.s32.totalorder %s73, 0
      %p397 = por %p395, %p396
      %p398 = scmp.ne.s32.totalorder %s390, %s392
      %p399 = scmp.eq.s32.totalorder %s78, 2
      %p400 = por %p398, %p399
      %p401 = scmp.ne.s32.totalorder %s392, %s393
      %p402 = scmp.eq.s32.totalorder %s78, 0
      %p403 = por %p401, %p402
      %p404 = scmp.ne.s32.totalorder %s392, %s393
      %p405 = scmp.eq.s32.totalorder %s79, 2
      %p406 = por %p404, %p405
      %p408 = scmp.ne.s32.totalorder %s393, %s407
      %p409 = scmp.eq.s32.totalorder %s79, 0
      %p410 = por %p408, %p409
      %s412 = sadd.s32 %s411, 1
      %p415 = scmp.eq.s32.totalorder %s73, 2
      %p416 = scmp.ne.s32.totalorder %s411, %s413
      %p417 = scmp.eq.s32.totalorder %s73, 0
      %p418 = por %p416, %p417
      %p419 = scmp.ne.s32.totalorder %s411, %s413
      %p420 = scmp.eq.s32.totalorder %s78, 2
      %p421 = por %p419, %p420
      %p422 = scmp.ne.s32.totalorder %s413, %s414
      %p423 = scmp.eq.s32.totalorder %s78, 0
      %p424 = por %p422, %p423
      %p425 = scmp.ne.s32.totalorder %s413, %s414
      %p426 = scmp.eq.s32.totalorder %s79, 2
      %p427 = por %p425, %p426
      %p429 = scmp.ne.s32.totalorder %s414, %s428
      %p430 = scmp.eq.s32.totalorder %s79, 0
      %p431 = por %p429, %p430
      %s433 = sadd.s32 %s432, 1
      %p436 = scmp.eq.s32.totalorder %s73, 2
      %p437 = scmp.ne.s32.totalorder %s432, %s434
      %p438 = scmp.eq.s32.totalorder %s73, 0
      %p439 = por %p437, %p438
      %p440 = scmp.ne.s32.totalorder %s432, %s434
      %p441 = scmp.eq.s32.totalorder %s78, 2
      %p442 = por %p440, %p441
      %p443 = scmp.ne.s32.totalorder %s434, %s435
      %p444 = scmp.eq.s32.totalorder %s78, 0
      %p445 = por %p443, %p444
      %p446 = scmp.ne.s32.totalorder %s434, %s435
      %p447 = scmp.eq.s32.totalorder %s79, 2
      %p448 = por %p446, %p447
      %p450 = scmp.ne.s32.totalorder %s435, %s449
      %p451 = scmp.eq.s32.totalorder %s79, 0
      %p452 = por %p450, %p451
      %s454 = sadd.s32 %s453, 1
      %p457 = scmp.eq.s32.totalorder %s73, 2
      %p458 = scmp.ne.s32.totalorder %s453, %s455
      %p459 = scmp.eq.s32.totalorder %s73, 0
      %p460 = por %p458, %p459
      %p461 = scmp.ne.s32.totalorder %s453, %s455
      %p462 = scmp.eq.s32.totalorder %s78, 2
      %p463 = por %p461, %p462
      %p464 = scmp.ne.s32.totalorder %s455, %s456
      %p465 = scmp.eq.s32.totalorder %s78, 0
      %p466 = por %p464, %p465
      %p467 = scmp.ne.s32.totalorder %s455, %s456
      %p468 = scmp.eq.s32.totalorder %s79, 2
      %p469 = por %p467, %p468
      %p471 = scmp.ne.s32.totalorder %s456, %s470
      %p472 = scmp.eq.s32.totalorder %s79, 0
      %p473 = por %p471, %p472
      %s475 = sadd.s32 %s474, 1
      %p478 = scmp.eq.s32.totalorder %s73, 2
      %p479 = scmp.ne.s32.totalorder %s474, %s476
      %p480 = scmp.eq.s32.totalorder %s73, 0
      %p481 = por %p479, %p480
      %p482 = scmp.ne.s32.totalorder %s474, %s476
      %p483 = scmp.eq.s32.totalorder %s78, 2
      %p484 = por %p482, %p483
      %p485 = scmp.ne.s32.totalorder %s476, %s477
      %p486 = scmp.eq.s32.totalorder %s78, 0
      %p487 = por %p485, %p486
      %p488 = scmp.ne.s32.totalorder %s476, %s477
      %p489 = scmp.eq.s32.totalorder %s79, 2
      %p490 = por %p488, %p489
      %p492 = scmp.ne.s32.totalorder %s477, %s491
      %p493 = scmp.eq.s32.totalorder %s79, 0
      %p494 = por %p492, %p493
      %s496 = sadd.s32 %s495, 1
      %p499 = scmp.eq.s32.totalorder %s73, 2
      %p500 = scmp.ne.s32.totalorder %s495, %s497
      %p501 = scmp.eq.s32.totalorder %s73, 0
      %p502 = por %p500, %p501
      %p503 = scmp.ne.s32.totalorder %s495, %s497
      %p504 = scmp.eq.s32.totalorder %s78, 2
      %p505 = por %p503, %p504
      %p506 = scmp.ne.s32.totalorder %s497, %s498
      %p507 = scmp.eq.s32.totalorder %s78, 0
      %p508 = por %p506, %p507
      %p509 = scmp.ne.s32.totalorder %s497, %s498
      %p510 = scmp.eq.s32.totalorder %s79, 2
      %p511 = por %p509, %p510
      %p513 = scmp.ne.s32.totalorder %s498, %s512
      %p514 = scmp.eq.s32.totalorder %s79, 0
      %p515 = por %p513, %p514
      %s517 = sadd.s32 %s516, 1
      %p520 = scmp.eq.s32.totalorder %s73, 2
      %p521 = scmp.ne.s32.totalorder %s516, %s518
      %p522 = scmp.eq.s32.totalorder %s73, 0
      %p523 = por %p521, %p522
      %p524 = scmp.ne.s32.totalorder %s516, %s518
      %p525 = scmp.eq.s32.totalorder %s78, 2
      %p526 = por %p524, %p525
      %p527 = scmp.ne.s32.totalorder %s518, %s519
      %p528 = scmp.eq.s32.totalorder %s78, 0
      %p529 = por %p527, %p528
      %p530 = scmp.ne.s32.totalorder %s518, %s519
      %p531 = scmp.eq.s32.totalorder %s79, 2
      %p532 = por %p530, %p531
      %p534 = scmp.ne.s32.totalorder %s519, %s533
      %p535 = scmp.eq.s32.totalorder %s79, 0
      %p536 = por %p534, %p535
      %s538 = sadd.s32 %s537, 1
      %p541 = scmp.eq.s32.totalorder %s73, 2
      %p542 = scmp.ne.s32.totalorder %s537, %s539
      %p543 = scmp.eq.s32.totalorder %s73, 0
      %p544 = por %p542, %p543
      %p545 = scmp.ne.s32.totalorder %s537, %s539
      %p546 = scmp.eq.s32.totalorder %s78, 2
      %p547 = por %p545, %p546
      %p548 = scmp.ne.s32.totalorder %s539, %s540
      %p549 = scmp.eq.s32.totalorder %s78, 0
      %p550 = por %p548, %p549
      %p551 = scmp.ne.s32.totalorder %s539, %s540
      %p552 = scmp.eq.s32.totalorder %s79, 2
      %p553 = por %p551, %p552
      %p555 = scmp.ne.s32.totalorder %s540, %s554
      %p556 = scmp.eq.s32.totalorder %s79, 0
      %p557 = por %p555, %p556
      %s559 = sadd.s32 %s558, 1
      %p562 = scmp.eq.s32.totalorder %s73, 2
      %p563 = scmp.ne.s32.totalorder %s558, %s560
      %p564 = scmp.eq.s32.totalorder %s73, 0
      %p565 = por %p563, %p564
      %p566 = scmp.ne.s32.totalorder %s558, %s560
      %p567 = scmp.eq.s32.totalorder %s78, 2
      %p568 = por %p566, %p567
      %p569 = scmp.ne.s32.totalorder %s560, %s561
      %p570 = scmp.eq.s32.totalorder %s78, 0
      %p571 = por %p569, %p570
      %p572 = scmp.ne.s32.totalorder %s560, %s561
      %p573 = scmp.eq.s32.totalorder %s79, 2
      %p574 = por %p572, %p573
      %p576 = scmp.ne.s32.totalorder %s561, %s575
      %p577 = scmp.eq.s32.totalorder %s79, 0
      %p578 = por %p576, %p577
      %s580 = sadd.s32 %s579, 1
      %p583 = scmp.eq.s32.totalorder %s73, 2
      %p584 = scmp.ne.s32.totalorder %s579, %s581
      %p585 = scmp.eq.s32.totalorder %s73, 0
      %p586 = por %p584, %p585
      %p587 = scmp.ne.s32.totalorder %s579, %s581
      %p588 = scmp.eq.s32.totalorder %s78, 2
      %p589 = por %p587, %p588
      %p590 = scmp.ne.s32.totalorder %s581, %s582
      %p591 = scmp.eq.s32.totalorder %s78, 0
      %p592 = por %p590, %p591
      %p593 = scmp.ne.s32.totalorder %s581, %s582
      %p594 = scmp.eq.s32.totalorder %s79, 2
      %p595 = por %p593, %p594
      %p597 = scmp.ne.s32.totalorder %s582, %s596
      %p598 = scmp.eq.s32.totalorder %s79, 0
      %p599 = por %p597, %p598
      %s601 = sadd.s32 %s600, 1
      %p604 = scmp.eq.s32.totalorder %s73, 2
      %p605 = scmp.ne.s32.totalorder %s600, %s602
      %p606 = scmp.eq.s32.totalorder %s73, 0
      %p607 = por %p605, %p606
      %p608 = scmp.ne.s32.totalorder %s600, %s602
      %p609 = scmp.eq.s32.totalorder %s78, 2
      %p610 = por %p608, %p609
      %p611 = scmp.ne.s32.totalorder %s602, %s603
      %p612 = scmp.eq.s32.totalorder %s78, 0
      %p613 = por %p611, %p612
      %p614 = scmp.ne.s32.totalorder %s602, %s603
      %p615 = scmp.eq.s32.totalorder %s79, 2
      %p616 = por %p614, %p615
      %p618 = scmp.ne.s32.totalorder %s603, %s617
      %p619 = scmp.eq.s32.totalorder %s79, 0
      %p620 = por %p618, %p619
      %s621 = ssub.s32 %s73, %s80
      %p622 = scmp.eq.s32.totalorder %s621, 0
      %s624 = sadd.s32 %s623, 1
      %s625 = scalar_select %p622, %s623, %s624
      %p628 = pneg %p622
      %p629 = scmp.eq.s32.totalorder %s73, 2
      %p630 = por %p628, %p629
      %p631 = scmp.ne.s32.totalorder %s623, %s626
      %p632 = scmp.eq.s32.totalorder %s73, 0
      %p633 = por %p631, %p632
      %p634 = scmp.ne.s32.totalorder %s623, %s626
      %p635 = scmp.eq.s32.totalorder %s78, 2
      %p636 = por %p634, %p635
      %p637 = scmp.ne.s32.totalorder %s626, %s627
      %p638 = scmp.eq.s32.totalorder %s78, 0
      %p639 = por %p637, %p638
      %p640 = scmp.ne.s32.totalorder %s626, %s627
      %p641 = scmp.eq.s32.totalorder %s79, 2
      %p642 = por %p640, %p641
      %p644 = scmp.ne.s32.totalorder %s627, %s643
      %p645 = scmp.eq.s32.totalorder %s79, 0
      %p646 = por %p644, %p645
      %s647 = ssub.s32 %s73, %s80
      %p648 = scmp.eq.s32.totalorder %s647, 0
      %s650 = sadd.s32 %s649, 1
      %s651 = scalar_select %p648, %s649, %s650
      %p654 = pneg %p648
      %p655 = scmp.eq.s32.totalorder %s73, 2
      %p656 = por %p654, %p655
      %p657 = scmp.ne.s32.totalorder %s649, %s652
      %p658 = scmp.eq.s32.totalorder %s73, 0
      %p659 = por %p657, %p658
      %p660 = scmp.ne.s32.totalorder %s649, %s652
      %p661 = scmp.eq.s32.totalorder %s78, 2
      %p662 = por %p660, %p661
      %p663 = scmp.ne.s32.totalorder %s652, %s653
      %p664 = scmp.eq.s32.totalorder %s78, 0
      %p665 = por %p663, %p664
      %p666 = scmp.ne.s32.totalorder %s652, %s653
      %p667 = scmp.eq.s32.totalorder %s79, 2
      %p668 = por %p666, %p667
      %p670 = scmp.ne.s32.totalorder %s653, %s669
      %p671 = scmp.eq.s32.totalorder %s79, 0
      %p672 = por %p670, %p671
      %s673 = ssub.s32 %s73, %s80
      %p674 = scmp.eq.s32.totalorder %s673, 0
      %s676 = sadd.s32 %s675, 1
      %s677 = scalar_select %p674, %s675, %s676
      %p680 = pneg %p674
      %p681 = scmp.eq.s32.totalorder %s73, 2
      %p682 = por %p680, %p681
      %p683 = scmp.ne.s32.totalorder %s675, %s678
      %p684 = scmp.eq.s32.totalorder %s73, 0
      %p685 = por %p683, %p684
      %p686 = scmp.ne.s32.totalorder %s675, %s678
      %p687 = scmp.eq.s32.totalorder %s78, 2
      %p688 = por %p686, %p687
      %p689 = scmp.ne.s32.totalorder %s678, %s679
      %p690 = scmp.eq.s32.totalorder %s78, 0
      %p691 = por %p689, %p690
      %p692 = scmp.ne.s32.totalorder %s678, %s679
      %p693 = scmp.eq.s32.totalorder %s79, 2
      %p694 = por %p692, %p693
      %p696 = scmp.ne.s32.totalorder %s679, %s695
      %p697 = scmp.eq.s32.totalorder %s79, 0
      %p698 = por %p696, %p697
      %s699 = ssub.s32 %s73, %s80
      %p700 = scmp.eq.s32.totalorder %s699, 0
      %s702 = sadd.s32 %s701, 1
      %s703 = scalar_select %p700, %s701, %s702
      %p706 = pneg %p700
      %p707 = scmp.eq.s32.totalorder %s73, 2
      %p708 = por %p706, %p707
      %p709 = scmp.ne.s32.totalorder %s701, %s704
      %p710 = scmp.eq.s32.totalorder %s73, 0
      %p711 = por %p709, %p710
      %p712 = scmp.ne.s32.totalorder %s701, %s704
      %p713 = scmp.eq.s32.totalorder %s78, 2
      %p714 = por %p712, %p713
      %p715 = scmp.ne.s32.totalorder %s704, %s705
      %p716 = scmp.eq.s32.totalorder %s78, 0
      %p717 = por %p715, %p716
      %p718 = scmp.ne.s32.totalorder %s704, %s705
      %p719 = scmp.eq.s32.totalorder %s79, 2
      %p720 = por %p718, %p719
      %p722 = scmp.ne.s32.totalorder %s705, %s721
      %p723 = scmp.eq.s32.totalorder %s79, 0
      %p724 = por %p722, %p723
      %s725 = ssub.s32 %s73, %s80
      %p726 = scmp.eq.s32.totalorder %s725, 0
      %s728 = sadd.s32 %s727, 1
      %s729 = scalar_select %p726, %s727, %s728
      %p732 = pneg %p726
      %p733 = scmp.eq.s32.totalorder %s73, 2
      %p734 = por %p732, %p733
      %p735 = scmp.ne.s32.totalorder %s727, %s730
      %p736 = scmp.eq.s32.totalorder %s73, 0
      %p737 = por %p735, %p736
      %p738 = scmp.ne.s32.totalorder %s727, %s730
      %p739 = scmp.eq.s32.totalorder %s78, 2
      %p740 = por %p738, %p739
      %p741 = scmp.ne.s32.totalorder %s730, %s731
      %p742 = scmp.eq.s32.totalorder %s78, 0
      %p743 = por %p741, %p742
      %p744 = scmp.ne.s32.totalorder %s730, %s731
      %p745 = scmp.eq.s32.totalorder %s79, 2
      %p746 = por %p744, %p745
      %p748 = scmp.ne.s32.totalorder %s731, %s747
      %p749 = scmp.eq.s32.totalorder %s79, 0
      %p750 = por %p748, %p749
      %p751 = scmp.le.s32.totalorder 1, %s73
      %p752 = scmp.lt.s32.totalorder %s73, 4
      %p753 = pnand %p751, %p752
      %p754 = pneg %p753
      // Predicated region
      $region9: #{hoiclip_forward.3} parent=5 // pred_check
        _
      $region10: #{hoiclip_forward.3} parent=5 // pred_check_branch
        %756 = sbr.rel (%p753) target = $region12
      $region11: #{hoiclip_forward.3} parent=5 // pred_region
        %s757 = ssub.s32 %s73, 1
        // Predicated region
        $region13: #{hoiclip_forward.3} parent=11 // pred_check
          %p758 = pneg %p172
        $region14: #{hoiclip_forward.3} parent=11 // pred_check_branch
          %760 = sbr.rel (%p758) target = $region16
        $region15: #{hoiclip_forward.3} parent=11 // pred_region
          _
        $region16: #{hoiclip_forward.3} parent=11 // pred_fallthru
          _
        // Predicated region
        $region17: #{hoiclip_forward.3} parent=11 // pred_check
          %p761 = pneg %p193
        $region18: #{hoiclip_forward.3} parent=11 // pred_check_branch
          %763 = sbr.rel (%p761) target = $region20
        $region19: #{hoiclip_forward.3} parent=11 // pred_region
          _
        $region20: #{hoiclip_forward.3} parent=11 // pred_fallthru
          _
        // Predicated region
        $region21: #{hoiclip_forward.3} parent=11 // pred_check
          %p764 = pneg %p214
        $region22: #{hoiclip_forward.3} parent=11 // pred_check_branch
          %766 = sbr.rel (%p764) target = $region24
        $region23: #{hoiclip_forward.3} parent=11 // pred_region
          _
        $region24: #{hoiclip_forward.3} parent=11 // pred_fallthru
          _
        // Predicated region
        $region25: #{hoiclip_forward.3} parent=11 // pred_check
          %p767 = pneg %p235
        $region26: #{hoiclip_forward.3} parent=11 // pred_check_branch
          %769 = sbr.rel (%p767) target = $region28
        $region27: #{hoiclip_forward.3} parent=11 // pred_region
          %771 = vsyncadd [#allocation6], 0
          %s773 = sshll.u32 %s13, 4
          %s774 = int_to_ptr.hbm [resolvable:$true] %s773
          %s775 = sshll.u32 [#allocation5], 4
          %s776 = int_to_ptr.vmem [resolvable:$true] %s775
          %778 = dma.hbm_to_vmem [thread:$0]  %s774, 16, %s776, [#allocation6]
        $region28: #{hoiclip_forward.3} parent=11 // pred_fallthru
          _
        // Predicated region
        $region29: #{hoiclip_forward.3} parent=11 // pred_check
          %p779 = pneg %p256
        $region30: #{hoiclip_forward.3} parent=11 // pred_check_branch
          %781 = sbr.rel (%p779) target = $region32
        $region31: #{hoiclip_forward.3} parent=11 // pred_region
          _
        $region32: #{hoiclip_forward.3} parent=11 // pred_fallthru
          _
        // Predicated region
        $region33: #{hoiclip_forward.3} parent=11 // pred_check
          %p782 = pneg %p277
        $region34: #{hoiclip_forward.3} parent=11 // pred_check_branch
          %784 = sbr.rel (%p782) target = $region36
        $region35: #{hoiclip_forward.3} parent=11 // pred_region
          %786 = vsyncadd [#allocation8], 0
          %s788 = sshll.u32 %s17, 4
          %s789 = int_to_ptr.hbm [resolvable:$true] %s788
          %s790 = sshll.u32 [#allocation7], 4
          %s791 = int_to_ptr.vmem [resolvable:$true] %s790
          %793 = dma.hbm_to_vmem [thread:$0]  %s789, 16, %s791, [#allocation8]
        $region36: #{hoiclip_forward.3} parent=11 // pred_fallthru
          _
        // Predicated region
        $region37: #{hoiclip_forward.3} parent=11 // pred_check
          %p794 = pneg %p298
        $region38: #{hoiclip_forward.3} parent=11 // pred_check_branch
          %796 = sbr.rel (%p794) target = $region40
        $region39: #{hoiclip_forward.3} parent=11 // pred_region
          _
        $region40: #{hoiclip_forward.3} parent=11 // pred_fallthru
          _
        // Predicated region
        $region41: #{hoiclip_forward.3} parent=11 // pred_check
          %p797 = pneg %p319
        $region42: #{hoiclip_forward.3} parent=11 // pred_check_branch
          %799 = sbr.rel (%p797) target = $region44
        $region43: #{hoiclip_forward.3} parent=11 // pred_region
          _
        $region44: #{hoiclip_forward.3} parent=11 // pred_fallthru
          _
        // Predicated region
        $region45: #{hoiclip_forward.3} parent=11 // pred_check
          %p800 = pneg %p340
        $region46: #{hoiclip_forward.3} parent=11 // pred_check_branch
          %802 = sbr.rel (%p800) target = $region48
        $region47: #{hoiclip_forward.3} parent=11 // pred_region
          _
        $region48: #{hoiclip_forward.3} parent=11 // pred_fallthru
          _
        // Predicated region
        $region49: #{hoiclip_forward.3} parent=11 // pred_check
          %p803 = pneg %p361
        $region50: #{hoiclip_forward.3} parent=11 // pred_check_branch
          %805 = sbr.rel (%p803) target = $region52
        $region51: #{hoiclip_forward.3} parent=11 // pred_region
          %807 = vsyncadd [#allocation8], 0
          %s809 = sshll.u32 %s25, 4
          %s810 = int_to_ptr.hbm [resolvable:$true] %s809
          %s811 = sshll.u32 [#allocation9], 4
          %s812 = int_to_ptr.vmem [resolvable:$true] %s811
          %814 = dma.hbm_to_vmem [thread:$0]  %s810, 16, %s812, [#allocation8]
        $region52: #{hoiclip_forward.3} parent=11 // pred_fallthru
          _
        // Predicated region
        $region53: #{hoiclip_forward.3} parent=11 // pred_check
          %p815 = pneg %p382
        $region54: #{hoiclip_forward.3} parent=11 // pred_check_branch
          %817 = sbr.rel (%p815) target = $region56
        $region55: #{hoiclip_forward.3} parent=11 // pred_region
          _
        $region56: #{hoiclip_forward.3} parent=11 // pred_fallthru
          _
        // Predicated region
        $region57: #{hoiclip_forward.3} parent=11 // pred_check
          %p818 = pneg %p403
        $region58: #{hoiclip_forward.3} parent=11 // pred_check_branch
          %820 = sbr.rel (%p818) target = $region60
        $region59: #{hoiclip_forward.3} parent=11 // pred_region
          %822 = vsyncadd [#allocation11], 0
          %s824 = sshll.u32 %s29, 4
          %s825 = int_to_ptr.hbm [resolvable:$true] %s824
          %s826 = sshll.u32 [#allocation10], 4
          %s827 = int_to_ptr.vmem [resolvable:$true] %s826
          %829 = dma.hbm_to_vmem [thread:$0]  %s825, 16, %s827, [#allocation11]
        $region60: #{hoiclip_forward.3} parent=11 // pred_fallthru
          _
        // Predicated region
        $region61: #{hoiclip_forward.3} parent=11 // pred_check
          %p830 = pneg %p424
        $region62: #{hoiclip_forward.3} parent=11 // pred_check_branch
          %832 = sbr.rel (%p830) target = $region64
        $region63: #{hoiclip_forward.3} parent=11 // pred_region
          %834 = vsyncadd [#allocation11], 0
          %s836 = sshll.u32 %s31, 4
          %s837 = int_to_ptr.hbm [resolvable:$true] %s836
          %s838 = sshll.u32 [#allocation12], 4
          %s839 = int_to_ptr.vmem [resolvable:$true] %s838
          %841 = dma.hbm_to_vmem [thread:$0]  %s837, 16, %s839, [#allocation11]
        $region64: #{hoiclip_forward.3} parent=11 // pred_fallthru
          _
        // Predicated region
        $region65: #{hoiclip_forward.3} parent=11 // pred_check
          %p842 = pneg %p445
        $region66: #{hoiclip_forward.3} parent=11 // pred_check_branch
          %844 = sbr.rel (%p842) target = $region68
        $region67: #{hoiclip_forward.3} parent=11 // pred_region
          %846 = vsyncadd [#allocation14], 0
          %s848 = sshll.u32 %s33, 4
          %s849 = int_to_ptr.hbm [resolvable:$true] %s848
          %s850 = sshll.u32 [#allocation13], 4
          %s851 = int_to_ptr.vmem [resolvable:$true] %s850
          %853 = dma.hbm_to_vmem [thread:$0]  %s849, 16, %s851, [#allocation14]
        $region68: #{hoiclip_forward.3} parent=11 // pred_fallthru
          _
        // Predicated region
        $region69: #{hoiclip_forward.3} parent=11 // pred_check
          %p854 = pneg %p466
        $region70: #{hoiclip_forward.3} parent=11 // pred_check_branch
          %856 = sbr.rel (%p854) target = $region72
        $region71: #{hoiclip_forward.3} parent=11 // pred_region
          %858 = vsyncadd [#allocation14], 0
          %s859 = sshll.u32 %s35, 4
          %s860 = int_to_ptr.hbm [resolvable:$true] %s859
          %s861 = sshll.u32 [#allocation15], 4
          %s862 = int_to_ptr.vmem [resolvable:$true] %s861
          %867 = dma.hbm_to_vmem [thread:$0]  %s860, 1024, %s862, [#allocation14], 64, 64, 4
        $region72: #{hoiclip_forward.3} parent=11 // pred_fallthru
          _
        // Predicated region
        $region73: #{hoiclip_forward.3} parent=11 // pred_check
          %p868 = pneg %p487
        $region74: #{hoiclip_forward.3} parent=11 // pred_check_branch
          %870 = sbr.rel (%p868) target = $region76
        $region75: #{hoiclip_forward.3} parent=11 // pred_region
          _
        $region76: #{hoiclip_forward.3} parent=11 // pred_fallthru
          _
        // Predicated region
        $region77: #{hoiclip_forward.3} parent=11 // pred_check
          %p871 = pneg %p508
        $region78: #{hoiclip_forward.3} parent=11 // pred_check_branch
          %873 = sbr.rel (%p871) target = $region80
        $region79: #{hoiclip_forward.3} parent=11 // pred_region
          %875 = vsyncadd [#allocation17], 0
          %s877 = sshll.u32 %s39, 4
          %s878 = int_to_ptr.hbm [resolvable:$true] %s877
          %s879 = sshll.u32 [#allocation16], 4
          %s880 = int_to_ptr.vmem [resolvable:$true] %s879
          %882 = dma.hbm_to_vmem [thread:$0]  %s878, 16, %s880, [#allocation17]
        $region80: #{hoiclip_forward.3} parent=11 // pred_fallthru
          _
        // Predicated region
        $region81: #{hoiclip_forward.3} parent=11 // pred_check
          %p883 = pneg %p529
        $region82: #{hoiclip_forward.3} parent=11 // pred_check_branch
          %885 = sbr.rel (%p883) target = $region84
        $region83: #{hoiclip_forward.3} parent=11 // pred_region
          %887 = vsyncadd [#allocation17], 0
          %s888 = sshll.u32 %s41, 4
          %s889 = int_to_ptr.hbm [resolvable:$true] %s888
          %s890 = sshll.u32 [#allocation18], 4
          %s891 = int_to_ptr.vmem [resolvable:$true] %s890
          %896 = dma.hbm_to_vmem [thread:$0]  %s889, 512, %s891, [#allocation17], 64, 64, 4
        $region84: #{hoiclip_forward.3} parent=11 // pred_fallthru
          _
        // Predicated region
        $region85: #{hoiclip_forward.3} parent=11 // pred_check
          %p897 = pneg %p550
        $region86: #{hoiclip_forward.3} parent=11 // pred_check_branch
          %899 = sbr.rel (%p897) target = $region88
        $region87: #{hoiclip_forward.3} parent=11 // pred_region
          %901 = vsyncadd [#allocation20], 0
          %s903 = sshll.u32 %s43, 4
          %s904 = int_to_ptr.hbm [resolvable:$true] %s903
          %s905 = sshll.u32 [#allocation19], 4
          %s906 = int_to_ptr.vmem [resolvable:$true] %s905
          %908 = dma.hbm_to_vmem [thread:$0]  %s904, 16, %s906, [#allocation20]
        $region88: #{hoiclip_forward.3} parent=11 // pred_fallthru
          _
        // Predicated region
        $region89: #{hoiclip_forward.3} parent=11 // pred_check
          %p909 = pneg %p571
        $region90: #{hoiclip_forward.3} parent=11 // pred_check_branch
          %911 = sbr.rel (%p909) target = $region92
        $region91: #{hoiclip_forward.3} parent=11 // pred_region
          %913 = vsyncadd [#allocation20], 0
          %s914 = sshll.u32 %s45, 4
          %s915 = int_to_ptr.hbm [resolvable:$true] %s914
          %s916 = sshll.u32 [#allocation21], 4
          %s917 = int_to_ptr.vmem [resolvable:$true] %s916
          %922 = dma.hbm_to_vmem [thread:$0]  %s915, 512, %s917, [#allocation20], 64, 64, 4
        $region92: #{hoiclip_forward.3} parent=11 // pred_fallthru
          _
        // Predicated region
        $region93: #{hoiclip_forward.3} parent=11 // pred_check
          %p923 = pneg %p592
        $region94: #{hoiclip_forward.3} parent=11 // pred_check_branch
          %925 = sbr.rel (%p923) target = $region96
        $region95: #{hoiclip_forward.3} parent=11 // pred_region
          %927 = vsyncadd [#allocation23], 0
          %s929 = sshll.u32 %s47, 4
          %s930 = int_to_ptr.hbm [resolvable:$true] %s929
          %s931 = sshll.u32 [#allocation22], 4
          %s932 = int_to_ptr.vmem [resolvable:$true] %s931
          %934 = dma.hbm_to_vmem [thread:$0]  %s930, 16, %s932, [#allocation23]
        $region96: #{hoiclip_forward.3} parent=11 // pred_fallthru
          _
        // Predicated region
        $region97: #{hoiclip_forward.3} parent=11 // pred_check
          %p935 = pneg %p613
        $region98: #{hoiclip_forward.3} parent=11 // pred_check_branch
          %937 = sbr.rel (%p935) target = $region100
        $region99: #{hoiclip_forward.3} parent=11 // pred_region
          _
        $region100: #{hoiclip_forward.3} parent=11 // pred_fallthru
          _
      $region12: #{hoiclip_forward.3} parent=5 // pred_fallthru
        _
      %p938 = scmp.lt.s32.totalorder %s73, 3
      // Predicated region
      $region101: #{hoiclip_forward.3} parent=5 // pred_check
        %p939 = pneg %p938
      $region102: #{hoiclip_forward.3} parent=5 // pred_check_branch
        %941 = sbr.rel (%p939) target = $region104
      $region103: #{hoiclip_forward.3} parent=5 // pred_region
        // Predicated region
        $region105: #{hoiclip_forward.3} parent=103 // pred_check
          %p942 = pneg %p93
        $region106: #{hoiclip_forward.3} parent=103 // pred_check_branch
          %944 = sbr.rel (%p942) target = $region108
        $region107: #{hoiclip_forward.3} parent=103 // pred_region
          %s945 = smul.u32 2, %s73
          %p946 = scmp.lt.s32.totalorder %s945, 5
          %s947 = scalar_select %p946, %s945, 5
          %s948 = smul.addr %s947, 4
          %s949 = scalar_lea.vmem %s1, %s948
          %s950 = smul.u32 2, %s73
        $region108: #{hoiclip_forward.3} parent=103 // pred_fallthru
          _
        // Predicated region
        $region109: #{hoiclip_forward.3} parent=103 // pred_check
          %p951 = pneg %p119
        $region110: #{hoiclip_forward.3} parent=103 // pred_check_branch
          %953 = sbr.rel (%p951) target = $region112
        $region111: #{hoiclip_forward.3} parent=103 // pred_region
          %s954 = smul.u32 2, %s73
          %p955 = scmp.lt.s32.totalorder %s954, 5
          %s956 = scalar_select %p955, %s954, 5
          %s957 = smul.addr %s956, 4
          %s958 = scalar_lea.vmem %s3, %s957
          %s959 = smul.u32 2, %s73
        $region112: #{hoiclip_forward.3} parent=103 // pred_fallthru
          _
        // Predicated region
        $region113: #{hoiclip_forward.3} parent=103 // pred_check
          %p960 = pneg %p145
        $region114: #{hoiclip_forward.3} parent=103 // pred_check_branch
          %962 = sbr.rel (%p960) target = $region116
        $region115: #{hoiclip_forward.3} parent=103 // pred_region
          %s963 = smul.u32 2, %s73
          %p964 = scmp.lt.s32.totalorder %s963, 5
          %s965 = scalar_select %p964, %s963, 5
          %s966 = smul.addr %s965, 8
          %s967 = scalar_lea.vmem %s5, %s966
          %s968 = smul.u32 2, %s73
        $region116: #{hoiclip_forward.3} parent=103 // pred_fallthru
          _
      $region104: #{hoiclip_forward.3} parent=5 // pred_fallthru
        _
      %p969 = scmp.le.s32.totalorder 1, %s73
      %p970 = scmp.lt.s32.totalorder %s73, 4
      %p971 = pnand %p969, %p970
      %p972 = pneg %p971
      // Predicated region
      $region117: #{hoiclip_forward.3} parent=5 // pred_check
        _
      $region118: #{hoiclip_forward.3} parent=5 // pred_check_branch
        %974 = sbr.rel (%p971) target = $region120
      $region119: #{hoiclip_forward.3} parent=5 // pred_region
        %s975 = ssub.s32 %s73, 1
        // Predicated region
        $region121: #{hoiclip_forward.3} parent=119 // pred_check
          %p976 = pneg %p235
        $region122: #{hoiclip_forward.3} parent=119 // pred_check_branch
          %978 = sbr.rel (%p976) target = $region124
        $region123: #{hoiclip_forward.3} parent=119 // pred_region
          %980 = dma.done [#allocation6], 16
        $region124: #{hoiclip_forward.3} parent=119 // pred_fallthru
          _
        // Predicated region
        $region125: #{hoiclip_forward.3} parent=119 // pred_check
          %p981 = pneg %p277
        $region126: #{hoiclip_forward.3} parent=119 // pred_check_branch
          %983 = sbr.rel (%p981) target = $region128
        $region127: #{hoiclip_forward.3} parent=119 // pred_region
          %985 = dma.done [#allocation8], 16
        $region128: #{hoiclip_forward.3} parent=119 // pred_fallthru
          _
        // Predicated region
        $region129: #{hoiclip_forward.3} parent=119 // pred_check
          %p986 = pneg %p361
        $region130: #{hoiclip_forward.3} parent=119 // pred_check_branch
          %988 = sbr.rel (%p986) target = $region132
        $region131: #{hoiclip_forward.3} parent=119 // pred_region
          %990 = dma.done [#allocation8], 16
        $region132: #{hoiclip_forward.3} parent=119 // pred_fallthru
          _
        // Predicated region
        $region133: #{hoiclip_forward.3} parent=119 // pred_check
          %p991 = pneg %p403
        $region134: #{hoiclip_forward.3} parent=119 // pred_check_branch
          %993 = sbr.rel (%p991) target = $region136
        $region135: #{hoiclip_forward.3} parent=119 // pred_region
          %995 = dma.done [#allocation11], 16
        $region136: #{hoiclip_forward.3} parent=119 // pred_fallthru
          _
        // Predicated region
        $region137: #{hoiclip_forward.3} parent=119 // pred_check
          %p996 = pneg %p424
        $region138: #{hoiclip_forward.3} parent=119 // pred_check_branch
          %998 = sbr.rel (%p996) target = $region140
        $region139: #{hoiclip_forward.3} parent=119 // pred_region
          %1000 = dma.done [#allocation11], 16
        $region140: #{hoiclip_forward.3} parent=119 // pred_fallthru
          _
        // Predicated region
        $region141: #{hoiclip_forward.3} parent=119 // pred_check
          %p1001 = pneg %p445
        $region142: #{hoiclip_forward.3} parent=119 // pred_check_branch
          %1003 = sbr.rel (%p1001) target = $region144
        $region143: #{hoiclip_forward.3} parent=119 // pred_region
          %1005 = dma.done [#allocation14], 16
        $region144: #{hoiclip_forward.3} parent=119 // pred_fallthru
          _
        // Predicated region
        $region145: #{hoiclip_forward.3} parent=119 // pred_check
          %p1006 = pneg %p466
        $region146: #{hoiclip_forward.3} parent=119 // pred_check_branch
          %1008 = sbr.rel (%p1006) target = $region148
        $region147: #{hoiclip_forward.3} parent=119 // pred_region
          %1010 = dma.done [#allocation14], 1024
        $region148: #{hoiclip_forward.3} parent=119 // pred_fallthru
          _
        // Predicated region
        $region149: #{hoiclip_forward.3} parent=119 // pred_check
          %p1011 = pneg %p508
        $region150: #{hoiclip_forward.3} parent=119 // pred_check_branch
          %1013 = sbr.rel (%p1011) target = $region152
        $region151: #{hoiclip_forward.3} parent=119 // pred_region
          %1015 = dma.done [#allocation17], 16
        $region152: #{hoiclip_forward.3} parent=119 // pred_fallthru
          _
        // Predicated region
        $region153: #{hoiclip_forward.3} parent=119 // pred_check
          %p1016 = pneg %p529
        $region154: #{hoiclip_forward.3} parent=119 // pred_check_branch
          %1018 = sbr.rel (%p1016) target = $region156
        $region155: #{hoiclip_forward.3} parent=119 // pred_region
          %1020 = dma.done [#allocation17], 512
        $region156: #{hoiclip_forward.3} parent=119 // pred_fallthru
          _
        // Predicated region
        $region157: #{hoiclip_forward.3} parent=119 // pred_check
          %p1021 = pneg %p550
        $region158: #{hoiclip_forward.3} parent=119 // pred_check_branch
          %1023 = sbr.rel (%p1021) target = $region160
        $region159: #{hoiclip_forward.3} parent=119 // pred_region
          %1025 = dma.done [#allocation20], 16
        $region160: #{hoiclip_forward.3} parent=119 // pred_fallthru
          _
        // Predicated region
        $region161: #{hoiclip_forward.3} parent=119 // pred_check
          %p1026 = pneg %p571
        $region162: #{hoiclip_forward.3} parent=119 // pred_check_branch
          %1028 = sbr.rel (%p1026) target = $region164
        $region163: #{hoiclip_forward.3} parent=119 // pred_region
          %1030 = dma.done [#allocation20], 512
        $region164: #{hoiclip_forward.3} parent=119 // pred_fallthru
          _
        // Predicated region
        $region165: #{hoiclip_forward.3} parent=119 // pred_check
          %p1031 = pneg %p592
        $region166: #{hoiclip_forward.3} parent=119 // pred_check_branch
          %1033 = sbr.rel (%p1031) target = $region168
        $region167: #{hoiclip_forward.3} parent=119 // pred_region
          %1035 = dma.done [#allocation23], 16
        $region168: #{hoiclip_forward.3} parent=119 // pred_fallthru
          _
        %s1036 = smul.u32 2, %s78
        %p1037 = scmp.lt.s32.totalorder %s1036, 5
        %s1038 = scalar_select %p1037, %s1036, 5
        %s1039 = smul.addr %s1038, 4
        %s1040 = scalar_lea.vmem %s1, %s1039
        %p1041 = pneg %p99
        %p1042 = pneg %p96
        %s1043 = smul.u32 2, %s78
        %p1044 = scmp.lt.s32.totalorder %s1043, 5
        %s1045 = scalar_select %p1044, %s1043, 5
        %s1046 = smul.addr %s1045, 4
        %s1047 = scalar_lea.vmem %s3, %s1046
        %p1048 = pneg %p125
        %p1049 = pneg %p122
        %s1050 = smul.u32 2, %s78
        %p1051 = scmp.lt.s32.totalorder %s1050, 5
        %s1052 = scalar_select %p1051, %s1050, 5
        %s1053 = smul.addr %s1052, 8
        %s1054 = scalar_lea.vmem %s5, %s1053
        %p1055 = pneg %p151
        %p1056 = pneg %p148
        %p1057 = pneg %p172
        %p1058 = pneg %p169
        %p1059 = pneg %p193
        %p1060 = pneg %p190
        %p1061 = pneg %p214
        %p1062 = pneg %p211
        %p1063 = pneg %p235
        %p1064 = pneg %p232
        %p1065 = pneg %p256
        %p1066 = pneg %p253
        %p1067 = pneg %p277
        %p1068 = pneg %p274
        %p1069 = pneg %p298
        %p1070 = pneg %p295
        %p1071 = pneg %p319
        %p1072 = pneg %p316
        %p1073 = pneg %p340
        %p1074 = pneg %p337
        %p1075 = pneg %p361
        %p1076 = pneg %p358
        %p1077 = pneg %p382
        %p1078 = pneg %p379
        %p1079 = pneg %p403
        %p1080 = pneg %p400
        %p1081 = pneg %p424
        %p1082 = pneg %p421
        %p1083 = pneg %p445
        %p1084 = pneg %p442
        %p1085 = pneg %p466
        %p1086 = pneg %p463
        %p1087 = pneg %p487
        %p1088 = pneg %p484
        %p1089 = pneg %p508
        %p1090 = pneg %p505
        %p1091 = pneg %p529
        %p1092 = pneg %p526
        %p1093 = pneg %p550
        %p1094 = pneg %p547
        %p1095 = pneg %p571
        %p1096 = pneg %p568
        %p1097 = pneg %p592
        %p1098 = pneg %p589
        %p1099 = pneg %p613
        %p1100 = pneg %p610
        %p1101 = pneg %p639
        %p1102 = pneg %p636
        %s1103 = smul.u32 2, %s78
        %p1104 = scmp.lt.s32.totalorder %s1103, 5
        %s1105 = scalar_select %p1104, %s1103, 5
        %s1106 = smul.addr %s1105, 8
        %s1107 = scalar_lea.vmem %s51, %s1106
        %p1108 = pneg %p665
        %p1109 = pneg %p662
        %s1110 = smul.u32 2, %s78
        %p1111 = scmp.lt.s32.totalorder %s1110, 5
        %s1112 = scalar_select %p1111, %s1110, 5
        %s1113 = smul.addr %s1112, 8
        %s1114 = scalar_lea.vmem %s53, %s1113
        %p1115 = pneg %p691
        %p1116 = pneg %p688
        %s1117 = smul.u32 2, %s78
        %p1118 = scmp.lt.s32.totalorder %s1117, 5
        %s1119 = scalar_select %p1118, %s1117, 5
        %s1120 = smul.addr %s1119, 8
        %s1121 = scalar_lea.vmem %s55, %s1120
        %p1122 = pneg %p717
        %p1123 = pneg %p714
        %s1124 = smul.u32 2, %s78
        %p1125 = scmp.lt.s32.totalorder %s1124, 5
        %s1126 = scalar_select %p1125, %s1124, 5
        %s1127 = smul.addr %s1126, 8
        %s1128 = scalar_lea.vmem %s57, %s1127
        %p1129 = pneg %p743
        %p1130 = pneg %p740
        %s1131 = smul.u32 2, %s78
        %p1132 = scmp.lt.s32.totalorder %s1131, 5
        %s1133 = scalar_select %p1132, %s1131, 5
        %s1134 = smul.addr %s1133, 8
        %s1135 = scalar_lea.vmem %s59, %s1134
        %s1136 = smul.u32 2, %s78
        %p1137 = scmp.lt.s32.totalorder %s1136, 5
        %s1138 = scalar_select %p1137, %s1136, 5
        %s1139 = smul.addr %s1138, 4
        %s1140 = scalar_lea.vmem %s1, %s1139
        %s1141 = smul.u32 2, %s78
        %s1142 = smul.u32 2, %s78
        %p1143 = scmp.lt.s32.totalorder %s1142, 5
        %s1144 = scalar_select %p1143, %s1142, 5
        %s1145 = smul.addr %s1144, 4
        %s1146 = scalar_lea.vmem %s3, %s1145
        %s1147 = smul.u32 2, %s78
        %s1148 = smul.u32 2, %s78
        %p1149 = scmp.lt.s32.totalorder %s1148, 5
        %s1150 = scalar_select %p1149, %s1148, 5
        %s1151 = smul.addr %s1150, 8
        %s1152 = scalar_lea.vmem %s5, %s1151
        %s1153 = smul.u32 2, %s78
        %s1154 = smul.u32 2, %s78
        %p1155 = scmp.lt.s32.totalorder %s1154, 5
        %s1156 = scalar_select %p1155, %s1154, 5
        %s1157 = smul.addr %s1156, 8
        %s1158 = scalar_lea.vmem %s51, %s1157
        %s1159 = smul.u32 2, %s78
        %s1160 = smul.u32 2, %s78
        %p1161 = scmp.lt.s32.totalorder %s1160, 5
        %s1162 = scalar_select %p1161, %s1160, 5
        %s1163 = smul.addr %s1162, 8
        %s1164 = scalar_lea.vmem %s53, %s1163
        %s1165 = smul.u32 2, %s78
        %s1166 = smul.u32 2, %s78
        %p1167 = scmp.lt.s32.totalorder %s1166, 5
        %s1168 = scalar_select %p1167, %s1166, 5
        %s1169 = smul.addr %s1168, 8
        %s1170 = scalar_lea.vmem %s55, %s1169
        %s1171 = smul.u32 2, %s78
        %s1172 = smul.u32 2, %s78
        %p1173 = scmp.lt.s32.totalorder %s1172, 5
        %s1174 = scalar_select %p1173, %s1172, 5
        %s1175 = smul.addr %s1174, 8
        %s1176 = scalar_lea.vmem %s57, %s1175
        %s1177 = smul.u32 2, %s78
        %s1178 = smul.u32 2, %s78
        %p1179 = scmp.lt.s32.totalorder %s1178, 5
        %s1180 = scalar_select %p1179, %s1178, 5
        %s1181 = smul.addr %s1180, 8
        %s1182 = scalar_lea.vmem %s59, %s1181
        %s1183 = smul.u32 2, %s78
        %v1185 = vld [vmem:[%s1140] sm:$0xf]
        %v1186 = vld [vmem:[%s1140 + $0x4] sm:$0xf]
        %v1187 = vld [vmem:[%s7] sm:$0xf]
        %v1188 = vld [vmem:[%s7 + $0x4] sm:$0xf]
        %v1189 = vld [vmem:[%s7 + $0x8] sm:$0xf]
        %v1190 = vld [vmem:[%s7 + $0xc] sm:$0xf]
        %v1191 = vld [vmem:[%s7 + $0x10] sm:$0xf]
        %v1192 = vld [vmem:[%s7 + $0x14] sm:$0xf]
        %v1193 = vld [vmem:[%s7 + $0x18] sm:$0xf]
        %v1194 = vld [vmem:[%s7 + $0x1c] sm:$0xf]
        %v1195 = vld [vmem:[%s7 + $0x20] sm:$0xf]
        %v1196 = vld [vmem:[%s7 + $0x24] sm:$0xf]
        %v1197 = vld [vmem:[%s7 + $0x28] sm:$0xf]
        %v1198 = vld [vmem:[%s7 + $0x2c] sm:$0xf]
        %v1199 = vld [vmem:[%s7 + $0x30] sm:$0xf]
        %v1200 = vld [vmem:[%s7 + $0x34] sm:$0xf]
        %v1201 = vld [vmem:[%s7 + $0x38] sm:$0xf]
        %v1202 = vld [vmem:[%s7 + $0x3c] sm:$0xf]
        %v1203 = vld [vmem:[%s9] sm:$0x1]
        %v1205 = vperm.slane %v1203, 0
        %v1209 = vunpack.c.l.b16 %v1185
        %v1210 = vunpack.c.l.b16 %v1186
        %v1211 = vpack.c.b16 %v1210, %v1209
        %v1229 = vunpack.c.l.b16 %v1187
        %v1230 = vunpack.c.l.b16 %v1188
        %v1231 = vunpack.c.l.b16 %v1189
        %v1232 = vunpack.c.l.b16 %v1190
        %v1233 = vunpack.c.l.b16 %v1191
        %v1234 = vunpack.c.l.b16 %v1192
        %v1235 = vunpack.c.l.b16 %v1193
        %v1236 = vunpack.c.l.b16 %v1194
        %v1237 = vunpack.c.l.b16 %v1195
        %v1238 = vunpack.c.l.b16 %v1196
        %v1239 = vunpack.c.l.b16 %v1197
        %v1240 = vunpack.c.l.b16 %v1198
        %v1241 = vunpack.c.l.b16 %v1199
        %v1242 = vunpack.c.l.b16 %v1200
        %v1243 = vunpack.c.l.b16 %v1201
        %v1244 = vunpack.c.l.b16 %v1202
        %v1245 = vpack.c.b16 %v1230, %v1229
        %v1246 = vpack.c.b16 %v1232, %v1231
        %v1247 = vpack.c.b16 %v1234, %v1233
        %v1248 = vpack.c.b16 %v1236, %v1235
        %v1249 = vpack.c.b16 %v1238, %v1237
        %v1250 = vpack.c.b16 %v1240, %v1239
        %v1251 = vpack.c.b16 %v1242, %v1241
        %v1252 = vpack.c.b16 %v1244, %v1243
        %1261 = vmatpush.bf16.msra.mxu0 %v1252
        %1262 = vmatpush.bf16.msra.mxu0 %v1251
        %1263 = vmatpush.bf16.msra.mxu0 %v1250
        %1264 = vmatpush.bf16.msra.mxu0 %v1249
        %1265 = vmatpush.bf16.msra.mxu0 %v1248
        %1266 = vmatpush.bf16.msra.mxu0 %v1247
        %1267 = vmatpush.bf16.msra.mxu0 %v1246
        %1268 = vmatpush.bf16.msra.mxu0 %v1245
        %1269 = vmatmul.bf16.gmra.mxu0 %v1211
        %v1270 = vpop.f32.mrf.mxu0
        %v1271 = vadd.f32 %v1205, %v1270
        %v1272 = vpop.f32.mrf.mxu0
        %v1273 = vadd.f32 %v1205, %v1272
        %1274 = vdwg.mxu0
        %v1275 = vmax.f32 %v1271, 0.0
        %v1276 = vmax.f32 %v1273, 0.0
        %v1277 = vpack.c.bf16 %v1275, %v1275
        %v1278 = vpack.c.bf16 %v1276, %v1276
        %1279 = vst [vmem:[#allocation2] sm:$0xf] %v1277
        %1280 = vst [vmem:[#allocation2 + $0x4] sm:$0xf] %v1278
        %v1281 = vld [vmem:[#allocation2] sm:$0xf]
        %v1282 = vld [vmem:[#allocation2 + $0x4] sm:$0xf]
        %v1283 = vld [vmem:[%s11] sm:$0xf]
        %v1284 = vld [vmem:[%s11 + $0x4] sm:$0xf]
        %v1285 = vld [vmem:[%s11 + $0x8] sm:$0xf]
        %v1286 = vld [vmem:[%s11 + $0xc] sm:$0xf]
        %v1287 = vld [vmem:[%s11 + $0x10] sm:$0xf]
        %v1288 = vld [vmem:[%s11 + $0x14] sm:$0xf]
        %v1289 = vld [vmem:[%s11 + $0x18] sm:$0xf]
        %v1290 = vld [vmem:[%s11 + $0x1c] sm:$0xf]
        %v1291 = vld [vmem:[%s11 + $0x20] sm:$0xf]
        %v1292 = vld [vmem:[%s11 + $0x24] sm:$0xf]
        %v1293 = vld [vmem:[%s11 + $0x28] sm:$0xf]
        %v1294 = vld [vmem:[%s11 + $0x2c] sm:$0xf]
        %v1295 = vld [vmem:[%s11 + $0x30] sm:$0xf]
        %v1296 = vld [vmem:[%s11 + $0x34] sm:$0xf]
        %v1297 = vld [vmem:[%s11 + $0x38] sm:$0xf]
        %v1298 = vld [vmem:[%s11 + $0x3c] sm:$0xf]
        %v1299 = vld [vmem:[#allocation5] sm:$0x1]
        %v1301 = vperm.slane %v1299, 0
        %v1305 = vunpack.c.l.b16 %v1281
        %v1306 = vunpack.c.l.b16 %v1282
        %v1307 = vpack.c.b16 %v1306, %v1305
        %v1325 = vunpack.c.l.b16 %v1283
        %v1326 = vunpack.c.l.b16 %v1284
        %v1327 = vunpack.c.l.b16 %v1285
        %v1328 = vunpack.c.l.b16 %v1286
        %v1329 = vunpack.c.l.b16 %v1287
        %v1330 = vunpack.c.l.b16 %v1288
        %v1331 = vunpack.c.l.b16 %v1289
        %v1332 = vunpack.c.l.b16 %v1290
        %v1333 = vunpack.c.l.b16 %v1291
        %v1334 = vunpack.c.l.b16 %v1292
        %v1335 = vunpack.c.l.b16 %v1293
        %v1336 = vunpack.c.l.b16 %v1294
        %v1337 = vunpack.c.l.b16 %v1295
        %v1338 = vunpack.c.l.b16 %v1296
        %v1339 = vunpack.c.l.b16 %v1297
        %v1340 = vunpack.c.l.b16 %v1298
        %v1341 = vpack.c.b16 %v1326, %v1325
        %v1342 = vpack.c.b16 %v1328, %v1327
        %v1343 = vpack.c.b16 %v1330, %v1329
        %v1344 = vpack.c.b16 %v1332, %v1331
        %v1345 = vpack.c.b16 %v1334, %v1333
        %v1346 = vpack.c.b16 %v1336, %v1335
        %v1347 = vpack.c.b16 %v1338, %v1337
        %v1348 = vpack.c.b16 %v1340, %v1339
        %1357 = vmatpush.bf16.msra.mxu0 %v1348
        %1358 = vmatpush.bf16.msra.mxu0 %v1347
        %1359 = vmatpush.bf16.msra.mxu0 %v1346
        %1360 = vmatpush.bf16.msra.mxu0 %v1345
        %1361 = vmatpush.bf16.msra.mxu0 %v1344
        %1362 = vmatpush.bf16.msra.mxu0 %v1343
        %1363 = vmatpush.bf16.msra.mxu0 %v1342
        %1364 = vmatpush.bf16.msra.mxu0 %v1341
        %1365 = vmatmul.bf16.gmra.mxu0 %v1307
        %v1366 = vpop.f32.mrf.mxu0
        %v1367 = vadd.f32 %v1301, %v1366
        %v1368 = vpop.f32.mrf.mxu0
        %v1369 = vadd.f32 %v1301, %v1368
        %1370 = vdwg.mxu0
        %v1371 = vmax.f32 %v1367, 0.0
        %v1372 = vmax.f32 %v1369, 0.0
        %v1373 = vpack.c.bf16 %v1371, %v1371
        %v1374 = vpack.c.bf16 %v1372, %v1372
        %1375 = vst [vmem:[#allocation2] sm:$0xf] %v1373
        %1376 = vst [vmem:[#allocation2 + $0x4] sm:$0xf] %v1374
        %v1377 = vld [vmem:[#allocation2] sm:$0xf]
        %v1378 = vld [vmem:[#allocation2 + $0x4] sm:$0xf]
        %v1379 = vld [vmem:[%s15] sm:$0xf]
        %v1380 = vld [vmem:[%s15 + $0x4] sm:$0xf]
        %v1381 = vld [vmem:[%s15 + $0x8] sm:$0xf]
        %v1382 = vld [vmem:[%s15 + $0xc] sm:$0xf]
        %v1383 = vld [vmem:[%s15 + $0x10] sm:$0xf]
        %v1384 = vld [vmem:[%s15 + $0x14] sm:$0xf]
        %v1385 = vld [vmem:[%s15 + $0x18] sm:$0xf]
        %v1386 = vld [vmem:[%s15 + $0x1c] sm:$0xf]
        %v1387 = vld [vmem:[%s15 + $0x20] sm:$0xf]
        %v1388 = vld [vmem:[%s15 + $0x24] sm:$0xf]
        %v1389 = vld [vmem:[%s15 + $0x28] sm:$0xf]
        %v1390 = vld [vmem:[%s15 + $0x2c] sm:$0xf]
        %v1391 = vld [vmem:[%s15 + $0x30] sm:$0xf]
        %v1392 = vld [vmem:[%s15 + $0x34] sm:$0xf]
        %v1393 = vld [vmem:[%s15 + $0x38] sm:$0xf]
        %v1394 = vld [vmem:[%s15 + $0x3c] sm:$0xf]
        %v1395 = vld [vmem:[#allocation7] sm:$0x1]
        %v1397 = vperm.slane %v1395, 0
        %v1401 = vunpack.c.l.b16 %v1377
        %v1402 = vunpack.c.l.b16 %v1378
        %v1403 = vpack.c.b16 %v1402, %v1401
        %v1421 = vunpack.c.l.b16 %v1379
        %v1422 = vunpack.c.l.b16 %v1380
        %v1423 = vunpack.c.l.b16 %v1381
        %v1424 = vunpack.c.l.b16 %v1382
        %v1425 = vunpack.c.l.b16 %v1383
        %v1426 = vunpack.c.l.b16 %v1384
        %v1427 = vunpack.c.l.b16 %v1385
        %v1428 = vunpack.c.l.b16 %v1386
        %v1429 = vunpack.c.l.b16 %v1387
        %v1430 = vunpack.c.l.b16 %v1388
        %v1431 = vunpack.c.l.b16 %v1389
        %v1432 = vunpack.c.l.b16 %v1390
        %v1433 = vunpack.c.l.b16 %v1391
        %v1434 = vunpack.c.l.b16 %v1392
        %v1435 = vunpack.c.l.b16 %v1393
        %v1436 = vunpack.c.l.b16 %v1394
        %v1437 = vpack.c.b16 %v1422, %v1421
        %v1438 = vpack.c.b16 %v1424, %v1423
        %v1439 = vpack.c.b16 %v1426, %v1425
        %v1440 = vpack.c.b16 %v1428, %v1427
        %v1441 = vpack.c.b16 %v1430, %v1429
        %v1442 = vpack.c.b16 %v1432, %v1431
        %v1443 = vpack.c.b16 %v1434, %v1433
        %v1444 = vpack.c.b16 %v1436, %v1435
        %1453 = vmatpush.bf16.msra.mxu0 %v1444
        %1454 = vmatpush.bf16.msra.mxu0 %v1443
        %1455 = vmatpush.bf16.msra.mxu0 %v1442
        %1456 = vmatpush.bf16.msra.mxu0 %v1441
        %1457 = vmatpush.bf16.msra.mxu0 %v1440
        %1458 = vmatpush.bf16.msra.mxu0 %v1439
        %1459 = vmatpush.bf16.msra.mxu0 %v1438
        %1460 = vmatpush.bf16.msra.mxu0 %v1437
        %1461 = vmatmul.bf16.gmra.mxu0 %v1403
        %v1462 = vpop.f32.mrf.mxu0
        %v1463 = vadd.f32 %v1397, %v1462
        %v1464 = vpop.f32.mrf.mxu0
        %v1465 = vadd.f32 %v1397, %v1464
        %1466 = vdwg.mxu0
        %v1467 = vxor.u32 %v1463, 2147483648
        %v1468 = vxor.u32 %v1465, 2147483648
        %v1469 = vmul.f32 %v1467, 1.442695
        %v1470 = vpow.pop %v1469
        %v1471 = vmul.f32 %v1468, 1.442695
        %v1472 = vpow.pop %v1471
        %v1473 = vadd.f32 %v1470, 1.0
        %v1474 = vadd.f32 %v1472, 1.0
        %v1475 = vrcp.pop %v1473
        %v1476 = vmul.f32 %v1473, %v1475
        %v1477 = vsub.f32 1.0, %v1476
        %v1478 = vmul.f32 %v1475, %v1477
        %v1479 = vadd.f32 %v1475, %v1478
        %vm1480 = vweird.f32 %v1473
        %vm1481 = vweird.f32 %v1475
        %vm1482 = vmor %vm1480, %vm1481
        %v1483 = vsel %vm1482, %v1475, %v1479
        %v1484 = vand.u32 2147483647, %v1473
        %vm1485 = vcmp.eq.f32.partialorder %v1484, 8.507059e+37
        %v1486 = vand.u32 %v1473, 2147483648
        %v1487 = vor.u32 1.1754944e-38, %v1486
        %v1488 = vsel %vm1485, %v1487, %v1483
        %v1489 = vmul.f32 1.0, %v1488
        %v1490 = vrcp.pop %v1474
        %v1491 = vmul.f32 %v1474, %v1490
        %v1492 = vsub.f32 1.0, %v1491
        %v1493 = vmul.f32 %v1490, %v1492
        %v1494 = vadd.f32 %v1490, %v1493
        %vm1495 = vweird.f32 %v1474
        %vm1496 = vweird.f32 %v1490
        %vm1497 = vmor %vm1495, %vm1496
        %v1498 = vsel %vm1497, %v1490, %v1494
        %v1499 = vand.u32 2147483647, %v1474
        %vm1500 = vcmp.eq.f32.partialorder %v1499, 8.507059e+37
        %v1501 = vand.u32 %v1474, 2147483648
        %v1502 = vor.u32 1.1754944e-38, %v1501
        %v1503 = vsel %vm1500, %v1502, %v1498
        %v1504 = vmul.f32 1.0, %v1503
        %1505 = vst [vmem:[%s1158] sm:$0xff] %v1489
        %1506 = vst [vmem:[%s1158 + $0x8] sm:$0xff] %v1504
        %v1507 = vld [vmem:[%s1146] sm:$0xf]
        %v1508 = vld [vmem:[%s1146 + $0x4] sm:$0xf]
        %v1509 = vld [vmem:[%s19] sm:$0xff]
        %v1510 = vld [vmem:[%s19 + $0x8] sm:$0xff]
        %v1511 = vld [vmem:[%s19 + $0x10] sm:$0xff]
        %v1512 = vld [vmem:[%s19 + $0x18] sm:$0xff]
        %v1513 = vld [vmem:[%s19 + $0x20] sm:$0xff]
        %v1514 = vld [vmem:[%s19 + $0x28] sm:$0xff]
        %v1515 = vld [vmem:[%s19 + $0x30] sm:$0xff]
        %v1516 = vld [vmem:[%s19 + $0x38] sm:$0xff]
        %v1517 = vld [vmem:[%s19 + $0x40] sm:$0xff]
        %v1518 = vld [vmem:[%s19 + $0x48] sm:$0xff]
        %v1519 = vld [vmem:[%s19 + $0x50] sm:$0xff]
        %v1520 = vld [vmem:[%s19 + $0x58] sm:$0xff]
        %v1521 = vld [vmem:[%s19 + $0x60] sm:$0xff]
        %v1522 = vld [vmem:[%s19 + $0x68] sm:$0xff]
        %v1523 = vld [vmem:[%s19 + $0x70] sm:$0xff]
        %v1524 = vld [vmem:[%s19 + $0x78] sm:$0xff]
        %v1525 = vld [vmem:[%s21] sm:$0x3]
        %v1527 = vperm.slane %v1525, 0
        %v1528 = vperm.slane %v1525, 1
        %v1533 = vunpack.c.l.b16 %v1507
        %v1534 = vunpack.c.l.b16 %v1508
        %v1535 = vpack.c.b16 %v1534, %v1533
        %v1553 = vunpack.c.l.b16 %v1509
        %v1554 = vunpack.c.h.b16 %v1509
        %v1555 = vunpack.c.l.b16 %v1510
        %v1556 = vunpack.c.h.b16 %v1510
        %v1557 = vunpack.c.l.b16 %v1511
        %v1558 = vunpack.c.h.b16 %v1511
        %v1559 = vunpack.c.l.b16 %v1512
        %v1560 = vunpack.c.h.b16 %v1512
        %v1561 = vunpack.c.l.b16 %v1513
        %v1562 = vunpack.c.h.b16 %v1513
        %v1563 = vunpack.c.l.b16 %v1514
        %v1564 = vunpack.c.h.b16 %v1514
        %v1565 = vunpack.c.l.b16 %v1515
        %v1566 = vunpack.c.h.b16 %v1515
        %v1567 = vunpack.c.l.b16 %v1516
        %v1568 = vunpack.c.h.b16 %v1516
        %v1569 = vunpack.c.l.b16 %v1517
        %v1570 = vunpack.c.h.b16 %v1517
        %v1571 = vunpack.c.l.b16 %v1518
        %v1572 = vunpack.c.h.b16 %v1518
        %v1573 = vunpack.c.l.b16 %v1519
        %v1574 = vunpack.c.h.b16 %v1519
        %v1575 = vunpack.c.l.b16 %v1520
        %v1576 = vunpack.c.h.b16 %v1520
        %v1577 = vunpack.c.l.b16 %v1521
        %v1578 = vunpack.c.h.b16 %v1521
        %v1579 = vunpack.c.l.b16 %v1522
        %v1580 = vunpack.c.h.b16 %v1522
        %v1581 = vunpack.c.l.b16 %v1523
        %v1582 = vunpack.c.h.b16 %v1523
        %v1583 = vunpack.c.l.b16 %v1524
        %v1584 = vunpack.c.h.b16 %v1524
        %v1585 = vpack.c.b16 %v1555, %v1553
        %v1586 = vpack.c.b16 %v1556, %v1554
        %v1587 = vpack.c.b16 %v1559, %v1557
        %v1588 = vpack.c.b16 %v1560, %v1558
        %v1589 = vpack.c.b16 %v1563, %v1561
        %v1590 = vpack.c.b16 %v1564, %v1562
        %v1591 = vpack.c.b16 %v1567, %v1565
        %v1592 = vpack.c.b16 %v1568, %v1566
        %v1593 = vpack.c.b16 %v1571, %v1569
        %v1594 = vpack.c.b16 %v1572, %v1570
        %v1595 = vpack.c.b16 %v1575, %v1573
        %v1596 = vpack.c.b16 %v1576, %v1574
        %v1597 = vpack.c.b16 %v1579, %v1577
        %v1598 = vpack.c.b16 %v1580, %v1578
        %v1599 = vpack.c.b16 %v1583, %v1581
        %v1600 = vpack.c.b16 %v1584, %v1582
        %1617 = vmatpush.bf16.msra.mxu0 %v1599
        %1618 = vmatpush.bf16.msra.mxu0 %v1597
        %1619 = vmatpush.bf16.msra.mxu0 %v1595
        %1620 = vmatpush.bf16.msra.mxu0 %v1593
        %1621 = vmatpush.bf16.msra.mxu0 %v1591
        %1622 = vmatpush.bf16.msra.mxu0 %v1589
        %1623 = vmatpush.bf16.msra.mxu0 %v1587
        %1624 = vmatpush.bf16.msra.mxu0 %v1585
        %1625 = vmatmul.bf16.gmra.mxu0 %v1535
        %v1626 = vpop.f32.mrf.mxu0
        %v1627 = vadd.f32 %v1527, %v1626
        %v1628 = vpop.f32.mrf.mxu0
        %v1629 = vadd.f32 %v1527, %v1628
        %1630 = vdwg.mxu0
        %1631 = vmatpush.bf16.msra.mxu0 %v1600
        %1632 = vmatpush.bf16.msra.mxu0 %v1598
        %1633 = vmatpush.bf16.msra.mxu0 %v1596
        %1634 = vmatpush.bf16.msra.mxu0 %v1594
        %1635 = vmatpush.bf16.msra.mxu0 %v1592
        %1636 = vmatpush.bf16.msra.mxu0 %v1590
        %1637 = vmatpush.bf16.msra.mxu0 %v1588
        %1638 = vmatpush.bf16.msra.mxu0 %v1586
        %1639 = vmatmul.bf16.gmra.mxu0 %v1535
        %v1640 = vpop.f32.mrf.mxu0
        %v1641 = vadd.f32 %v1528, %v1640
        %v1642 = vpop.f32.mrf.mxu0
        %v1643 = vadd.f32 %v1528, %v1642
        %1644 = vdwg.mxu0
        %v1645 = vmax.f32 %v1627, 0.0
        %v1646 = vmax.f32 %v1629, 0.0
        %v1647 = vpack.c.bf16 %v1645, %v1645
        %v1648 = vpack.c.bf16 %v1646, %v1646
        %1649 = vst [vmem:[#allocation3] sm:$0xf] %v1647
        %1650 = vst [vmem:[#allocation3 + $0x4] sm:$0xf] %v1648
        %v1651 = vld [vmem:[#allocation3] sm:$0xf]
        %v1652 = vld [vmem:[#allocation3 + $0x4] sm:$0xf]
        %v1653 = vld [vmem:[%s23] sm:$0xf]
        %v1654 = vld [vmem:[%s23 + $0x4] sm:$0xf]
        %v1655 = vld [vmem:[%s23 + $0x8] sm:$0xf]
        %v1656 = vld [vmem:[%s23 + $0xc] sm:$0xf]
        %v1657 = vld [vmem:[%s23 + $0x10] sm:$0xf]
        %v1658 = vld [vmem:[%s23 + $0x14] sm:$0xf]
        %v1659 = vld [vmem:[%s23 + $0x18] sm:$0xf]
        %v1660 = vld [vmem:[%s23 + $0x1c] sm:$0xf]
        %v1661 = vld [vmem:[%s23 + $0x20] sm:$0xf]
        %v1662 = vld [vmem:[%s23 + $0x24] sm:$0xf]
        %v1663 = vld [vmem:[%s23 + $0x28] sm:$0xf]
        %v1664 = vld [vmem:[%s23 + $0x2c] sm:$0xf]
        %v1665 = vld [vmem:[%s23 + $0x30] sm:$0xf]
        %v1666 = vld [vmem:[%s23 + $0x34] sm:$0xf]
        %v1667 = vld [vmem:[%s23 + $0x38] sm:$0xf]
        %v1668 = vld [vmem:[%s23 + $0x3c] sm:$0xf]
        %v1669 = vld [vmem:[#allocation9] sm:$0x1]
        %v1671 = vperm.slane %v1669, 0
        %v1675 = vunpack.c.l.b16 %v1651
        %v1676 = vunpack.c.l.b16 %v1652
        %v1677 = vpack.c.b16 %v1676, %v1675
        %v1695 = vunpack.c.l.b16 %v1653
        %v1696 = vunpack.c.l.b16 %v1654
        %v1697 = vunpack.c.l.b16 %v1655
        %v1698 = vunpack.c.l.b16 %v1656
        %v1699 = vunpack.c.l.b16 %v1657
        %v1700 = vunpack.c.l.b16 %v1658
        %v1701 = vunpack.c.l.b16 %v1659
        %v1702 = vunpack.c.l.b16 %v1660
        %v1703 = vunpack.c.l.b16 %v1661
        %v1704 = vunpack.c.l.b16 %v1662
        %v1705 = vunpack.c.l.b16 %v1663
        %v1706 = vunpack.c.l.b16 %v1664
        %v1707 = vunpack.c.l.b16 %v1665
        %v1708 = vunpack.c.l.b16 %v1666
        %v1709 = vunpack.c.l.b16 %v1667
        %v1710 = vunpack.c.l.b16 %v1668
        %v1711 = vpack.c.b16 %v1696, %v1695
        %v1712 = vpack.c.b16 %v1698, %v1697
        %v1713 = vpack.c.b16 %v1700, %v1699
        %v1714 = vpack.c.b16 %v1702, %v1701
        %v1715 = vpack.c.b16 %v1704, %v1703
        %v1716 = vpack.c.b16 %v1706, %v1705
        %v1717 = vpack.c.b16 %v1708, %v1707
        %v1718 = vpack.c.b16 %v1710, %v1709
        %1727 = vmatpush.bf16.msra.mxu0 %v1718
        %1728 = vmatpush.bf16.msra.mxu0 %v1717
        %1729 = vmatpush.bf16.msra.mxu0 %v1716
        %1730 = vmatpush.bf16.msra.mxu0 %v1715
        %1731 = vmatpush.bf16.msra.mxu0 %v1714
        %1732 = vmatpush.bf16.msra.mxu0 %v1713
        %1733 = vmatpush.bf16.msra.mxu0 %v1712
        %1734 = vmatpush.bf16.msra.mxu0 %v1711
        %1735 = vmatmul.bf16.gmra.mxu0 %v1677
        %v1736 = vpop.f32.mrf.mxu0
        %v1737 = vadd.f32 %v1671, %v1736
        %v1738 = vpop.f32.mrf.mxu0
        %v1739 = vadd.f32 %v1671, %v1738
        %1740 = vdwg.mxu0
        %v1741 = vmax.f32 %v1737, 0.0
        %v1742 = vmax.f32 %v1739, 0.0
        %v1743 = vpack.c.bf16 %v1741, %v1741
        %v1744 = vpack.c.bf16 %v1742, %v1742
        %1745 = vst [vmem:[#allocation3] sm:$0xf] %v1743
        %1746 = vst [vmem:[#allocation3 + $0x4] sm:$0xf] %v1744
        %v1747 = vld [vmem:[#allocation3] sm:$0xf]
        %v1748 = vld [vmem:[#allocation3 + $0x4] sm:$0xf]
        %v1749 = vld [vmem:[%s27] sm:$0xf]
        %v1750 = vld [vmem:[%s27 + $0x4] sm:$0xf]
        %v1751 = vld [vmem:[%s27 + $0x8] sm:$0xf]
        %v1752 = vld [vmem:[%s27 + $0xc] sm:$0xf]
        %v1753 = vld [vmem:[%s27 + $0x10] sm:$0xf]
        %v1754 = vld [vmem:[%s27 + $0x14] sm:$0xf]
        %v1755 = vld [vmem:[%s27 + $0x18] sm:$0xf]
        %v1756 = vld [vmem:[%s27 + $0x1c] sm:$0xf]
        %v1757 = vld [vmem:[%s27 + $0x20] sm:$0xf]
        %v1758 = vld [vmem:[%s27 + $0x24] sm:$0xf]
        %v1759 = vld [vmem:[%s27 + $0x28] sm:$0xf]
        %v1760 = vld [vmem:[%s27 + $0x2c] sm:$0xf]
        %v1761 = vld [vmem:[%s27 + $0x30] sm:$0xf]
        %v1762 = vld [vmem:[%s27 + $0x34] sm:$0xf]
        %v1763 = vld [vmem:[%s27 + $0x38] sm:$0xf]
        %v1764 = vld [vmem:[%s27 + $0x3c] sm:$0xf]
        %v1765 = vld [vmem:[#allocation10] sm:$0x1]
        %v1767 = vperm.slane %v1765, 0
        %v1771 = vunpack.c.l.b16 %v1747
        %v1772 = vunpack.c.l.b16 %v1748
        %v1773 = vpack.c.b16 %v1772, %v1771
        %v1791 = vunpack.c.l.b16 %v1749
        %v1792 = vunpack.c.l.b16 %v1750
        %v1793 = vunpack.c.l.b16 %v1751
        %v1794 = vunpack.c.l.b16 %v1752
        %v1795 = vunpack.c.l.b16 %v1753
        %v1796 = vunpack.c.l.b16 %v1754
        %v1797 = vunpack.c.l.b16 %v1755
        %v1798 = vunpack.c.l.b16 %v1756
        %v1799 = vunpack.c.l.b16 %v1757
        %v1800 = vunpack.c.l.b16 %v1758
        %v1801 = vunpack.c.l.b16 %v1759
        %v1802 = vunpack.c.l.b16 %v1760
        %v1803 = vunpack.c.l.b16 %v1761
        %v1804 = vunpack.c.l.b16 %v1762
        %v1805 = vunpack.c.l.b16 %v1763
        %v1806 = vunpack.c.l.b16 %v1764
        %v1807 = vpack.c.b16 %v1792, %v1791
        %v1808 = vpack.c.b16 %v1794, %v1793
        %v1809 = vpack.c.b16 %v1796, %v1795
        %v1810 = vpack.c.b16 %v1798, %v1797
        %v1811 = vpack.c.b16 %v1800, %v1799
        %v1812 = vpack.c.b16 %v1802, %v1801
        %v1813 = vpack.c.b16 %v1804, %v1803
        %v1814 = vpack.c.b16 %v1806, %v1805
        %1823 = vmatpush.bf16.msra.mxu0 %v1814
        %1824 = vmatpush.bf16.msra.mxu0 %v1813
        %1825 = vmatpush.bf16.msra.mxu0 %v1812
        %1826 = vmatpush.bf16.msra.mxu0 %v1811
        %1827 = vmatpush.bf16.msra.mxu0 %v1810
        %1828 = vmatpush.bf16.msra.mxu0 %v1809
        %1829 = vmatpush.bf16.msra.mxu0 %v1808
        %1830 = vmatpush.bf16.msra.mxu0 %v1807
        %1831 = vmatmul.bf16.gmra.mxu0 %v1773
        %v1832 = vpop.f32.mrf.mxu0
        %v1833 = vadd.f32 %v1767, %v1832
        %v1834 = vpop.f32.mrf.mxu0
        %v1835 = vadd.f32 %v1767, %v1834
        %1836 = vdwg.mxu0
        %v1837 = vxor.u32 %v1833, 2147483648
        %v1838 = vxor.u32 %v1835, 2147483648
        %v1839 = vmul.f32 %v1837, 1.442695
        %v1840 = vpow.pop %v1839
        %v1841 = vmul.f32 %v1838, 1.442695
        %v1842 = vpow.pop %v1841
        %v1843 = vadd.f32 %v1840, 1.0
        %v1844 = vadd.f32 %v1842, 1.0
        %v1845 = vrcp.pop %v1843
        %v1846 = vmul.f32 %v1843, %v1845
        %v1847 = vsub.f32 1.0, %v1846
        %v1848 = vmul.f32 %v1845, %v1847
        %v1849 = vadd.f32 %v1845, %v1848
        %vm1850 = vweird.f32 %v1843
        %vm1851 = vweird.f32 %v1845
        %vm1852 = vmor %vm1850, %vm1851
        %v1853 = vsel %vm1852, %v1845, %v1849
        %v1854 = vand.u32 2147483647, %v1843
        %vm1855 = vcmp.eq.f32.partialorder %v1854, 8.507059e+37
        %v1856 = vand.u32 %v1843, 2147483648
        %v1857 = vor.u32 1.1754944e-38, %v1856
        %v1858 = vsel %vm1855, %v1857, %v1853
        %v1859 = vmul.f32 1.0, %v1858
        %v1860 = vrcp.pop %v1844
        %v1861 = vmul.f32 %v1844, %v1860
        %v1862 = vsub.f32 1.0, %v1861
        %v1863 = vmul.f32 %v1860, %v1862
        %v1864 = vadd.f32 %v1860, %v1863
        %vm1865 = vweird.f32 %v1844
        %vm1866 = vweird.f32 %v1860
        %vm1867 = vmor %vm1865, %vm1866
        %v1868 = vsel %vm1867, %v1860, %v1864
        %v1869 = vand.u32 2147483647, %v1844
        %vm1870 = vcmp.eq.f32.partialorder %v1869, 8.507059e+37
        %v1871 = vand.u32 %v1844, 2147483648
        %v1872 = vor.u32 1.1754944e-38, %v1871
        %v1873 = vsel %vm1870, %v1872, %v1868
        %v1874 = vmul.f32 1.0, %v1873
        %1875 = vst [vmem:[%s1164] sm:$0xff] %v1859
        %1876 = vst [vmem:[%s1164 + $0x8] sm:$0xff] %v1874
        %1877 = vadd.xlane.f32.xlu0 %v1641
        %v1878 = vpop.xlane.xlu0 %1877
        %1879 = vadd.xlane.f32.xlu0 %v1643
        %v1880 = vpop.xlane.xlu0 %1879
        %v1881 = vrcp.pop 128.0
        %v1882 = vmul.f32 128.0, %v1881
        %v1883 = vsub.f32 1.0, %v1882
        %v1884 = vmul.f32 %v1881, %v1883
        %v1885 = vadd.f32 %v1881, %v1884
        %vm1886 = vweird.f32 %v1881
        %v1887 = vsel %vm1886, %v1881, %v1885
        %v1888 = vmul.f32 %v1878, %v1887
        %v1889 = vmul.f32 %v1880, %v1887
        %v1890 = vsub.f32 %v1641, %v1888
        %v1891 = vsub.f32 %v1643, %v1889
        %v1892 = vmul.f32 %v1890, %v1890
        %v1893 = vmul.f32 %v1891, %v1891
        %1894 = vadd.xlane.f32.xlu0 %v1892
        %v1895 = vpop.xlane.xlu0 %1894
        %1896 = vadd.xlane.f32.xlu0 %v1893
        %v1897 = vpop.xlane.xlu0 %1896
        %v1898 = vmul.f32 %v1895, %v1887
        %v1899 = vmul.f32 %v1897, %v1887
        %v1900 = vadd.f32 %v1898, 1e-05
        %v1901 = vadd.f32 %v1899, 1e-05
        %v1902 = vrsqrt.pop %v1900
        %v1903 = vmul.f32 %v1902, %v1900
        %v1904 = vmul.f32 %v1903, %v1902
        %v1905 = vmul.f32 0.5, %v1904
        %v1906 = vsub.f32 1.5, %v1905
        %v1907 = vmul.f32 %v1902, %v1906
        %vm1908 = vweird.f32 %v1900
        %vm1909 = vweird.f32 %v1902
        %vm1910 = vmor %vm1908, %vm1909
        %v1911 = vsel %vm1910, %v1902, %v1907
        %v1912 = vrsqrt.pop %v1901
        %v1913 = vmul.f32 %v1912, %v1901
        %v1914 = vmul.f32 %v1913, %v1912
        %v1915 = vmul.f32 0.5, %v1914
        %v1916 = vsub.f32 1.5, %v1915
        %v1917 = vmul.f32 %v1912, %v1916
        %vm1918 = vweird.f32 %v1901
        %vm1919 = vweird.f32 %v1912
        %vm1920 = vmor %vm1918, %vm1919
        %v1921 = vsel %vm1920, %v1912, %v1917
        %v1922 = vmul.f32 %v1890, %v1911
        %v1923 = vmul.f32 %v1891, %v1921
        %v1924 = vld [vmem:[#allocation12] sm:$0x1]
        %v1926 = vperm.slane %v1924, 0
        %v1928 = vmul.f32 %v1922, %v1926
        %v1929 = vmul.f32 %v1923, %v1926
        %v1930 = vld [vmem:[#allocation13] sm:$0x1]
        %v1932 = vperm.slane %v1930, 0
        %v1934 = vadd.f32 %v1928, %v1932
        %v1935 = vadd.f32 %v1929, %v1932
        %v1936 = vmul.f32 %v1934, %v1934
        %v1937 = vmul.f32 %v1935, %v1935
        %1938 = vadd.xlane.f32.xlu0 %v1936
        %v1939 = vpop.xlane.xlu0 %1938
        %1940 = vadd.xlane.f32.xlu0 %v1937
        %v1941 = vpop.xlane.xlu0 %1940
        %v1942 = vadd.f32 %v1939, 1e-12
        %v1943 = vadd.f32 %v1941, 1e-12
        %v1944 = vrsqrt.pop %v1942
        %v1945 = vmul.f32 %v1944, %v1942
        %v1946 = vmul.f32 %v1945, %v1944
        %v1947 = vmul.f32 0.5, %v1946
        %v1948 = vsub.f32 1.5, %v1947
        %v1949 = vmul.f32 %v1944, %v1948
        %vm1950 = vweird.f32 %v1942
        %vm1951 = vweird.f32 %v1944
        %vm1952 = vmor %vm1950, %vm1951
        %v1953 = vsel %vm1952, %v1944, %v1949
        %v1954 = vrsqrt.pop %v1943
        %v1955 = vmul.f32 %v1954, %v1943
        %v1956 = vmul.f32 %v1955, %v1954
        %v1957 = vmul.f32 0.5, %v1956
        %v1958 = vsub.f32 1.5, %v1957
        %v1959 = vmul.f32 %v1954, %v1958
        %vm1960 = vweird.f32 %v1943
        %vm1961 = vweird.f32 %v1954
        %vm1962 = vmor %vm1960, %vm1961
        %v1963 = vsel %vm1962, %v1954, %v1959
        %v1964 = vmul.f32 %v1934, %v1953
        %v1965 = vmul.f32 %v1935, %v1963
        %v1966 = vpack.c.bf16 %v1965, %v1964
        %v1967 = vld [vmem:[#allocation15] sm:$0xf]
        %v1968 = vld [vmem:[#allocation15 + $0x4] sm:$0xf]
        %v1969 = vld [vmem:[#allocation15 + $0x8] sm:$0xf]
        %v1970 = vld [vmem:[#allocation15 + $0xc] sm:$0xf]
        %v1971 = vld [vmem:[#allocation15 + $0x10] sm:$0xf]
        %v1972 = vld [vmem:[#allocation15 + $0x14] sm:$0xf]
        %v1973 = vld [vmem:[#allocation15 + $0x18] sm:$0xf]
        %v1974 = vld [vmem:[#allocation15 + $0x1c] sm:$0xf]
        %v1975 = vld [vmem:[#allocation15 + $0x20] sm:$0xf]
        %v1976 = vld [vmem:[#allocation15 + $0x24] sm:$0xf]
        %v1977 = vld [vmem:[#allocation15 + $0x28] sm:$0xf]
        %v1978 = vld [vmem:[#allocation15 + $0x2c] sm:$0xf]
        %v1979 = vld [vmem:[#allocation15 + $0x30] sm:$0xf]
        %v1980 = vld [vmem:[#allocation15 + $0x34] sm:$0xf]
        %v1981 = vld [vmem:[#allocation15 + $0x38] sm:$0xf]
        %v1982 = vld [vmem:[#allocation15 + $0x3c] sm:$0xf]
        %v1999 = vunpack.c.l.b16 %v1967
        %v2000 = vunpack.c.l.b16 %v1968
        %v2001 = vunpack.c.l.b16 %v1969
        %v2002 = vunpack.c.l.b16 %v1970
        %v2003 = vunpack.c.l.b16 %v1971
        %v2004 = vunpack.c.l.b16 %v1972
        %v2005 = vunpack.c.l.b16 %v1973
        %v2006 = vunpack.c.l.b16 %v1974
        %v2007 = vunpack.c.l.b16 %v1975
        %v2008 = vunpack.c.l.b16 %v1976
        %v2009 = vunpack.c.l.b16 %v1977
        %v2010 = vunpack.c.l.b16 %v1978
        %v2011 = vunpack.c.l.b16 %v1979
        %v2012 = vunpack.c.l.b16 %v1980
        %v2013 = vunpack.c.l.b16 %v1981
        %v2014 = vunpack.c.l.b16 %v1982
        %v2015 = vpack.c.b16 %v2000, %v1999
        %v2016 = vpack.c.b16 %v2002, %v2001
        %v2017 = vpack.c.b16 %v2004, %v2003
        %v2018 = vpack.c.b16 %v2006, %v2005
        %v2019 = vpack.c.b16 %v2008, %v2007
        %v2020 = vpack.c.b16 %v2010, %v2009
        %v2021 = vpack.c.b16 %v2012, %v2011
        %v2022 = vpack.c.b16 %v2014, %v2013
        %2031 = vmatpush.bf16.msra.mxu0 %v2022
        %2032 = vmatpush.bf16.msra.mxu0 %v2021
        %2033 = vmatpush.bf16.msra.mxu0 %v2020
        %2034 = vmatpush.bf16.msra.mxu0 %v2019
        %2035 = vmatpush.bf16.msra.mxu0 %v2018
        %2036 = vmatpush.bf16.msra.mxu0 %v2017
        %2037 = vmatpush.bf16.msra.mxu0 %v2016
        %2038 = vmatpush.bf16.msra.mxu0 %v2015
        %2039 = vmatmul.bf16.gmra.mxu0 %v1966
        %v2040 = vpop.f32.mrf.mxu0
        %v2041 = vadd.f32 0.0, %v2040
        %v2042 = vpop.f32.mrf.mxu0
        %v2043 = vadd.f32 0.0, %v2042
        %2044 = vdwg.mxu0
        %2045 = vst [vmem:[%s1170] sm:$0xff] %v2041
        %2046 = vst [vmem:[%s1170 + $0x8] sm:$0xff] %v2043
        %v2047 = vld [vmem:[%s1152] sm:$0xff]
        %v2048 = vld [vmem:[%s1152 + $0x8] sm:$0xff]
        %v2049 = vpack.c.bf16 %v2048, %v2047
        %v2050 = vld [vmem:[%s37] sm:$0xf]
        %v2051 = vld [vmem:[%s37 + $0x4] sm:$0xf]
        %v2052 = vld [vmem:[%s37 + $0x8] sm:$0xf]
        %v2053 = vld [vmem:[%s37 + $0xc] sm:$0xf]
        %v2054 = vld [vmem:[%s37 + $0x10] sm:$0xf]
        %v2055 = vld [vmem:[%s37 + $0x14] sm:$0xf]
        %v2056 = vld [vmem:[%s37 + $0x18] sm:$0xf]
        %v2057 = vld [vmem:[%s37 + $0x1c] sm:$0xf]
        %v2058 = vld [vmem:[%s37 + $0x20] sm:$0xf]
        %v2059 = vld [vmem:[%s37 + $0x24] sm:$0xf]
        %v2060 = vld [vmem:[%s37 + $0x28] sm:$0xf]
        %v2061 = vld [vmem:[%s37 + $0x2c] sm:$0xf]
        %v2062 = vld [vmem:[%s37 + $0x30] sm:$0xf]
        %v2063 = vld [vmem:[%s37 + $0x34] sm:$0xf]
        %v2064 = vld [vmem:[%s37 + $0x38] sm:$0xf]
        %v2065 = vld [vmem:[%s37 + $0x3c] sm:$0xf]
        %v2066 = vld [vmem:[#allocation16] sm:$0x1]
        %v2068 = vperm.slane %v2066, 0
        %v2086 = vunpack.c.l.b16 %v2050
        %v2087 = vunpack.c.l.b16 %v2051
        %v2088 = vunpack.c.l.b16 %v2052
        %v2089 = vunpack.c.l.b16 %v2053
        %v2090 = vunpack.c.l.b16 %v2054
        %v2091 = vunpack.c.l.b16 %v2055
        %v2092 = vunpack.c.l.b16 %v2056
        %v2093 = vunpack.c.l.b16 %v2057
        %v2094 = vunpack.c.l.b16 %v2058
        %v2095 = vunpack.c.l.b16 %v2059
        %v2096 = vunpack.c.l.b16 %v2060
        %v2097 = vunpack.c.l.b16 %v2061
        %v2098 = vunpack.c.l.b16 %v2062
        %v2099 = vunpack.c.l.b16 %v2063
        %v2100 = vunpack.c.l.b16 %v2064
        %v2101 = vunpack.c.l.b16 %v2065
        %v2102 = vpack.c.b16 %v2087, %v2086
        %v2103 = vpack.c.b16 %v2089, %v2088
        %v2104 = vpack.c.b16 %v2091, %v2090
        %v2105 = vpack.c.b16 %v2093, %v2092
        %v2106 = vpack.c.b16 %v2095, %v2094
        %v2107 = vpack.c.b16 %v2097, %v2096
        %v2108 = vpack.c.b16 %v2099, %v2098
        %v2109 = vpack.c.b16 %v2101, %v2100
        %2118 = vmatpush.bf16.msra.mxu0 %v2109
        %2119 = vmatpush.bf16.msra.mxu0 %v2108
        %2120 = vmatpush.bf16.msra.mxu0 %v2107
        %2121 = vmatpush.bf16.msra.mxu0 %v2106
        %2122 = vmatpush.bf16.msra.mxu0 %v2105
        %2123 = vmatpush.bf16.msra.mxu0 %v2104
        %2124 = vmatpush.bf16.msra.mxu0 %v2103
        %2125 = vmatpush.bf16.msra.mxu0 %v2102
        %2126 = vmatmul.bf16.gmra.mxu0 %v2049
        %v2127 = vpop.f32.mrf.mxu0
        %v2128 = vadd.f32 %v2068, %v2127
        %v2129 = vpop.f32.mrf.mxu0
        %v2130 = vadd.f32 %v2068, %v2129
        %2131 = vdwg.mxu0
        %v2132 = vmax.f32 %v2128, 0.0
        %v2133 = vmax.f32 %v2130, 0.0
        %v2134 = vpack.c.bf16 %v2132, %v2132
        %v2135 = vpack.c.bf16 %v2133, %v2133
        %vm2136 = vcmask 519168
        %2137 = vst.msk [vmem:[#allocation4] sm:$0xf] %vm2136, %v2134
        %2138 = vst.msk [vmem:[#allocation4 + $0x4] sm:$0xf] %vm2136, %v2135
        %v2139 = vld [vmem:[#allocation4] sm:$0xf]
        %v2140 = vld [vmem:[#allocation4 + $0x4] sm:$0xf]
        %v2141 = vld [vmem:[#allocation18] sm:$0xf]
        %v2142 = vld [vmem:[#allocation18 + $0x4] sm:$0xf]
        %v2143 = vld [vmem:[#allocation18 + $0x8] sm:$0xf]
        %v2144 = vld [vmem:[#allocation18 + $0xc] sm:$0xf]
        %v2145 = vld [vmem:[#allocation18 + $0x10] sm:$0xf]
        %v2146 = vld [vmem:[#allocation18 + $0x14] sm:$0xf]
        %v2147 = vld [vmem:[#allocation18 + $0x18] sm:$0xf]
        %v2148 = vld [vmem:[#allocation18 + $0x1c] sm:$0xf]
        %v2149 = vld [vmem:[#allocation19] sm:$0x1]
        %v2151 = vperm.slane %v2149, 0
        %v2155 = vunpack.c.l.b16 %v2139
        %v2156 = vunpack.c.l.b16 %v2140
        %v2157 = vpack.c.b16 %v2156, %v2155
        %v2166 = vunpack.c.l.b16 %v2141
        %v2167 = vunpack.c.l.b16 %v2142
        %v2168 = vunpack.c.l.b16 %v2143
        %v2169 = vunpack.c.l.b16 %v2144
        %v2170 = vunpack.c.l.b16 %v2145
        %v2171 = vunpack.c.l.b16 %v2146
        %v2172 = vunpack.c.l.b16 %v2147
        %v2173 = vunpack.c.l.b16 %v2148
        %v2174 = vpack.c.b16 %v2167, %v2166
        %v2175 = vpack.c.b16 %v2169, %v2168
        %v2176 = vpack.c.b16 %v2171, %v2170
        %v2177 = vpack.c.b16 %v2173, %v2172
        %vm2182 = vcmask 523264
        %v2184 = vsel %vm2182, %v2157, 0
        %2186 = vmatpush.bf16.msra.mxu0 0
        %2187 = vmatpush.bf16.msra.mxu0 0
        %2188 = vmatpush.bf16.msra.mxu0 0
        %2189 = vmatpush.bf16.msra.mxu0 0
        %2190 = vmatpush.bf16.msra.mxu0 %v2177
        %2191 = vmatpush.bf16.msra.mxu0 %v2176
        %2192 = vmatpush.bf16.msra.mxu0 %v2175
        %2193 = vmatpush.bf16.msra.mxu0 %v2174
        %2194 = vmatmul.bf16.gmra.mxu0 %v2184
        %v2195 = vpop.f32.mrf.mxu0
        %v2196 = vadd.f32 %v2151, %v2195
        %v2197 = vpop.f32.mrf.mxu0
        %v2198 = vadd.f32 %v2151, %v2197
        %2199 = vdwg.mxu0
        %v2200 = vmax.f32 %v2196, 0.0
        %v2201 = vmax.f32 %v2198, 0.0
        %v2202 = vpack.c.bf16 %v2200, %v2200
        %v2203 = vpack.c.bf16 %v2201, %v2201
        %2204 = vst.msk [vmem:[#allocation4] sm:$0xf] %vm2136, %v2202
        %2205 = vst.msk [vmem:[#allocation4 + $0x4] sm:$0xf] %vm2136, %v2203
        %v2206 = vld [vmem:[#allocation4] sm:$0xf]
        %v2207 = vld [vmem:[#allocation4 + $0x4] sm:$0xf]
        %v2208 = vld [vmem:[#allocation21] sm:$0xf]
        %v2209 = vld [vmem:[#allocation21 + $0x4] sm:$0xf]
        %v2210 = vld [vmem:[#allocation21 + $0x8] sm:$0xf]
        %v2211 = vld [vmem:[#allocation21 + $0xc] sm:$0xf]
        %v2212 = vld [vmem:[#allocation21 + $0x10] sm:$0xf]
        %v2213 = vld [vmem:[#allocation21 + $0x14] sm:$0xf]
        %v2214 = vld [vmem:[#allocation21 + $0x18] sm:$0xf]
        %v2215 = vld [vmem:[#allocation21 + $0x1c] sm:$0xf]
        %v2216 = vld [vmem:[#allocation22] sm:$0x1]
        %v2218 = vperm.slane %v2216, 0
        %v2222 = vunpack.c.l.b16 %v2206
        %v2223 = vunpack.c.l.b16 %v2207
        %v2224 = vpack.c.b16 %v2223, %v2222
        %v2233 = vunpack.c.l.b16 %v2208
        %v2234 = vunpack.c.l.b16 %v2209
        %v2235 = vunpack.c.l.b16 %v2210
        %v2236 = vunpack.c.l.b16 %v2211
        %v2237 = vunpack.c.l.b16 %v2212
        %v2238 = vunpack.c.l.b16 %v2213
        %v2239 = vunpack.c.l.b16 %v2214
        %v2240 = vunpack.c.l.b16 %v2215
        %v2241 = vpack.c.b16 %v2234, %v2233
        %v2242 = vpack.c.b16 %v2236, %v2235
        %v2243 = vpack.c.b16 %v2238, %v2237
        %v2244 = vpack.c.b16 %v2240, %v2239
        %v2250 = vsel %vm2182, %v2224, 0
        %2252 = vmatpush.bf16.msra.mxu0 0
        %2253 = vmatpush.bf16.msra.mxu0 0
        %2254 = vmatpush.bf16.msra.mxu0 0
        %2255 = vmatpush.bf16.msra.mxu0 0
        %2256 = vmatpush.bf16.msra.mxu0 %v2244
        %2257 = vmatpush.bf16.msra.mxu0 %v2243
        %2258 = vmatpush.bf16.msra.mxu0 %v2242
        %2259 = vmatpush.bf16.msra.mxu0 %v2241
        %2260 = vmatmul.bf16.gmra.mxu0 %v2250
        %v2261 = vpop.f32.mrf.mxu0
        %v2262 = vadd.f32 %v2218, %v2261
        %v2263 = vpop.f32.mrf.mxu0
        %v2264 = vadd.f32 %v2218, %v2263
        %2265 = vdwg.mxu0
        %v2266 = vmul.f32 %v2047, %v2047
        %v2267 = vmul.f32 %v2048, %v2048
        %2268 = vadd.xlane.f32.xlu0 %v2266
        %v2269 = vpop.xlane.xlu0 %2268
        %2270 = vadd.xlane.f32.xlu0 %v2267
        %v2271 = vpop.xlane.xlu0 %2270
        %v2272 = vadd.f32 %v2269, 1e-12
        %v2273 = vadd.f32 %v2271, 1e-12
        %v2274 = vrsqrt.pop %v2272
        %v2275 = vmul.f32 %v2274, %v2272
        %v2276 = vmul.f32 %v2275, %v2274
        %v2277 = vmul.f32 0.5, %v2276
        %v2278 = vsub.f32 1.5, %v2277
        %v2279 = vmul.f32 %v2274, %v2278
        %vm2280 = vweird.f32 %v2272
        %vm2281 = vweird.f32 %v2274
        %vm2282 = vmor %vm2280, %vm2281
        %v2283 = vsel %vm2282, %v2274, %v2279
        %v2284 = vrsqrt.pop %v2273
        %v2285 = vmul.f32 %v2284, %v2273
        %v2286 = vmul.f32 %v2285, %v2284
        %v2287 = vmul.f32 0.5, %v2286
        %v2288 = vsub.f32 1.5, %v2287
        %v2289 = vmul.f32 %v2284, %v2288
        %vm2290 = vweird.f32 %v2273
        %vm2291 = vweird.f32 %v2284
        %vm2292 = vmor %vm2290, %vm2291
        %v2293 = vsel %vm2292, %v2284, %v2289
        %v2294 = vmul.f32 %v2047, %v2283
        %v2295 = vmul.f32 %v2048, %v2293
        %v2296 = vmul.f32 %v2262, %v2262
        %v2297 = vmul.f32 %v2264, %v2264
        %2298 = vadd.xlane.f32.xlu0 %v2296
        %v2299 = vpop.xlane.xlu0 %2298
        %2300 = vadd.xlane.f32.xlu0 %v2297
        %v2301 = vpop.xlane.xlu0 %2300
        %v2302 = vadd.f32 %v2299, 1e-12
        %v2303 = vadd.f32 %v2301, 1e-12
        %v2304 = vrsqrt.pop %v2302
        %v2305 = vmul.f32 %v2304, %v2302
        %v2306 = vmul.f32 %v2305, %v2304
        %v2307 = vmul.f32 0.5, %v2306
        %v2308 = vsub.f32 1.5, %v2307
        %v2309 = vmul.f32 %v2304, %v2308
        %vm2310 = vweird.f32 %v2302
        %vm2311 = vweird.f32 %v2304
        %vm2312 = vmor %vm2310, %vm2311
        %v2313 = vsel %vm2312, %v2304, %v2309
        %v2314 = vrsqrt.pop %v2303
        %v2315 = vmul.f32 %v2314, %v2303
        %v2316 = vmul.f32 %v2315, %v2314
        %v2317 = vmul.f32 0.5, %v2316
        %v2318 = vsub.f32 1.5, %v2317
        %v2319 = vmul.f32 %v2314, %v2318
        %vm2320 = vweird.f32 %v2303
        %vm2321 = vweird.f32 %v2314
        %vm2322 = vmor %vm2320, %vm2321
        %v2323 = vsel %vm2322, %v2314, %v2319
        %v2324 = vmul.f32 %v2262, %v2313
        %v2325 = vmul.f32 %v2264, %v2323
        %v2326 = vpack.c.bf16 %v2294, %v2294
        %v2327 = vpack.c.bf16 %v2295, %v2295
        %v2328 = vpack.c.bf16 %v2324, %v2324
        %v2329 = vpack.c.bf16 %v2325, %v2325
        %v2332 = vunpack.c.l.b16 %v2326
        %v2333 = vunpack.c.l.b16 %v2327
        %v2334 = vpack.c.b16 %v2333, %v2332
        %v2338 = vunpack.c.l.b16 %v2328
        %v2339 = vunpack.c.l.b16 %v2329
        %v2340 = vpack.c.b16 %v2339, %v2338
        %v2342 = vld [vmem:[%s49] sm:$0xf]
        %v2343 = vld [vmem:[%s49 + $0x4] sm:$0xf]
        %v2344 = vld [vmem:[%s49 + $0x8] sm:$0xf]
        %v2345 = vld [vmem:[%s49 + $0xc] sm:$0xf]
        %v2346 = vld [vmem:[%s49 + $0x10] sm:$0xf]
        %v2347 = vld [vmem:[%s49 + $0x14] sm:$0xf]
        %v2348 = vld [vmem:[%s49 + $0x18] sm:$0xf]
        %v2349 = vld [vmem:[%s49 + $0x1c] sm:$0xf]
        %v2350 = vld [vmem:[%s49 + $0x20] sm:$0xf]
        %v2351 = vld [vmem:[%s49 + $0x24] sm:$0xf]
        %v2352 = vld [vmem:[%s49 + $0x28] sm:$0xf]
        %v2353 = vld [vmem:[%s49 + $0x2c] sm:$0xf]
        %v2354 = vld [vmem:[%s49 + $0x30] sm:$0xf]
        %v2355 = vld [vmem:[%s49 + $0x34] sm:$0xf]
        %v2356 = vld [vmem:[%s49 + $0x38] sm:$0xf]
        %v2357 = vld [vmem:[%s49 + $0x3c] sm:$0xf]
        %v2358 = vld [vmem:[%s49 + $0x40] sm:$0xf]
        %v2359 = vld [vmem:[%s49 + $0x44] sm:$0xf]
        %v2360 = vld [vmem:[%s49 + $0x48] sm:$0xf]
        %v2361 = vld [vmem:[%s49 + $0x4c] sm:$0xf]
        %v2362 = vld [vmem:[%s49 + $0x50] sm:$0xf]
        %v2363 = vld [vmem:[%s49 + $0x54] sm:$0xf]
        %v2364 = vld [vmem:[%s49 + $0x58] sm:$0xf]
        %v2365 = vld [vmem:[%s49 + $0x5c] sm:$0xf]
        %v2366 = vld [vmem:[%s49 + $0x60] sm:$0xf]
        %v2367 = vld [vmem:[%s49 + $0x64] sm:$0xf]
        %v2368 = vld [vmem:[%s49 + $0x68] sm:$0xf]
        %v2369 = vld [vmem:[%s49 + $0x6c] sm:$0xf]
        %v2370 = vld [vmem:[%s49 + $0x70] sm:$0xf]
        %v2371 = vld [vmem:[%s49 + $0x74] sm:$0xf]
        %v2372 = vld [vmem:[%s49 + $0x78] sm:$0xf]
        %v2373 = vld [vmem:[%s49 + $0x7c] sm:$0xf]
        %v2406 = vunpack.c.l.b16 %v2342
        %v2407 = vunpack.c.l.b16 %v2343
        %v2408 = vunpack.c.l.b16 %v2344
        %v2409 = vunpack.c.l.b16 %v2345
        %v2410 = vunpack.c.l.b16 %v2346
        %v2411 = vunpack.c.l.b16 %v2347
        %v2412 = vunpack.c.l.b16 %v2348
        %v2413 = vunpack.c.l.b16 %v2349
        %v2414 = vunpack.c.l.b16 %v2350
        %v2415 = vunpack.c.l.b16 %v2351
        %v2416 = vunpack.c.l.b16 %v2352
        %v2417 = vunpack.c.l.b16 %v2353
        %v2418 = vunpack.c.l.b16 %v2354
        %v2419 = vunpack.c.l.b16 %v2355
        %v2420 = vunpack.c.l.b16 %v2356
        %v2421 = vunpack.c.l.b16 %v2357
        %v2422 = vunpack.c.l.b16 %v2358
        %v2423 = vunpack.c.l.b16 %v2359
        %v2424 = vunpack.c.l.b16 %v2360
        %v2425 = vunpack.c.l.b16 %v2361
        %v2426 = vunpack.c.l.b16 %v2362
        %v2427 = vunpack.c.l.b16 %v2363
        %v2428 = vunpack.c.l.b16 %v2364
        %v2429 = vunpack.c.l.b16 %v2365
        %v2430 = vunpack.c.l.b16 %v2366
        %v2431 = vunpack.c.l.b16 %v2367
        %v2432 = vunpack.c.l.b16 %v2368
        %v2433 = vunpack.c.l.b16 %v2369
        %v2434 = vunpack.c.l.b16 %v2370
        %v2435 = vunpack.c.l.b16 %v2371
        %v2436 = vunpack.c.l.b16 %v2372
        %v2437 = vunpack.c.l.b16 %v2373
        %v2438 = vpack.c.b16 %v2407, %v2406
        %v2439 = vpack.c.b16 %v2409, %v2408
        %v2440 = vpack.c.b16 %v2411, %v2410
        %v2441 = vpack.c.b16 %v2413, %v2412
        %v2442 = vpack.c.b16 %v2415, %v2414
        %v2443 = vpack.c.b16 %v2417, %v2416
        %v2444 = vpack.c.b16 %v2419, %v2418
        %v2445 = vpack.c.b16 %v2421, %v2420
        %v2446 = vpack.c.b16 %v2423, %v2422
        %v2447 = vpack.c.b16 %v2425, %v2424
        %v2448 = vpack.c.b16 %v2427, %v2426
        %v2449 = vpack.c.b16 %v2429, %v2428
        %v2450 = vpack.c.b16 %v2431, %v2430
        %v2451 = vpack.c.b16 %v2433, %v2432
        %v2452 = vpack.c.b16 %v2435, %v2434
        %v2453 = vpack.c.b16 %v2437, %v2436
        %2470 = vmatpush.bf16.msra.mxu0 %v2445
        %2471 = vmatpush.bf16.msra.mxu0 %v2444
        %2472 = vmatpush.bf16.msra.mxu0 %v2443
        %2473 = vmatpush.bf16.msra.mxu0 %v2442
        %2474 = vmatpush.bf16.msra.mxu0 %v2441
        %2475 = vmatpush.bf16.msra.mxu0 %v2440
        %2476 = vmatpush.bf16.msra.mxu0 %v2439
        %2477 = vmatpush.bf16.msra.mxu0 %v2438
        %2478 = vmatmul.bf16.gmra.mxu0 %v2334
        %v2479 = vpop.f32.mrf.mxu0
        %v2480 = vadd.f32 0.0, %v2479
        %v2481 = vpop.f32.mrf.mxu0
        %v2482 = vadd.f32 0.0, %v2481
        %2483 = vdwg.mxu0
        %2484 = vmatpush.bf16.msra.mxu0 %v2453
        %2485 = vmatpush.bf16.msra.mxu0 %v2452
        %2486 = vmatpush.bf16.msra.mxu0 %v2451
        %2487 = vmatpush.bf16.msra.mxu0 %v2450
        %2488 = vmatpush.bf16.msra.mxu0 %v2449
        %2489 = vmatpush.bf16.msra.mxu0 %v2448
        %2490 = vmatpush.bf16.msra.mxu0 %v2447
        %2491 = vmatpush.bf16.msra.mxu0 %v2446
        %2492 = vmatmul.bf16.gmra.mxu0 %v2340
        %v2493 = vpop.f32.mrf.mxu0
        %v2494 = vadd.f32 %v2480, %v2493
        %v2495 = vpop.f32.mrf.mxu0
        %v2496 = vadd.f32 %v2482, %v2495
        %2497 = vdwg.mxu0
        %2498 = vst [vmem:[%s1176] sm:$0xff] %v2494
        %2499 = vst [vmem:[%s1176 + $0x8] sm:$0xff] %v2496
        %2500 = vst [vmem:[%s1182] sm:$0xff] %v2294
        %2501 = vst [vmem:[%s1182 + $0x8] sm:$0xff] %v2295
        %s2502 = smul.u32 2, %s78
        %p2503 = scmp.lt.s32.totalorder %s2502, 5
        %s2504 = scalar_select %p2503, %s2502, 5
        %s2505 = smul.addr %s2504, 8
        %s2506 = scalar_lea.vmem %s51, %s2505
        %s2507 = smul.u32 2, %s78
        %p2508 = scmp.lt.s32.totalorder %s2507, 5
        %s2509 = scalar_select %p2508, %s2507, 5
        %s2510 = smul.addr %s2509, 8
        %s2511 = scalar_lea.vmem %s53, %s2510
        %s2512 = smul.u32 2, %s78
        %p2513 = scmp.lt.s32.totalorder %s2512, 5
        %s2514 = scalar_select %p2513, %s2512, 5
        %s2515 = smul.addr %s2514, 8
        %s2516 = scalar_lea.vmem %s55, %s2515
        %s2517 = smul.u32 2, %s78
        %p2518 = scmp.lt.s32.totalorder %s2517, 5
        %s2519 = scalar_select %p2518, %s2517, 5
        %s2520 = smul.addr %s2519, 8
        %s2521 = scalar_lea.vmem %s57, %s2520
        %s2522 = smul.u32 2, %s78
        %p2523 = scmp.lt.s32.totalorder %s2522, 5
        %s2524 = scalar_select %p2523, %s2522, 5
        %s2525 = smul.addr %s2524, 8
        %s2526 = scalar_lea.vmem %s59, %s2525
        // Predicated region
        $region169: #{hoiclip_forward.3} parent=119 // pred_check
          %p2527 = pneg %p636
        $region170: #{hoiclip_forward.3} parent=119 // pred_check_branch
          %2529 = sbr.rel (%p2527) target = $region172
        $region171: #{hoiclip_forward.3} parent=119 // pred_region
          %s2530 = smul.u32 2, %s78
        $region172: #{hoiclip_forward.3} parent=119 // pred_fallthru
          _
        // Predicated region
        $region173: #{hoiclip_forward.3} parent=119 // pred_check
          %p2531 = pneg %p662
        $region174: #{hoiclip_forward.3} parent=119 // pred_check_branch
          %2533 = sbr.rel (%p2531) target = $region176
        $region175: #{hoiclip_forward.3} parent=119 // pred_region
          %s2534 = smul.u32 2, %s78
        $region176: #{hoiclip_forward.3} parent=119 // pred_fallthru
          _
        // Predicated region
        $region177: #{hoiclip_forward.3} parent=119 // pred_check
          %p2535 = pneg %p688
        $region178: #{hoiclip_forward.3} parent=119 // pred_check_branch
          %2537 = sbr.rel (%p2535) target = $region180
        $region179: #{hoiclip_forward.3} parent=119 // pred_region
          %s2538 = smul.u32 2, %s78
        $region180: #{hoiclip_forward.3} parent=119 // pred_fallthru
          _
        // Predicated region
        $region181: #{hoiclip_forward.3} parent=119 // pred_check
          %p2539 = pneg %p714
        $region182: #{hoiclip_forward.3} parent=119 // pred_check_branch
          %2541 = sbr.rel (%p2539) target = $region184
        $region183: #{hoiclip_forward.3} parent=119 // pred_region
          %s2542 = smul.u32 2, %s78
        $region184: #{hoiclip_forward.3} parent=119 // pred_fallthru
          _
        // Predicated region
        $region185: #{hoiclip_forward.3} parent=119 // pred_check
          %p2543 = pneg %p740
        $region186: #{hoiclip_forward.3} parent=119 // pred_check_branch
          %2545 = sbr.rel (%p2543) target = $region188
        $region187: #{hoiclip_forward.3} parent=119 // pred_region
          %s2546 = smul.u32 2, %s78
        $region188: #{hoiclip_forward.3} parent=119 // pred_fallthru
          _
      $region120: #{hoiclip_forward.3} parent=5 // pred_fallthru
        _
      %p2547 = scmp.le.s32.totalorder 2, %s73
      // Predicated region
      $region189: #{hoiclip_forward.3} parent=5 // pred_check
        %p2548 = pneg %p2547
      $region190: #{hoiclip_forward.3} parent=5 // pred_check_branch
        %2550 = sbr.rel (%p2548) target = $region192
      $region191: #{hoiclip_forward.3} parent=5 // pred_region
        %s2551 = ssub.s32 %s73, 2
        // Predicated region
        $region193: #{hoiclip_forward.3} parent=191 // pred_check
          %p2552 = pneg %p642
        $region194: #{hoiclip_forward.3} parent=191 // pred_check_branch
          %2554 = sbr.rel (%p2552) target = $region196
        $region195: #{hoiclip_forward.3} parent=191 // pred_region
          %s2555 = smul.u32 2, %s79
          %p2556 = scmp.lt.s32.totalorder %s2555, 5
          %s2557 = scalar_select %p2556, %s2555, 5
          %s2558 = smul.addr %s2557, 8
          %s2559 = scalar_lea.vmem %s51, %s2558
        $region196: #{hoiclip_forward.3} parent=191 // pred_fallthru
          _
        // Predicated region
        $region197: #{hoiclip_forward.3} parent=191 // pred_check
          %p2560 = pneg %p668
        $region198: #{hoiclip_forward.3} parent=191 // pred_check_branch
          %2562 = sbr.rel (%p2560) target = $region200
        $region199: #{hoiclip_forward.3} parent=191 // pred_region
          %s2563 = smul.u32 2, %s79
          %p2564 = scmp.lt.s32.totalorder %s2563, 5
          %s2565 = scalar_select %p2564, %s2563, 5
          %s2566 = smul.addr %s2565, 8
          %s2567 = scalar_lea.vmem %s53, %s2566
        $region200: #{hoiclip_forward.3} parent=191 // pred_fallthru
          _
        // Predicated region
        $region201: #{hoiclip_forward.3} parent=191 // pred_check
          %p2568 = pneg %p694
        $region202: #{hoiclip_forward.3} parent=191 // pred_check_branch
          %2570 = sbr.rel (%p2568) target = $region204
        $region203: #{hoiclip_forward.3} parent=191 // pred_region
          %s2571 = smul.u32 2, %s79
          %p2572 = scmp.lt.s32.totalorder %s2571, 5
          %s2573 = scalar_select %p2572, %s2571, 5
          %s2574 = smul.addr %s2573, 8
          %s2575 = scalar_lea.vmem %s55, %s2574
        $region204: #{hoiclip_forward.3} parent=191 // pred_fallthru
          _
        // Predicated region
        $region205: #{hoiclip_forward.3} parent=191 // pred_check
          %p2576 = pneg %p720
        $region206: #{hoiclip_forward.3} parent=191 // pred_check_branch
          %2578 = sbr.rel (%p2576) target = $region208
        $region207: #{hoiclip_forward.3} parent=191 // pred_region
          %s2579 = smul.u32 2, %s79
          %p2580 = scmp.lt.s32.totalorder %s2579, 5
          %s2581 = scalar_select %p2580, %s2579, 5
          %s2582 = smul.addr %s2581, 8
          %s2583 = scalar_lea.vmem %s57, %s2582
        $region208: #{hoiclip_forward.3} parent=191 // pred_fallthru
          _
        // Predicated region
        $region209: #{hoiclip_forward.3} parent=191 // pred_check
          %p2584 = pneg %p746
        $region210: #{hoiclip_forward.3} parent=191 // pred_check_branch
          %2586 = sbr.rel (%p2584) target = $region212
        $region211: #{hoiclip_forward.3} parent=191 // pred_region
          %s2587 = smul.u32 2, %s79
          %p2588 = scmp.lt.s32.totalorder %s2587, 5
          %s2589 = scalar_select %p2588, %s2587, 5
          %s2590 = smul.addr %s2589, 8
          %s2591 = scalar_lea.vmem %s59, %s2590
        $region212: #{hoiclip_forward.3} parent=191 // pred_fallthru
          _
      $region192: #{hoiclip_forward.3} parent=5 // pred_fallthru
        _
    $region6: #{hoiclip_forward.3} parent=1 // loop_footer
      %s77 = sadd.s32 1, %s73
    $region7: #{hoiclip_forward.3} parent=1 // loop_footer_branch
      %72 = sbr.rel target = $region3
    $region8: #{hoiclip_forward.3} parent=1 // loop_exit
      _
    %2592 = vsyncpa [#allocation6], 1
    %s2593 = scalar_lea.sflag [#allocation6], 1
    %2594 = vsyncpa %s2593, 1
    %2595 = vsyncpa [#allocation8], 1
    %2596 = vsyncpa [#allocation11], 1
    %2597 = vsyncpa [#allocation14], 1
    %2598 = vsyncpa [#allocation17], 1
    %2599 = vsyncpa [#allocation20], 1
    %2600 = vsyncpa [#allocation23], 1

</llo_original>
